<compile_context>
chip_gen: v7x
topology: tpu7x:2x2x1
jax: 0.10.0
libtpu: 0.0.40
codegen_flags: <defaults>
</compile_context>

<pallas_src>
import functools
import math

import jax
import jax.numpy as jnp
from jax import lax
from jax.experimental import pallas as pl
from jax.experimental.pallas import tpu as pltpu

# ---- configuration (mirrors SPADHistNV.__init__ defaults, spatially scaled down) ----
HAND_BATCH = 1
NUM_CAMERAS = 8
CAM_BATCH = HAND_BATCH * NUM_CAMERAS
RESOLUTION = 64                # module default is 256; reduced for a small runnable demo
N_PIX = RESOLUTION * RESOLUTION
NUM_BINS = 64
NBP1 = NUM_BINS + 1
BIN_SIZE = 0.0136
FOV = 33.0
CAM_SENSOR_DIST = 0.001
SIGMOID_SIGMA = 3.0
LASER_SIGMA = math.tan(math.radians(21.5)) / 1.4
ALBEDO = 0.2                   # self.albedo init value
NOISE = 1e-6                   # self.noise init value
JITTER_KW = 9                  # odd tap count -> unambiguous 'same' padding
JITTER_PAD = (JITTER_KW - 1) // 2

_SCALE = math.tan(FOV * math.pi / 180.0 / 2.0)
WIDTH = 2.0 * _SCALE

# folded constants:
#   radiance' = 0.5 * radiance   (0.5 from sigmoid(x)=0.5*(1+tanh(x/2)))
#   tanh arg  = sd - b_scaled,  sd = sigma/(4*bin_size) * (|itx| + laser_d),  b_scaled = 0.5*sigma*b
HALF_RAD_CONST = 0.5 * WIDTH * WIDTH / (math.pi * RESOLUTION * RESOLUTION)
INV_TWO_SIGMA2 = 1.0 / (2.0 * LASER_SIGMA * LASER_SIGMA)
SD_CONST = SIGMOID_SIGMA / (4.0 * BIN_SIZE)
BIN_SCALE = 0.5 * SIGMOID_SIGMA

PIX_CHUNK_TARGET = 8192        # pixels per grid step (reduction axis); min'd with N_PIX
LANE = 128                     # native lane width; outputs are padded to it


# -------------------- fused kernel: transients + sensor response ---------------------
def _spad_kernel(pix_chunk, params_ref, jitter_ref, film_ref, cos_ref, nrm_ref,
                 itx_ref, t_out_ref, q_out_ref, acc_ref):
    # program_id / num_programs only at the top level (never inside pl.when bodies).
    cam = pl.program_id(0)
    chunk = pl.program_id(1)
    last_chunk = pl.num_programs(1) - 1

    @pl.when(chunk == 0)
    def _init():
        acc_ref[...] = jnp.zeros_like(acc_ref)

    # film/cos are VMEM-resident (constant index_map); slice the current pixel chunk.
    off = chunk * pix_chunk
    film = film_ref[:, pl.ds(off, pix_chunk)]          # (3, P)
    cosm = cos_ref[:, pl.ds(off, pix_chunk)]           # (1, P)
    nrm = nrm_ref[0]                                   # (3, P)
    itx = itx_ref[0]                                   # (3, P)

    # dots = clip(<film_mask, normals>, 0, 1)
    dots = jnp.clip(jnp.sum(film * nrm, axis=0, keepdims=True), 0.0, 1.0)

    # laser geometry (tan^2 computed directly: one sqrt saved) + invalid-pixel guard
    lx = itx[0:1, :] - 2.0 * CAM_SENSOR_DIST
    ly = itx[1:2, :]
    lz = itx[2:3, :]
    lxy2 = lx * lx + ly * ly
    lz2 = lz * lz
    laser_d2 = lxy2 + lz2
    laser_d = jnp.sqrt(laser_d2)
    laser_mask = jnp.exp(-(lxy2 / jnp.maximum(lz2, 1e-20)) * INV_TWO_SIGMA2)

    valid = laser_d2 > 1e-12                           # background/degenerate pixels -> 0
    rad_half = jnp.where(
        valid,
        dots * laser_mask * (cosm * cosm * cosm)
        * (HALF_RAD_CONST / jnp.maximum(laser_d2, 1e-20)),
        0.0)                                           # (1, P), = 0.5 * radiance

    itx_d = jnp.sqrt(itx[0:1, :] ** 2 + itx[1:2, :] ** 2 + itx[2:3, :] ** 2)
    sd = (itx_d + laser_d) * SD_CONST                  # (1, P), = 0.5*sigma*d_bin

    # tanh formulation: one EUP push per (bin, pixel); per-pixel differencing of adjacent
    # rows (no acc[b]-acc[b+1] cancellation), lane-reduced into the (64,1) accumulator.
    bins_scaled = (lax.broadcasted_iota(jnp.int32, (NBP1, 1), 0).astype(jnp.float32)
                   * BIN_SCALE)                        # (NBP1, 1)
    t_mat = jnp.tanh(sd - bins_scaled)                 # (NBP1, P)
    d_mat = t_mat[:NUM_BINS] - t_mat[1:]               # (NB, P)
    acc_ref[...] += jnp.sum(d_mat * rad_half, axis=1, keepdims=True)   # (NB, 1)

    # ------------------ epilogue: sensor response, fused (per camera) ----------------
    @pl.when(chunk == last_chunk)
    def _sensor_response():
        t_col = acc_ref[...]                                            # (NB, 1) transients

        sub = lax.broadcasted_iota(jnp.int32, (NUM_BINS, LANE), 0)      # bin index i
        lane = lax.broadcasted_iota(jnp.int32, (NUM_BINS, LANE), 1)     # output index j
        pick_eq = (sub == lane).astype(jnp.float32)
        pick_lt = (sub < lane).astype(jnp.float32)

        # lane-dense transients row (zeros past NUM_BINS, sliced off outside)
        t_row = jnp.sum(t_col * pick_eq, axis=0, keepdims=True)         # (1, LANE)
        t_out_ref[0] = t_row

        albedo = params_ref[0]
        noise = params_ref[1]
        # TODO(synk): PyTorch adds torch.randn_like(albedo) * 0.002; omitted for determinism.
        h_col = t_col * albedo + noise                                  # (NB, 1)
        h_row = jnp.sum(h_col * pick_eq, axis=0, keepdims=True)         # hists (row)
        r_row = jnp.sum(h_col * pick_lt, axis=0, keepdims=True)         # exclusive cumsum
        p_row = (1.0 - jnp.exp(-h_row)) * jnp.exp(-r_row)               # zero past NUM_BINS

        # per-camera 9-tap depthwise 'same' conv as an iota-mask matvec:
        #   q[m] = sum_j p[j] * w[cam, j - m + PAD]
        jrow = cam % NUM_CAMERAS
        conv_k = jnp.zeros((NUM_BINS, LANE), jnp.float32)
        for k in range(JITTER_KW):
            w_k = jitter_ref[jrow, k]                                   # scalar SMEM read
            conv_k = conv_k + jnp.where(lane - sub == (k - JITTER_PAD), w_k, 0.0)
        q_col = jnp.sum(p_row * conv_k, axis=1, keepdims=True)          # (NB, 1)
        q_row = jnp.sum(q_col * pick_eq, axis=0, keepdims=True)         # (1, LANE)
        q_out_ref[0] = q_row


def spad_forward_pallas(film_cn, cos_cn, normals_bcn, itx_bcn, jitter_w, params):
    n_pix = film_cn.shape[1]
    pix_chunk = min(PIX_CHUNK_TARGET, n_pix)
    assert n_pix % pix_chunk == 0 and pix_chunk % LANE == 0
    n_chunks = n_pix // pix_chunk

    t3, q3 = pl.pallas_call(
        functools.partial(_spad_kernel, pix_chunk),
        out_shape=(
            jax.ShapeDtypeStruct((CAM_BATCH, 1, LANE), jnp.float32),
            jax.ShapeDtypeStruct((CAM_BATCH, 1, LANE), jnp.float32),
        ),
        grid=(CAM_BATCH, n_chunks),
        in_specs=[
            pl.BlockSpec(memory_space=pltpu.MemorySpace.SMEM),           # params (2,)
            pl.BlockSpec(memory_space=pltpu.MemorySpace.SMEM),           # jitter (8, KW)
            pl.BlockSpec((3, n_pix), lambda c, n: (0, 0)),               # film: VMEM-resident
            pl.BlockSpec((1, n_pix), lambda c, n: (0, 0)),               # cos:  VMEM-resident
            pl.BlockSpec((1, 3, pix_chunk), lambda c, n: (c, 0, n)),     # normals
            pl.BlockSpec((1, 3, pix_chunk), lambda c, n: (c, 0, n)),     # intersections
        ],
        out_specs=(
            pl.BlockSpec((1, 1, LANE), lambda c, n: (c, 0, 0)),          # transients (padded)
            pl.BlockSpec((1, 1, LANE), lambda c, n: (c, 0, 0)),          # q          (padded)
        ),
        scratch_shapes=[pltpu.VMEM((NUM_BINS, 1), jnp.float32)],
        compiler_params=pltpu.CompilerParams(
            dimension_semantics=("parallel", "arbitrary"),
            vmem_limit_bytes=32 * 1024 * 1024,
        ),
    )(params, jitter_w, film_cn, cos_cn, normals_bcn, itx_bcn)

    return t3[:, 0, :NUM_BINS], q3[:, 0, :NUM_BINS]


# ------------------------------------ pure-JAX reference -----------------------------
def _reference_forward(film_hwc, cos_hw, normals_bhwc, itx_bhwc, jitter_w):
    dots = jnp.clip(
        jnp.einsum('ijk,bijk->bij', film_hwc, normals_bhwc, precision='highest'),
        0.0, 1.0)
    laser_points = itx_bhwc - jnp.array([2.0 * CAM_SENSOR_DIST, 0.0, 0.0], jnp.float32)
    laser_d = jnp.linalg.norm(laser_points, axis=3)
    laser_tan = (jnp.sqrt(laser_points[..., 0] ** 2 + laser_points[..., 1] ** 2)
                 / laser_points[..., 2])
    laser_mask = jnp.exp(-laser_tan ** 2 / (2.0 * LASER_SIGMA * LASER_SIGMA))
    dots = dots * laser_mask
    radiance = (dots / laser_d / laser_d / jnp.pi * WIDTH * WIDTH
                * cos_hw ** 3 / RESOLUTION / RESOLUTION)
    depths = (jnp.linalg.norm(itx_bhwc, axis=3) + laser_d) / 2.0
    d_bin = depths[..., None] / BIN_SIZE
    b = jnp.arange(NUM_BINS, dtype=jnp.float32)
    kern = (jax.nn.sigmoid(SIGMOID_SIGMA * (d_bin - b))
            - jax.nn.sigmoid(SIGMOID_SIGMA * (d_bin - b - 1.0)))
    transients = jnp.einsum('bijk,bij->bk', kern, radiance, precision='highest')

    hists = transients * ALBEDO + NOISE
    r_sum = jnp.cumsum(
        jnp.concatenate([jnp.zeros((CAM_BATCH, 1), jnp.float32), hists[:, :-1]], axis=1),
        axis=1)
    p = (1.0 - jnp.exp(-hists)) * jnp.exp(-r_sum)
    p_pad = jnp.pad(p, ((0, 0), (JITTER_PAD, JITTER_PAD)))
    q = jnp.zeros_like(p)
    for k in range(JITTER_KW):
        q = q + p_pad[:, k:k + NUM_BINS] * jitter_w[:, k:k + 1]
    return transients, q


# ---------------------------------------- main ---------------------------------------
if __name__ == "__main__":
    # film / cos masks exactly as in __init__
    center_scale = _SCALE * (1.0 - 1.0 / RESOLUTION)
    lin = jnp.linspace(-center_scale, center_scale, RESOLUTION)
    gx, gy = jnp.meshgrid(lin, lin, indexing='xy')
    film = jnp.stack([gx, -gy, -jnp.ones_like(gx)], axis=2)
    film_hwc = (-film / jnp.linalg.norm(film, axis=2, keepdims=True)).astype(jnp.float32)
    cos_hw = (1.0 / jnp.sqrt(gx ** 2 + gy ** 2 + 1.0)).astype(jnp.float32)

    key = jax.random.PRNGKey(0)
    k1, k2, k3, k4, k5, k6 = jax.random.split(key, 6)

    # module interface inputs (unused downstream: MANO is not translatable)
    shape = jax.random.normal(k1, (HAND_BATCH, 10), jnp.float32) * 0.1
    pose = jax.random.normal(k2, (HAND_BATCH, 45), jnp.float32) * 0.1

    # TODO(synk): MANO skinning + nvdiffrast rasterize/interpolate have no Pallas
    # equivalent; the rasterizer outputs (per-pixel normals + camera-space intersections)
    # are synthesized deterministically here instead.
    nrm = jax.random.normal(k3, (CAM_BATCH, RESOLUTION, RESOLUTION, 3), jnp.float32)
    normals_bhwc = nrm / jnp.linalg.norm(nrm, axis=3, keepdims=True)
    xy_pts = jax.random.uniform(k4, (CAM_BATCH, RESOLUTION, RESOLUTION, 2),
                                minval=-0.05, maxval=0.05)
    z_pts = jax.random.uniform(k5, (CAM_BATCH, RESOLUTION, RESOLUTION, 1),
                               minval=-0.35, maxval=-0.15)
    itx_bhwc = jnp.concatenate([xy_pts, z_pts], axis=3).astype(jnp.float32)

    # deterministic stand-in for jitters['jitter_kernel'] (groups=num_cameras, kW taps)
    jw = jax.random.uniform(k6, (NUM_CAMERAS, JITTER_KW), minval=0.0, maxval=1.0)
    jitter_w = (jw / jnp.sum(jw, axis=1, keepdims=True)).astype(jnp.float32)
    params = jnp.array([ALBEDO, NOISE], dtype=jnp.float32)

    # reshape to the kernel layout (channel-major, pixels on the lane axis)
    film_cn = film_hwc.reshape(N_PIX, 3).T
    cos_cn = cos_hw.reshape(1, N_PIX)
    normals_bcn = jnp.transpose(normals_bhwc.reshape(CAM_BATCH, N_PIX, 3), (0, 2, 1))
    itx_bcn = jnp.transpose(itx_bhwc.reshape(CAM_BATCH, N_PIX, 3), (0, 2, 1))

    transients, q = spad_forward_pallas(film_cn, cos_cn, normals_bcn, itx_bcn,
                                        jitter_w, params)
    jax.block_until_ready((transients, q))

    ref_t, ref_q = _reference_forward(film_hwc, cos_hw, normals_bhwc, itx_bhwc, jitter_w)
    ok_t = bool(jnp.allclose(transients, ref_t, rtol=2e-4, atol=1e-6))
    ok_q = bool(jnp.allclose(q, ref_q, rtol=2e-4, atol=1e-6))
    if not (ok_t and ok_q):
        raise AssertionError(
            f"mismatch: transients ok={ok_t}, q ok={ok_q}, "
            f"max|dt|={float(jnp.max(jnp.abs(transients - ref_t)))}, "
            f"max|dq|={float(jnp.max(jnp.abs(q - ref_q)))}")
    print("KERNEL_OK")
</pallas_src>

<mosaic_0001>
module attributes {stable_mosaic.version = 11 : i64} {
  func.func @_spad_kernel(%arg0: i32, %arg1: i32, %arg2: memref<2xf32, #tpu.memory_space<smem>>, %arg3: memref<8x9xf32, #tpu.memory_space<smem>>, %arg4: memref<3x4096xf32, #tpu.memory_space<vmem>>, %arg5: memref<1x4096xf32, #tpu.memory_space<vmem>>, %arg6: memref<1x3x4096xf32, #tpu.memory_space<vmem>>, %arg7: memref<1x3x4096xf32, #tpu.memory_space<vmem>>, %arg8: memref<1x1x128xf32, #tpu.memory_space<vmem>>, %arg9: memref<1x1x128xf32, #tpu.memory_space<vmem>>, %arg10: memref<64x1xf32, #tpu.memory_space<vmem>>) attributes {dimension_semantics = [#tpu.dimension_semantics<parallel>, #tpu.dimension_semantics<arbitrary>], iteration_bounds = array<i64: 8, 1>, scalar_prefetch = 0 : i64, scratch_operands = 1 : i64, tpu.core_type = #tpu.core_type<tc>, window_params = [{transform_indices = @transform_0, window_bounds = array<i64: 2>}, {transform_indices = @transform_1, window_bounds = array<i64: 8, 9>}, {pipeline_mode = #tpu.pipeline_mode<synchronous>, transform_indices = @transform_2, window_bounds = array<i64: 3, 4096>}, {pipeline_mode = #tpu.pipeline_mode<synchronous>, transform_indices = @transform_3, window_bounds = array<i64: 1, 4096>}, {transform_indices = @transform_4, window_bounds = array<i64: 1, 3, 4096>}, {transform_indices = @transform_5, window_bounds = array<i64: 1, 3, 4096>}, {transform_indices = @transform_6, window_bounds = array<i64: 1, 1, 128>}, {transform_indices = @transform_7, window_bounds = array<i64: 1, 1, 128>}]} {
    %c0_i32 = arith.constant 0 : i32
    %0 = arith.cmpi eq, %arg1, %c0_i32 : i32
    %1 = arith.extui %0 : i1 to i32
    %c0_i32_0 = arith.constant 0 : i32
    %2 = arith.cmpi ne, %1, %c0_i32_0 : i32
    scf.if %2 {
      %cst_27 = arith.constant 0.000000e+00 : f32
      %84 = vector.broadcast %cst_27 : f32 to vector<64x1xf32>
      %c0_28 = arith.constant 0 : index
      %c0_29 = arith.constant 0 : index
      %85 = vector.load %arg10[%c0_28, %c0_29] : memref<64x1xf32, #tpu.memory_space<vmem>>, vector<64x1xf32>
      tpu.vector_store %arg10[%c0_28, %c0_29], %84 {strides = array<i32>} : memref<64x1xf32, #tpu.memory_space<vmem>>, vector<64x1xf32>,
    } else {
    }
    %c4096_i32 = arith.constant 4096 : i32
    %3 = arith.muli %arg1, %c4096_i32 : i32
    %c0 = arith.constant 0 : index
    %4 = arith.index_cast %3 : i32 to index
    %5 = vector.load %arg4[%c0, %4] : memref<3x4096xf32, #tpu.memory_space<vmem>>, vector<3x4096xf32>
    %c0_1 = arith.constant 0 : index
    %6 = arith.index_cast %3 : i32 to index
    %7 = vector.load %arg5[%c0_1, %6] : memref<1x4096xf32, #tpu.memory_space<vmem>>, vector<1x4096xf32>
    %c0_2 = arith.constant 0 : index
    %c0_3 = arith.constant 0 : index
    %c0_4 = arith.constant 0 : index
    %8 = vector.load %arg6[%c0_2, %c0_3, %c0_4] : memref<1x3x4096xf32, #tpu.memory_space<vmem>>, vector<1x3x4096xf32>
    %9 = vector.shape_cast %8 : vector<1x3x4096xf32> to vector<3x4096xf32>
    %c0_5 = arith.constant 0 : index
    %c0_6 = arith.constant 0 : index
    %c0_7 = arith.constant 0 : index
    %10 = vector.load %arg7[%c0_5, %c0_6, %c0_7] : memref<1x3x4096xf32, #tpu.memory_space<vmem>>, vector<1x3x4096xf32>
    %11 = vector.shape_cast %10 : vector<1x3x4096xf32> to vector<3x4096xf32>
    %12 = arith.mulf %5, %9 : vector<3x4096xf32>
    %cst = arith.constant dense<0.000000e+00> : vector<4096xf32>
    %13 = vector.multi_reduction <add>, %12, %cst [0] : vector<3x4096xf32> to vector<4096xf32>
    %14 = vector.shape_cast %13 : vector<4096xf32> to vector<1x4096xf32>
    %cst_8 = arith.constant 0.000000e+00 : f32
    %cst_9 = arith.constant 1.000000e+00 : f32
    %15 = vector.broadcast %cst_8 : f32 to vector<1x4096xf32>
    %16 = arith.maximumf %15, %14 : vector<1x4096xf32>
    %17 = vector.broadcast %cst_9 : f32 to vector<1x4096xf32>
    %18 = arith.minimumf %17, %16 : vector<1x4096xf32>
    %19 = vector.extract_strided_slice %11 {offsets = [0, 0], sizes = [1, 4096], strides = [1, 1]} : vector<3x4096xf32> to vector<1x4096xf32>
    %cst_10 = arith.constant 2.000000e-03 : f32
    %20 = vector.broadcast %cst_10 : f32 to vector<1x4096xf32>
    %21 = arith.subf %19, %20 : vector<1x4096xf32>
    %22 = vector.extract_strided_slice %11 {offsets = [1, 0], sizes = [1, 4096], strides = [1, 1]} : vector<3x4096xf32> to vector<1x4096xf32>
    %23 = vector.extract_strided_slice %11 {offsets = [2, 0], sizes = [1, 4096], strides = [1, 1]} : vector<3x4096xf32> to vector<1x4096xf32>
    %24 = arith.mulf %21, %21 : vector<1x4096xf32>
    %25 = arith.mulf %22, %22 : vector<1x4096xf32>
    %26 = arith.addf %24, %25 : vector<1x4096xf32>
    %27 = arith.mulf %23, %23 : vector<1x4096xf32>
    %28 = arith.addf %26, %27 : vector<1x4096xf32>
    %29 = math.sqrt %28 : vector<1x4096xf32>
    %cst_11 = arith.constant 9.99999968E-21 : f32
    %30 = vector.broadcast %cst_11 : f32 to vector<1x4096xf32>
    %31 = arith.maximumf %27, %30 : vector<1x4096xf32>
    %32 = arith.divf %26, %31 : vector<1x4096xf32>
    %cst_12 = arith.constant 0.000000e+00 : f32
    %33 = vector.broadcast %cst_12 : f32 to vector<1x4096xf32>
    %34 = arith.subf %33, %32 : vector<1x4096xf32>
    %cst_13 = arith.constant 6.31583834 : f32
    %35 = vector.broadcast %cst_13 : f32 to vector<1x4096xf32>
    %36 = arith.mulf %34, %35 : vector<1x4096xf32>
    %37 = math.exp %36 : vector<1x4096xf32>
    %cst_14 = arith.constant 9.99999996E-13 : f32
    %38 = vector.broadcast %cst_14 : f32 to vector<1x4096xf32>
    %39 = arith.cmpf ogt, %28, %38 : vector<1x4096xf32>
    %40 = arith.mulf %18, %37 : vector<1x4096xf32>
    %41 = arith.mulf %7, %7 : vector<1x4096xf32>
    %42 = arith.mulf %41, %7 : vector<1x4096xf32>
    %43 = arith.mulf %40, %42 : vector<1x4096xf32>
    %cst_15 = arith.constant 9.99999968E-21 : f32
    %44 = vector.broadcast %cst_15 : f32 to vector<1x4096xf32>
    %45 = arith.maximumf %28, %44 : vector<1x4096xf32>
    %cst_16 = arith.constant 1.36373455E-5 : f32
    %46 = vector.broadcast %cst_16 : f32 to vector<1x4096xf32>
    %47 = arith.divf %46, %45 : vector<1x4096xf32>
    %48 = arith.mulf %43, %47 : vector<1x4096xf32>
    %cst_17 = arith.constant 0.000000e+00 : f32
    %49 = vector.broadcast %cst_17 : f32 to vector<1x4096xf32>
    %50 = arith.select %39, %48, %49 : vector<1x4096xi1>, vector<1x4096xf32>
    %51 = vector.extract_strided_slice %11 {offsets = [0, 0], sizes = [1, 4096], strides = [1, 1]} : vector<3x4096xf32> to vector<1x4096xf32>
    %52 = arith.mulf %51, %51 : vector<1x4096xf32>
    %53 = vector.extract_strided_slice %11 {offsets = [1, 0], sizes = [1, 4096], strides = [1, 1]} : vector<3x4096xf32> to vector<1x4096xf32>
    %54 = arith.mulf %53, %53 : vector<1x4096xf32>
    %55 = arith.addf %52, %54 : vector<1x4096xf32>
    %56 = vector.extract_strided_slice %11 {offsets = [2, 0], sizes = [1, 4096], strides = [1, 1]} : vector<3x4096xf32> to vector<1x4096xf32>
    %57 = arith.mulf %56, %56 : vector<1x4096xf32>
    %58 = arith.addf %55, %57 : vector<1x4096xf32>
    %59 = math.sqrt %58 : vector<1x4096xf32>
    %60 = arith.addf %59, %29 : vector<1x4096xf32>
    %cst_18 = arith.constant 55.1470604 : f32
    %61 = vector.broadcast %cst_18 : f32 to vector<1x4096xf32>
    %62 = arith.mulf %60, %61 : vector<1x4096xf32>
    %63 = tpu.iota {dimensions = array<i32: 0>} : vector<65x1xi32>
    %64 = arith.sitofp %63 : vector<65x1xi32> to vector<65x1xf32>
    %cst_19 = arith.constant 1.500000e+00 : f32
    %65 = vector.broadcast %cst_19 : f32 to vector<65x1xf32>
    %66 = arith.mulf %64, %65 : vector<65x1xf32>
    %67 = vector.broadcast %62 : vector<1x4096xf32> to vector<65x4096xf32>
    %68 = vector.broadcast %66 : vector<65x1xf32> to vector<65x4096xf32>
    %69 = arith.subf %67, %68 : vector<65x4096xf32>
    %70 = math.tanh %69 : vector<65x4096xf32>
    %71 = vector.extract_strided_slice %70 {offsets = [0, 0], sizes = [64, 4096], strides = [1, 1]} : vector<65x4096xf32> to vector<64x4096xf32>
    %72 = vector.extract_strided_slice %70 {offsets = [1, 0], sizes = [64, 4096], strides = [1, 1]} : vector<65x4096xf32> to vector<64x4096xf32>
    %73 = arith.subf %71, %72 : vector<64x4096xf32>
    %c0_20 = arith.constant 0 : index
    %c0_21 = arith.constant 0 : index
    %74 = vector.load %arg10[%c0_20, %c0_21] : memref<64x1xf32, #tpu.memory_space<vmem>>, vector<64x1xf32>
    %75 = vector.broadcast %50 : vector<1x4096xf32> to vector<64x4096xf32>
    %76 = arith.mulf %73, %75 : vector<64x4096xf32>
    %cst_22 = arith.constant dense<0.000000e+00> : vector<64xf32>
    %77 = vector.multi_reduction <add>, %76, %cst_22 [1] : vector<64x4096xf32> to vector<64xf32>
    %78 = vector.shape_cast %77 : vector<64xf32> to vector<64x1xf32>
    %79 = arith.addf %74, %78 : vector<64x1xf32>
    %c0_23 = arith.constant 0 : index
    %c0_24 = arith.constant 0 : index
    %80 = vector.load %arg10[%c0_23, %c0_24] : memref<64x1xf32, #tpu.memory_space<vmem>>, vector<64x1xf32>
    tpu.vector_store %arg10[%c0_23, %c0_24], %79 {strides = array<i32>} : memref<64x1xf32, #tpu.memory_space<vmem>>, vector<64x1xf32>,
    %c0_i32_25 = arith.constant 0 : i32
    %81 = arith.cmpi eq, %arg1, %c0_i32_25 : i32
    %82 = arith.extui %81 : i1 to i32
    %c0_i32_26 = arith.constant 0 : i32
    %83 = arith.cmpi ne, %82, %c0_i32_26 : i32
    scf.if %83 {
      %c0_27 = arith.constant 0 : index
      %c0_28 = arith.constant 0 : index
      %84 = vector.load %arg10[%c0_27, %c0_28] : memref<64x1xf32, #tpu.memory_space<vmem>>, vector<64x1xf32>
      %85 = tpu.iota {dimensions = array<i32: 0>} : vector<64x128xi32>
      %86 = tpu.iota {dimensions = array<i32: 1>} : vector<64x128xi32>
      %87 = arith.cmpi eq, %85, %86 : vector<64x128xi32>
      %88 = arith.extui %87 : vector<64x128xi1> to vector<64x128xi32>
      %89 = arith.sitofp %88 : vector<64x128xi32> to vector<64x128xf32>
      %90 = arith.cmpi slt, %85, %86 : vector<64x128xi32>
      %91 = arith.extui %90 : vector<64x128xi1> to vector<64x128xi32>
      %92 = arith.sitofp %91 : vector<64x128xi32> to vector<64x128xf32>
      %93 = vector.broadcast %84 : vector<64x1xf32> to vector<64x128xf32>
      %94 = arith.mulf %93, %89 : vector<64x128xf32>
      %cst_29 = arith.constant dense<0.000000e+00> : vector<128xf32>
      %95 = vector.multi_reduction <add>, %94, %cst_29 [0] : vector<64x128xf32> to vector<128xf32>
      %96 = vector.shape_cast %95 : vector<128xf32> to vector<1x128xf32>
      %c0_30 = arith.constant 0 : index
      %c0_31 = arith.constant 0 : index
      %c0_32 = arith.constant 0 : index
      %97 = vector.load %arg8[%c0_30, %c0_31, %c0_32] : memref<1x1x128xf32, #tpu.memory_space<vmem>>, vector<1x1x128xf32>
      %98 = vector.shape_cast %97 : vector<1x1x128xf32> to vector<1x128xf32>
      %99 = vector.shape_cast %96 : vector<1x128xf32> to vector<1x1x128xf32>
      tpu.vector_store %arg8[%c0_30, %c0_31, %c0_32], %99 {strides = array<i32>} : memref<1x1x128xf32, #tpu.memory_space<vmem>>, vector<1x1x128xf32>,
      %c0_33 = arith.constant 0 : index
      %100 = memref.load %arg2[%c0_33] : memref<2xf32, #tpu.memory_space<smem>>
      %c1 = arith.constant 1 : index
      %101 = memref.load %arg2[%c1] : memref<2xf32, #tpu.memory_space<smem>>
      %102 = vector.broadcast %100 : f32 to vector<64x1xf32>
      %103 = arith.mulf %84, %102 : vector<64x1xf32>
      %104 = vector.broadcast %101 : f32 to vector<64x1xf32>
      %105 = arith.addf %103, %104 : vector<64x1xf32>
      %106 = vector.broadcast %105 : vector<64x1xf32> to vector<64x128xf32>
      %107 = arith.mulf %106, %89 : vector<64x128xf32>
      %cst_34 = arith.constant dense<0.000000e+00> : vector<128xf32>
      %108 = vector.multi_reduction <add>, %107, %cst_34 [0] : vector<64x128xf32> to vector<128xf32>
      %109 = vector.shape_cast %108 : vector<128xf32> to vector<1x128xf32>
      %110 = vector.broadcast %105 : vector<64x1xf32> to vector<64x128xf32>
      %111 = arith.mulf %110, %92 : vector<64x128xf32>
      %cst_35 = arith.constant dense<0.000000e+00> : vector<128xf32>
      %112 = vector.multi_reduction <add>, %111, %cst_35 [0] : vector<64x128xf32> to vector<128xf32>
      %113 = vector.shape_cast %112 : vector<128xf32> to vector<1x128xf32>
      %cst_36 = arith.constant 0.000000e+00 : f32
      %114 = vector.broadcast %cst_36 : f32 to vector<1x128xf32>
      %115 = arith.subf %114, %109 : vector<1x128xf32>
      %116 = math.exp %115 : vector<1x128xf32>
      %cst_37 = arith.constant 1.000000e+00 : f32
      %117 = vector.broadcast %cst_37 : f32 to vector<1x128xf32>
      %118 = arith.subf %117, %116 : vector<1x128xf32>
      %cst_38 = arith.constant 0.000000e+00 : f32
      %119 = vector.broadcast %cst_38 : f32 to vector<1x128xf32>
      %120 = arith.subf %119, %113 : vector<1x128xf32>
      %121 = math.exp %120 : vector<1x128xf32>
      %122 = arith.mulf %118, %121 : vector<1x128xf32>
      %c8_i32 = arith.constant 8 : i32
      %c0_i32_39 = arith.constant 0 : i32
      %123 = arith.cmpi eq, %c8_i32, %c0_i32_39 : i32
      %c1_i32 = arith.constant 1 : i32
      %124 = arith.select %123, %c1_i32, %c8_i32 : i32
      %125 = arith.remsi %arg0, %124 : i32
      %c0_i32_40 = arith.constant 0 : i32
      %126 = arith.cmpi ne, %125, %c0_i32_40 : i32
      %c0_i32_41 = arith.constant 0 : i32
      %127 = arith.cmpi slt, %125, %c0_i32_41 : i32
      %c0_i32_42 = arith.constant 0 : i32
      %128 = arith.cmpi slt, %124, %c0_i32_42 : i32
      %129 = arith.xori %127, %128 : i1
      %130 = arith.andi %129, %126 : i1
      %131 = arith.addi %125, %124 : i32
      %132 = arith.select %130, %131, %125 : i32
      %cst_43 = arith.constant 0.000000e+00 : f32
      %133 = vector.broadcast %cst_43 : f32 to vector<64x128xf32>
      %134 = arith.index_cast %132 : i32 to index
      %c0_44 = arith.constant 0 : index
      %135 = memref.load %arg3[%134, %c0_44] : memref<8x9xf32, #tpu.memory_space<smem>>
      %136 = arith.subi %86, %85 : vector<64x128xi32>
      %c-4_i32 = arith.constant -4 : i32
      %137 = vector.broadcast %c-4_i32 : i32 to vector<64x128xi32>
      %138 = arith.cmpi eq, %136, %137 : vector<64x128xi32>
      %cst_45 = arith.constant 0.000000e+00 : f32
      %139 = vector.broadcast %135 : f32 to vector<64x128xf32>
      %140 = vector.broadcast %cst_45 : f32 to vector<64x128xf32>
      %141 = arith.select %138, %139, %140 : vector<64x128xi1>, vector<64x128xf32>
      %142 = arith.addf %133, %141 : vector<64x128xf32>
      %143 = arith.index_cast %132 : i32 to index
      %c1_46 = arith.constant 1 : index
      %144 = memref.load %arg3[%143, %c1_46] : memref<8x9xf32, #tpu.memory_space<smem>>
      %145 = arith.subi %86, %85 : vector<64x128xi32>
      %c-3_i32 = arith.constant -3 : i32
      %146 = vector.broadcast %c-3_i32 : i32 to vector<64x128xi32>
      %147 = arith.cmpi eq, %145, %146 : vector<64x128xi32>
      %cst_47 = arith.constant 0.000000e+00 : f32
      %148 = vector.broadcast %144 : f32 to vector<64x128xf32>
      %149 = vector.broadcast %cst_47 : f32 to vector<64x128xf32>
      %150 = arith.select %147, %148, %149 : vector<64x128xi1>, vector<64x128xf32>
      %151 = arith.addf %142, %150 : vector<64x128xf32>
      %152 = arith.index_cast %132 : i32 to index
      %c2 = arith.constant 2 : index
      %153 = memref.load %arg3[%152, %c2] : memref<8x9xf32, #tpu.memory_space<smem>>
      %154 = arith.subi %86, %85 : vector<64x128xi32>
      %c-2_i32 = arith.constant -2 : i32
      %155 = vector.broadcast %c-2_i32 : i32 to vector<64x128xi32>
      %156 = arith.cmpi eq, %154, %155 : vector<64x128xi32>
      %cst_48 = arith.constant 0.000000e+00 : f32
      %157 = vector.broadcast %153 : f32 to vector<64x128xf32>
      %158 = vector.broadcast %cst_48 : f32 to vector<64x128xf32>
      %159 = arith.select %156, %157, %158 : vector<64x128xi1>, vector<64x128xf32>
      %160 = arith.addf %151, %159 : vector<64x128xf32>
      %161 = arith.index_cast %132 : i32 to index
      %c3 = arith.constant 3 : index
      %162 = memref.load %arg3[%161, %c3] : memref<8x9xf32, #tpu.memory_space<smem>>
      %163 = arith.subi %86, %85 : vector<64x128xi32>
      %c-1_i32 = arith.constant -1 : i32
      %164 = vector.broadcast %c-1_i32 : i32 to vector<64x128xi32>
      %165 = arith.cmpi eq, %163, %164 : vector<64x128xi32>
      %cst_49 = arith.constant 0.000000e+00 : f32
      %166 = vector.broadcast %162 : f32 to vector<64x128xf32>
      %167 = vector.broadcast %cst_49 : f32 to vector<64x128xf32>
      %168 = arith.select %165, %166, %167 : vector<64x128xi1>, vector<64x128xf32>
      %169 = arith.addf %160, %168 : vector<64x128xf32>
      %170 = arith.index_cast %132 : i32 to index
      %c4 = arith.constant 4 : index
      %171 = memref.load %arg3[%170, %c4] : memref<8x9xf32, #tpu.memory_space<smem>>
      %172 = arith.subi %86, %85 : vector<64x128xi32>
      %c0_i32_50 = arith.constant 0 : i32
      %173 = vector.broadcast %c0_i32_50 : i32 to vector<64x128xi32>
      %174 = arith.cmpi eq, %172, %173 : vector<64x128xi32>
      %cst_51 = arith.constant 0.000000e+00 : f32
      %175 = vector.broadcast %171 : f32 to vector<64x128xf32>
      %176 = vector.broadcast %cst_51 : f32 to vector<64x128xf32>
      %177 = arith.select %174, %175, %176 : vector<64x128xi1>, vector<64x128xf32>
      %178 = arith.addf %169, %177 : vector<64x128xf32>
      %179 = arith.index_cast %132 : i32 to index
      %c5 = arith.constant 5 : index
      %180 = memref.load %arg3[%179, %c5] : memref<8x9xf32, #tpu.memory_space<smem>>
      %181 = arith.subi %86, %85 : vector<64x128xi32>
      %c1_i32_52 = arith.constant 1 : i32
      %182 = vector.broadcast %c1_i32_52 : i32 to vector<64x128xi32>
      %183 = arith.cmpi eq, %181, %182 : vector<64x128xi32>
      %cst_53 = arith.constant 0.000000e+00 : f32
      %184 = vector.broadcast %180 : f32 to vector<64x128xf32>
      %185 = vector.broadcast %cst_53 : f32 to vector<64x128xf32>
      %186 = arith.select %183, %184, %185 : vector<64x128xi1>, vector<64x128xf32>
      %187 = arith.addf %178, %186 : vector<64x128xf32>
      %188 = arith.index_cast %132 : i32 to index
      %c6 = arith.constant 6 : index
      %189 = memref.load %arg3[%188, %c6] : memref<8x9xf32, #tpu.memory_space<smem>>
      %190 = arith.subi %86, %85 : vector<64x128xi32>
      %c2_i32 = arith.constant 2 : i32
      %191 = vector.broadcast %c2_i32 : i32 to vector<64x128xi32>
      %192 = arith.cmpi eq, %190, %191 : vector<64x128xi32>
      %cst_54 = arith.constant 0.000000e+00 : f32
      %193 = vector.broadcast %189 : f32 to vector<64x128xf32>
      %194 = vector.broadcast %cst_54 : f32 to vector<64x128xf32>
      %195 = arith.select %192, %193, %194 : vector<64x128xi1>, vector<64x128xf32>
      %196 = arith.addf %187, %195 : vector<64x128xf32>
      %197 = arith.index_cast %132 : i32 to index
      %c7 = arith.constant 7 : index
      %198 = memref.load %arg3[%197, %c7] : memref<8x9xf32, #tpu.memory_space<smem>>
      %199 = arith.subi %86, %85 : vector<64x128xi32>
      %c3_i32 = arith.constant 3 : i32
      %200 = vector.broadcast %c3_i32 : i32 to vector<64x128xi32>
      %201 = arith.cmpi eq, %199, %200 : vector<64x128xi32>
      %cst_55 = arith.constant 0.000000e+00 : f32
      %202 = vector.broadcast %198 : f32 to vector<64x128xf32>
      %203 = vector.broadcast %cst_55 : f32 to vector<64x128xf32>
      %204 = arith.select %201, %202, %203 : vector<64x128xi1>, vector<64x128xf32>
      %205 = arith.addf %196, %204 : vector<64x128xf32>
      %206 = arith.index_cast %132 : i32 to index
      %c8 = arith.constant 8 : index
      %207 = memref.load %arg3[%206, %c8] : memref<8x9xf32, #tpu.memory_space<smem>>
      %208 = arith.subi %86, %85 : vector<64x128xi32>
      %c4_i32 = arith.constant 4 : i32
      %209 = vector.broadcast %c4_i32 : i32 to vector<64x128xi32>
      %210 = arith.cmpi eq, %208, %209 : vector<64x128xi32>
      %cst_56 = arith.constant 0.000000e+00 : f32
      %211 = vector.broadcast %207 : f32 to vector<64x128xf32>
      %212 = vector.broadcast %cst_56 : f32 to vector<64x128xf32>
      %213 = arith.select %210, %211, %212 : vector<64x128xi1>, vector<64x128xf32>
      %214 = arith.addf %205, %213 : vector<64x128xf32>
      %215 = vector.broadcast %122 : vector<1x128xf32> to vector<64x128xf32>
      %216 = arith.mulf %215, %214 : vector<64x128xf32>
      %cst_57 = arith.constant dense<0.000000e+00> : vector<64xf32>
      %217 = vector.multi_reduction <add>, %216, %cst_57 [1] : vector<64x128xf32> to vector<64xf32>
      %218 = vector.shape_cast %217 : vector<64xf32> to vector<64x1xf32>
      %219 = vector.broadcast %218 : vector<64x1xf32> to vector<64x128xf32>
      %220 = arith.mulf %219, %89 : vector<64x128xf32>
      %cst_58 = arith.constant dense<0.000000e+00> : vector<128xf32>
      %221 = vector.multi_reduction <add>, %220, %cst_58 [0] : vector<64x128xf32> to vector<128xf32>
      %222 = vector.shape_cast %221 : vector<128xf32> to vector<1x128xf32>
      %c0_59 = arith.constant 0 : index
      %c0_60 = arith.constant 0 : index
      %c0_61 = arith.constant 0 : index
      %223 = vector.load %arg9[%c0_59, %c0_60, %c0_61] : memref<1x1x128xf32, #tpu.memory_space<vmem>>, vector<1x1x128xf32>
      %224 = vector.shape_cast %223 : vector<1x1x128xf32> to vector<1x128xf32>
      %225 = vector.shape_cast %222 : vector<1x128xf32> to vector<1x1x128xf32>
      tpu.vector_store %arg9[%c0_59, %c0_60, %c0_61], %225 {strides = array<i32>} : memref<1x1x128xf32, #tpu.memory_space<vmem>>, vector<1x1x128xf32>,
    } else {
    }
    return
  }
  func.func @transform_0(%arg0: i32, %arg1: i32) -> i32 {
    %c0_i32 = arith.constant 0 : i32
    %c0_i32_0 = arith.constant 0 : i32
    return %c0_i32 : i32
  }
  func.func @transform_1(%arg0: i32, %arg1: i32) -> (i32, i32) {
    %c0_i32 = arith.constant 0 : i32
    %c0_i32_0 = arith.constant 0 : i32
    %c0_i32_1 = arith.constant 0 : i32
    return %c0_i32, %c0_i32_0 : i32, i32
  }
  func.func @transform_2(%arg0: i32, %arg1: i32) -> (i32, i32) {
    %c0_i32 = arith.constant 0 : i32
    %c0_i32_0 = arith.constant 0 : i32
    %c0_i32_1 = arith.constant 0 : i32
    return %c0_i32, %c0_i32_0 : i32, i32
  }
  func.func @transform_3(%arg0: i32, %arg1: i32) -> (i32, i32) {
    %c0_i32 = arith.constant 0 : i32
    %c0_i32_0 = arith.constant 0 : i32
    %c0_i32_1 = arith.constant 0 : i32
    return %c0_i32, %c0_i32_0 : i32, i32
  }
  func.func @transform_4(%arg0: i32, %arg1: i32) -> (i32, i32, i32) {
    %c0_i32 = arith.constant 0 : i32
    %c0_i32_0 = arith.constant 0 : i32
    return %arg0, %c0_i32, %arg1 : i32, i32, i32
  }
  func.func @transform_5(%arg0: i32, %arg1: i32) -> (i32, i32, i32) {
    %c0_i32 = arith.constant 0 : i32
    %c0_i32_0 = arith.constant 0 : i32
    return %arg0, %c0_i32, %arg1 : i32, i32, i32
  }
  func.func @transform_6(%arg0: i32, %arg1: i32) -> (i32, i32, i32) {
    %c0_i32 = arith.constant 0 : i32
    %c0_i32_0 = arith.constant 0 : i32
    %c0_i32_1 = arith.constant 0 : i32
    return %arg0, %c0_i32, %c0_i32_0 : i32, i32, i32
  }
  func.func @transform_7(%arg0: i32, %arg1: i32) -> (i32, i32, i32) {
    %c0_i32 = arith.constant 0 : i32
    %c0_i32_0 = arith.constant 0 : i32
    %c0_i32_1 = arith.constant 0 : i32
    return %arg0, %c0_i32, %c0_i32_0 : i32, i32, i32
  }
}

</mosaic_0001>

<llo_original>
// kernel: tpu_custom_call.1
$region0: #{tpu_custom_call.1}
  #allocation0 [shape = 'u32[]', space=smem, size = 0x4, offset = 0x4, fixed_abs, tag = 'smem constant byte address 0x4 - core index']
  #allocation1 [shape = 'u32[144,128]{1,0:T(1,128)}', space=vmem, size = 0x12000, scoped, tag = 'internal scratch']
  #allocation2 [shape = 'f32[64,1]{1,0:T(8,128)}', space=vmem, size = 0x8000, scoped, tag = 'scratch operand']
  %s0 = inlined_call_operand.vmem [shape: f32[2], index: 0, kind: input, shape index: {}]
  %s1 = inlined_call_operand.vmem [shape: f32[8,9], index: 1, kind: input, shape index: {}]
  %s2 = inlined_call_operand.vmem [shape: f32[3,4096], index: 2, kind: input, shape index: {}]
  %s3 = inlined_call_operand.vmem [shape: f32[1,4096], index: 3, kind: input, shape index: {}]
  %s4 = inlined_call_operand.vmem [shape: f32[8,3,4096], index: 4, kind: input, shape index: {}]
  %s5 = inlined_call_operand.vmem [shape: f32[8,3,4096], index: 5, kind: input, shape index: {}]
  %s6 = inlined_call_operand.hbm [shape: f32[8,1,128], index: 6, kind: output, shape index: {0}]
  %s7 = inlined_call_operand.hbm [shape: f32[8,1,128], index: 7, kind: output, shape index: {1}]
  %8 = xla_tuple %s6, %s7
  %s9 = sld [smem:[#allocation0]]
  $region81: #{tpu_custom_call.1} parent=0
    _
  %s11 = ssub.s32 1, %s9
  %s12 = scalar_select 0, %s11, %s9
  $region1: #{tpu_custom_call.1} parent=0
    #allocation3 [shape = 'u8[512]{0}', space=smem, size = 0x200, scoped, tag = 'input window, operand 0, single buffered']
    #allocation4 [shape = 's32[2]{0}', space=sflag, size = 0x8, scoped, tag = 'scoped memory for tpu_custom_call.1']
    #allocation5 [shape = 's32[2]{0}', space=sflag, size = 0x8, scoped, tag = 'scoped memory for tpu_custom_call.1']
    #allocation6 [shape = 'u8[4096]{0}', space=smem, size = 0x1000, scoped, tag = 'input window, operand 1, single buffered']
    #allocation7 [shape = 's32[1]{0}', space=sflag, size = 0x4, scoped, tag = 'scoped memory for tpu_custom_call.1']
    #allocation8 [shape = 'u8[1024]{0}', space=vmem, size = 0x400, scoped, tag = 'output window, operand 0']
    #allocation9 [shape = 'u8[1024]{0}', space=vmem, size = 0x400, scoped, tag = 'output window, operand 1']
    #allocation10 [shape = 's32[2]{0}', space=sflag, size = 0x8, scoped, tag = 'scoped memory for tpu_custom_call.1']
    %13 = vsyncpa [#allocation5], 0
    %14 = vsyncpa [#allocation7], 0
    %15 = vsyncpa [#allocation4], 0
    %s16 = scalar_lea.sflag [#allocation4], 1
    %17 = vsyncpa %s16, 0
    %18 = vsyncpa [#allocation10], 0
    %s19 = scalar_lea.sflag [#allocation10], 1
    %20 = vsyncpa %s19, 0
    loop: start=0, step=1, limit=10
    $region2: #{tpu_custom_call.1} parent=1 // loop_pre_header
      _
    $region3: #{tpu_custom_call.1} parent=1 // loop_header
      %s22 = sphi 0, %s26
      %p23 = scmp.ge.s32.totalorder %s22, 10
      %s29 = sphi 0, %s41
      %s30 = sphi 0, %s37
      %s31 = sphi 0, %s29
      %s32 = sphi 0, %s30
      %s33 = sphi 0, %s31
      %s34 = sphi 0, %s32
      %s42 = sphi 0, %s42
      %s44 = sphi 0, %s42
      %s45 = sphi 0, %s44
      %s59 = sphi 0, %s45
      %s63 = sphi 0, %s63
      %s65 = sphi 0, %s63
      %s66 = sphi 0, %s65
      %s80 = sphi 0, %s66
      %s84 = sphi 0, %s84
      %s86 = sphi 0, %s84
      %s87 = sphi 0, %s86
      %s101 = sphi 0, %s87
      %s105 = sphi 0, %s105
      %s107 = sphi 0, %s105
      %s108 = sphi 0, %s107
      %s122 = sphi 0, %s108
      %s130 = sphi 0, %s132
      %s133 = sphi 0, %s130
      %s134 = sphi 0, %s133
      %s150 = sphi 0, %s134
      %s158 = sphi 0, %s160
      %s161 = sphi 0, %s158
      %s162 = sphi 0, %s161
      %s178 = sphi 0, %s162
      %s184 = sphi 0, %s186
      %s187 = sphi 0, %s184
      %s188 = sphi 0, %s187
      %s204 = sphi 0, %s188
      %s210 = sphi 0, %s212
      %s213 = sphi 0, %s210
      %s214 = sphi 0, %s213
      %s230 = sphi 0, %s214
    $region4: #{tpu_custom_call.1} parent=1 // loop_header_branch
      %25 = sbr.rel (%p23) target = $region8
    $region5: #{tpu_custom_call.1} parent=1 // loop_body
      %s27 = ssub.s32 %s22, 1
      %s28 = ssub.s32 %s22, 2
      %s35 = sadd.s32 1, %s30
      %p36 = scmp.ge.s32.totalorder %s35, 1
      %s37 = scalar_select %p36, 0, %s35
      %s38 = sadd.s32 1, %s29
      %s39 = scalar_select %p36, %s38, %s29
      %p40 = scmp.ge.s32.totalorder %s39, 8
      %s41 = scalar_select %p40, 0, %s39
      %s43 = sadd.s32 %s42, 1
      %p46 = scmp.eq.s32.totalorder %s22, 7
      %p47 = scmp.ne.s32.totalorder %s42, %s44
      %p48 = scmp.eq.s32.totalorder %s22, 0
      %p49 = por %p47, %p48
      %p50 = scmp.ne.s32.totalorder %s42, %s44
      %p51 = scmp.eq.s32.totalorder %s27, 7
      %p52 = por %p50, %p51
      %p53 = scmp.ne.s32.totalorder %s44, %s45
      %p54 = scmp.eq.s32.totalorder %s27, 0
      %p55 = por %p53, %p54
      %p56 = scmp.ne.s32.totalorder %s44, %s45
      %p57 = scmp.eq.s32.totalorder %s28, 7
      %p58 = por %p56, %p57
      %p60 = scmp.ne.s32.totalorder %s45, %s59
      %p61 = scmp.eq.s32.totalorder %s28, 0
      %p62 = por %p60, %p61
      %s64 = sadd.s32 %s63, 1
      %p67 = scmp.eq.s32.totalorder %s22, 7
      %p68 = scmp.ne.s32.totalorder %s63, %s65
      %p69 = scmp.eq.s32.totalorder %s22, 0
      %p70 = por %p68, %p69
      %p71 = scmp.ne.s32.totalorder %s63, %s65
      %p72 = scmp.eq.s32.totalorder %s27, 7
      %p73 = por %p71, %p72
      %p74 = scmp.ne.s32.totalorder %s65, %s66
      %p75 = scmp.eq.s32.totalorder %s27, 0
      %p76 = por %p74, %p75
      %p77 = scmp.ne.s32.totalorder %s65, %s66
      %p78 = scmp.eq.s32.totalorder %s28, 7
      %p79 = por %p77, %p78
      %p81 = scmp.ne.s32.totalorder %s66, %s80
      %p82 = scmp.eq.s32.totalorder %s28, 0
      %p83 = por %p81, %p82
      %s85 = sadd.s32 %s84, 1
      %p88 = scmp.eq.s32.totalorder %s22, 7
      %p89 = scmp.ne.s32.totalorder %s84, %s86
      %p90 = scmp.eq.s32.totalorder %s22, 0
      %p91 = por %p89, %p90
      %p92 = scmp.ne.s32.totalorder %s84, %s86
      %p93 = scmp.eq.s32.totalorder %s27, 7
      %p94 = por %p92, %p93
      %p95 = scmp.ne.s32.totalorder %s86, %s87
      %p96 = scmp.eq.s32.totalorder %s27, 0
      %p97 = por %p95, %p96
      %p98 = scmp.ne.s32.totalorder %s86, %s87
      %p99 = scmp.eq.s32.totalorder %s28, 7
      %p100 = por %p98, %p99
      %p102 = scmp.ne.s32.totalorder %s87, %s101
      %p103 = scmp.eq.s32.totalorder %s28, 0
      %p104 = por %p102, %p103
      %s106 = sadd.s32 %s105, 1
      %p109 = scmp.eq.s32.totalorder %s22, 7
      %p110 = scmp.ne.s32.totalorder %s105, %s107
      %p111 = scmp.eq.s32.totalorder %s22, 0
      %p112 = por %p110, %p111
      %p113 = scmp.ne.s32.totalorder %s105, %s107
      %p114 = scmp.eq.s32.totalorder %s27, 7
      %p115 = por %p113, %p114
      %p116 = scmp.ne.s32.totalorder %s107, %s108
      %p117 = scmp.eq.s32.totalorder %s27, 0
      %p118 = por %p116, %p117
      %p119 = scmp.ne.s32.totalorder %s107, %s108
      %p120 = scmp.eq.s32.totalorder %s28, 7
      %p121 = por %p119, %p120
      %p123 = scmp.ne.s32.totalorder %s108, %s122
      %p124 = scmp.eq.s32.totalorder %s28, 0
      %p125 = por %p123, %p124
      %s126 = ssub.s32 %s29, %s41
      %s127 = ssub.s32 %s30, %s37
      %s128 = sor.u32 %s126, %s127
      %p129 = scmp.eq.s32.totalorder %s128, 0
      %s131 = sadd.s32 %s130, 1
      %s132 = scalar_select %p129, %s130, %s131
      %p135 = pneg %p129
      %p136 = scmp.eq.s32.totalorder %s22, 7
      %p137 = por %p135, %p136
      %p138 = scmp.ne.s32.totalorder %s130, %s133
      %p139 = scmp.eq.s32.totalorder %s22, 0
      %p140 = por %p138, %p139
      %p141 = scmp.ne.s32.totalorder %s130, %s133
      %p142 = scmp.eq.s32.totalorder %s27, 7
      %p143 = por %p141, %p142
      %p144 = scmp.ne.s32.totalorder %s133, %s134
      %p145 = scmp.eq.s32.totalorder %s27, 0
      %p146 = por %p144, %p145
      %p147 = scmp.ne.s32.totalorder %s133, %s134
      %p148 = scmp.eq.s32.totalorder %s28, 7
      %p149 = por %p147, %p148
      %p151 = scmp.ne.s32.totalorder %s134, %s150
      %p152 = scmp.eq.s32.totalorder %s28, 0
      %p153 = por %p151, %p152
      %s154 = ssub.s32 %s29, %s41
      %s155 = ssub.s32 %s30, %s37
      %s156 = sor.u32 %s154, %s155
      %p157 = scmp.eq.s32.totalorder %s156, 0
      %s159 = sadd.s32 %s158, 1
      %s160 = scalar_select %p157, %s158, %s159
      %p163 = pneg %p157
      %p164 = scmp.eq.s32.totalorder %s22, 7
      %p165 = por %p163, %p164
      %p166 = scmp.ne.s32.totalorder %s158, %s161
      %p167 = scmp.eq.s32.totalorder %s22, 0
      %p168 = por %p166, %p167
      %p169 = scmp.ne.s32.totalorder %s158, %s161
      %p170 = scmp.eq.s32.totalorder %s27, 7
      %p171 = por %p169, %p170
      %p172 = scmp.ne.s32.totalorder %s161, %s162
      %p173 = scmp.eq.s32.totalorder %s27, 0
      %p174 = por %p172, %p173
      %p175 = scmp.ne.s32.totalorder %s161, %s162
      %p176 = scmp.eq.s32.totalorder %s28, 7
      %p177 = por %p175, %p176
      %p179 = scmp.ne.s32.totalorder %s162, %s178
      %p180 = scmp.eq.s32.totalorder %s28, 0
      %p181 = por %p179, %p180
      %s182 = ssub.s32 %s29, %s41
      %p183 = scmp.eq.s32.totalorder %s182, 0
      %s185 = sadd.s32 %s184, 1
      %s186 = scalar_select %p183, %s184, %s185
      %p189 = pneg %p183
      %p190 = scmp.eq.s32.totalorder %s22, 7
      %p191 = por %p189, %p190
      %p192 = scmp.ne.s32.totalorder %s184, %s187
      %p193 = scmp.eq.s32.totalorder %s22, 0
      %p194 = por %p192, %p193
      %p195 = scmp.ne.s32.totalorder %s184, %s187
      %p196 = scmp.eq.s32.totalorder %s27, 7
      %p197 = por %p195, %p196
      %p198 = scmp.ne.s32.totalorder %s187, %s188
      %p199 = scmp.eq.s32.totalorder %s27, 0
      %p200 = por %p198, %p199
      %p201 = scmp.ne.s32.totalorder %s187, %s188
      %p202 = scmp.eq.s32.totalorder %s28, 7
      %p203 = por %p201, %p202
      %p205 = scmp.ne.s32.totalorder %s188, %s204
      %p206 = scmp.eq.s32.totalorder %s28, 0
      %p207 = por %p205, %p206
      %s208 = ssub.s32 %s29, %s41
      %p209 = scmp.eq.s32.totalorder %s208, 0
      %s211 = sadd.s32 %s210, 1
      %s212 = scalar_select %p209, %s210, %s211
      %p215 = pneg %p209
      %p216 = scmp.eq.s32.totalorder %s22, 7
      %p217 = por %p215, %p216
      %p218 = scmp.ne.s32.totalorder %s210, %s213
      %p219 = scmp.eq.s32.totalorder %s22, 0
      %p220 = por %p218, %p219
      %p221 = scmp.ne.s32.totalorder %s210, %s213
      %p222 = scmp.eq.s32.totalorder %s27, 7
      %p223 = por %p221, %p222
      %p224 = scmp.ne.s32.totalorder %s213, %s214
      %p225 = scmp.eq.s32.totalorder %s27, 0
      %p226 = por %p224, %p225
      %p227 = scmp.ne.s32.totalorder %s213, %s214
      %p228 = scmp.eq.s32.totalorder %s28, 7
      %p229 = por %p227, %p228
      %p231 = scmp.ne.s32.totalorder %s214, %s230
      %p232 = scmp.eq.s32.totalorder %s28, 0
      %p233 = por %p231, %p232
      %p234 = scmp.le.s32.totalorder 1, %s22
      %p235 = scmp.lt.s32.totalorder %s22, 9
      %p236 = pnand %p234, %p235
      %p237 = pneg %p236
      // Predicated region
      $region9: #{tpu_custom_call.1} parent=5 // pred_check
        _
      $region10: #{tpu_custom_call.1} parent=5 // pred_check_branch
        %239 = sbr.rel (%p236) target = $region12
      $region11: #{tpu_custom_call.1} parent=5 // pred_region
        %s240 = ssub.s32 %s22, 1
        // Predicated region
        $region13: #{tpu_custom_call.1} parent=11 // pred_check
          %p241 = pneg %p55
        $region14: #{tpu_custom_call.1} parent=11 // pred_check_branch
          %243 = sbr.rel (%p241) target = $region16
        $region15: #{tpu_custom_call.1} parent=11 // pred_region
          %s245 = ssub.s32 16, 16
          %246 = vsyncadd [#allocation5], %s245
          %s248 = sshll.u32 %s0, 4
          %s249 = int_to_ptr.vmem [resolvable:$true] %s248
          %251 = dma.vmem_to_smem %s249, 16, [#allocation3], [#allocation5]
        $region16: #{tpu_custom_call.1} parent=11 // pred_fallthru
          _
        // Predicated region
        $region17: #{tpu_custom_call.1} parent=11 // pred_check
          %p252 = pneg %p76
        $region18: #{tpu_custom_call.1} parent=11 // pred_check_branch
          %254 = sbr.rel (%p252) target = $region20
        $region19: #{tpu_custom_call.1} parent=11 // pred_region
          %s256 = ssub.s32 128, 128
          %257 = vsyncadd [#allocation7], %s256
          %s259 = sshll.u32 %s1, 4
          %s260 = int_to_ptr.vmem [resolvable:$true] %s259
          %262 = dma.vmem_to_smem %s260, 128, [#allocation6], [#allocation7]
        $region20: #{tpu_custom_call.1} parent=11 // pred_fallthru
          _
        // Predicated region
        $region21: #{tpu_custom_call.1} parent=11 // pred_check
          %p263 = pneg %p97
        $region22: #{tpu_custom_call.1} parent=11 // pred_check_branch
          %265 = sbr.rel (%p263) target = $region24
        $region23: #{tpu_custom_call.1} parent=11 // pred_region
          _
        $region24: #{tpu_custom_call.1} parent=11 // pred_fallthru
          _
        // Predicated region
        $region25: #{tpu_custom_call.1} parent=11 // pred_check
          %p266 = pneg %p118
        $region26: #{tpu_custom_call.1} parent=11 // pred_check_branch
          %268 = sbr.rel (%p266) target = $region28
        $region27: #{tpu_custom_call.1} parent=11 // pred_region
          _
        $region28: #{tpu_custom_call.1} parent=11 // pred_fallthru
          _
      $region12: #{tpu_custom_call.1} parent=5 // pred_fallthru
        _
      %p269 = scmp.lt.s32.totalorder %s22, 8
      // Predicated region
      $region29: #{tpu_custom_call.1} parent=5 // pred_check
        %p270 = pneg %p269
      $region30: #{tpu_custom_call.1} parent=5 // pred_check_branch
        %272 = sbr.rel (%p270) target = $region32
      $region31: #{tpu_custom_call.1} parent=5 // pred_region
        // Predicated region
        $region33: #{tpu_custom_call.1} parent=31 // pred_check
          %p273 = pneg %p140
        $region34: #{tpu_custom_call.1} parent=31 // pred_check_branch
          %275 = sbr.rel (%p273) target = $region36
        $region35: #{tpu_custom_call.1} parent=31 // pred_region
          %s276 = smul.u32 32, %s30
          %p277 = scmp.lt.s32.totalorder %s29, 7
          %s278 = scalar_select %p277, %s29, 7
          %p279 = scmp.lt.s32.totalorder %s276, 31
          %s280 = scalar_select %p279, %s276, 31
          %s281 = smul.addr %s278, 32
          %s282 = sadd.s32 %s280, %s281
          %s283 = smul.addr %s282, 4
          %s284 = scalar_lea.vmem %s4, %s283
          %s285 = smul.u32 32, %s30
        $region36: #{tpu_custom_call.1} parent=31 // pred_fallthru
          _
        // Predicated region
        $region37: #{tpu_custom_call.1} parent=31 // pred_check
          %p286 = pneg %p168
        $region38: #{tpu_custom_call.1} parent=31 // pred_check_branch
          %288 = sbr.rel (%p286) target = $region40
        $region39: #{tpu_custom_call.1} parent=31 // pred_region
          %s289 = smul.u32 32, %s30
          %p290 = scmp.lt.s32.totalorder %s29, 7
          %s291 = scalar_select %p290, %s29, 7
          %p292 = scmp.lt.s32.totalorder %s289, 31
          %s293 = scalar_select %p292, %s289, 31
          %s294 = smul.addr %s291, 32
          %s295 = sadd.s32 %s293, %s294
          %s296 = smul.addr %s295, 4
          %s297 = scalar_lea.vmem %s5, %s296
          %s298 = smul.u32 32, %s30
        $region40: #{tpu_custom_call.1} parent=31 // pred_fallthru
          _
      $region32: #{tpu_custom_call.1} parent=5 // pred_fallthru
        _
      %p299 = scmp.le.s32.totalorder 1, %s22
      %p300 = scmp.lt.s32.totalorder %s22, 9
      %p301 = pnand %p299, %p300
      %p302 = pneg %p301
      // Predicated region
      $region41: #{tpu_custom_call.1} parent=5 // pred_check
        _
      $region42: #{tpu_custom_call.1} parent=5 // pred_check_branch
        %304 = sbr.rel (%p301) target = $region44
      $region43: #{tpu_custom_call.1} parent=5 // pred_region
        %s305 = ssub.s32 %s22, 1
        // Predicated region
        $region45: #{tpu_custom_call.1} parent=43 // pred_check
          %p306 = pneg %p55
        $region46: #{tpu_custom_call.1} parent=43 // pred_check_branch
          %308 = sbr.rel (%p306) target = $region48
        $region47: #{tpu_custom_call.1} parent=43 // pred_region
          %309 = dma.done [#allocation5], 16
        $region48: #{tpu_custom_call.1} parent=43 // pred_fallthru
          _
        // Predicated region
        $region49: #{tpu_custom_call.1} parent=43 // pred_check
          %p310 = pneg %p76
        $region50: #{tpu_custom_call.1} parent=43 // pred_check_branch
          %312 = sbr.rel (%p310) target = $region52
        $region51: #{tpu_custom_call.1} parent=43 // pred_region
          %313 = dma.done [#allocation7], 128
        $region52: #{tpu_custom_call.1} parent=43 // pred_fallthru
          _
        %314 = sfence
        %p315 = pneg %p55
        %p316 = pneg %p52
        %p317 = pneg %p76
        %p318 = pneg %p73
        %p319 = pneg %p97
        %p320 = pneg %p94
        %p321 = pneg %p118
        %p322 = pneg %p115
        %s323 = smul.u32 32, %s32
        %p324 = scmp.lt.s32.totalorder %s31, 7
        %s325 = scalar_select %p324, %s31, 7
        %p326 = scmp.lt.s32.totalorder %s323, 31
        %s327 = scalar_select %p326, %s323, 31
        %s328 = smul.addr %s325, 32
        %s329 = sadd.s32 %s327, %s328
        %s330 = smul.addr %s329, 4
        %s331 = scalar_lea.vmem %s4, %s330
        %p332 = pneg %p146
        %p333 = pneg %p143
        %s334 = smul.u32 32, %s32
        %p335 = scmp.lt.s32.totalorder %s31, 7
        %s336 = scalar_select %p335, %s31, 7
        %p337 = scmp.lt.s32.totalorder %s334, 31
        %s338 = scalar_select %p337, %s334, 31
        %s339 = smul.addr %s336, 32
        %s340 = sadd.s32 %s338, %s339
        %s341 = smul.addr %s340, 4
        %s342 = scalar_lea.vmem %s5, %s341
        %p343 = pneg %p174
        %p344 = pneg %p171
        %p345 = pneg %p200
        %p346 = pneg %p197
        %s347 = sand.u32 %s187, 1
        %s348 = scalar_lea.sflag [#allocation4], %s347
        %s349 = sand.u32 %s187, 1
        %s350 = scalar_lea.vmem [#allocation8], %s349
        %p351 = pneg %p226
        %p352 = pneg %p223
        %s353 = sand.u32 %s213, 1
        %s354 = scalar_lea.sflag [#allocation10], %s353
        %s355 = sand.u32 %s213, 1
        %s356 = scalar_lea.vmem [#allocation9], %s355
        %s357 = smul.u32 32, %s32
        %p358 = scmp.lt.s32.totalorder %s31, 7
        %s359 = scalar_select %p358, %s31, 7
        %p360 = scmp.lt.s32.totalorder %s357, 31
        %s361 = scalar_select %p360, %s357, 31
        %s362 = smul.addr %s359, 32
        %s363 = sadd.s32 %s361, %s362
        %s364 = smul.addr %s363, 4
        %s365 = scalar_lea.vmem %s4, %s364
        %s366 = smul.u32 32, %s32
        %s367 = smul.u32 32, %s32
        %p368 = scmp.lt.s32.totalorder %s31, 7
        %s369 = scalar_select %p368, %s31, 7
        %p370 = scmp.lt.s32.totalorder %s367, 31
        %s371 = scalar_select %p370, %s367, 31
        %s372 = smul.addr %s369, 32
        %s373 = sadd.s32 %s371, %s372
        %s374 = smul.addr %s373, 4
        %s375 = scalar_lea.vmem %s5, %s374
        %s376 = smul.u32 32, %s32
        %p377 = scmp.eq.s32.totalorder %s32, 0
        // Predicated region
        $region53: #{tpu_custom_call.1} parent=43 // pred_check
          %p378 = pneg %p377
        $region54: #{tpu_custom_call.1} parent=43 // pred_check_branch
          %380 = sbr.rel (%p378) target = $region56
        $region55: #{tpu_custom_call.1} parent=43 // pred_region
          %vm381 = vcmask 7168
          %382 = vst.msk [vmem:[#allocation2] sm:$0xff] %vm381, 0.0
          %383 = vst.msk [vmem:[#allocation2 + $0x8] sm:$0xff] %vm381, 0.0
          %384 = vst.msk [vmem:[#allocation2 + $0x10] sm:$0xff] %vm381, 0.0
          %385 = vst.msk [vmem:[#allocation2 + $0x18] sm:$0xff] %vm381, 0.0
          %386 = vst.msk [vmem:[#allocation2 + $0x20] sm:$0xff] %vm381, 0.0
          %387 = vst.msk [vmem:[#allocation2 + $0x28] sm:$0xff] %vm381, 0.0
          %388 = vst.msk [vmem:[#allocation2 + $0x30] sm:$0xff] %vm381, 0.0
          %389 = vst.msk [vmem:[#allocation2 + $0x38] sm:$0xff] %vm381, 0.0
        $region56: #{tpu_custom_call.1} parent=43 // pred_fallthru
          _
        %s390 = smul.u32 %s32, 4096
        %s391 = sshra.s32 %s390, 7
        %s392 = sand.u32 %s390, 127
        %s393 = smul.addr %s391, 4
        %s394 = scalar_lea.vmem %s2, %s393
        %v395 = vld [vmem:[%s394] sm:$0x77]
        %v396 = vld [vmem:[%s394 + $0x8] sm:$0x77]
        %v397 = vld [vmem:[%s394 + $0x10] sm:$0x77]
        %v398 = vld [vmem:[%s394 + $0x18] sm:$0x77]
        %v399 = vld [vmem:[%s394 + $0x20] sm:$0x77]
        %v400 = vld [vmem:[%s394 + $0x28] sm:$0x77]
        %v401 = vld [vmem:[%s394 + $0x30] sm:$0x77]
        %v402 = vld [vmem:[%s394 + $0x38] sm:$0x77]
        %v403 = vld [vmem:[%s394 + $0x40] sm:$0x77]
        %v404 = vld [vmem:[%s394 + $0x48] sm:$0x77]
        %v405 = vld [vmem:[%s394 + $0x50] sm:$0x77]
        %v406 = vld [vmem:[%s394 + $0x58] sm:$0x77]
        %v407 = vld [vmem:[%s394 + $0x60] sm:$0x77]
        %v408 = vld [vmem:[%s394 + $0x68] sm:$0x77]
        %v409 = vld [vmem:[%s394 + $0x70] sm:$0x77]
        %v410 = vld [vmem:[%s394 + $0x78] sm:$0x77]
        %s411 = scalar_lea.vmem %s3, %s391
        %v412 = vld [vmem:[%s411] sm:$0xff]
        %v413 = vld [vmem:[%s411 + $0x8] sm:$0xff]
        %v414 = vld [vmem:[%s411 + $0x10] sm:$0xff]
        %v415 = vld [vmem:[%s411 + $0x18] sm:$0xff]
        %v416 = vld [vmem:[%s365] sm:$0x77]
        %v417 = vld [vmem:[%s365 + $0x8] sm:$0x77]
        %v418 = vld [vmem:[%s365 + $0x10] sm:$0x77]
        %v419 = vld [vmem:[%s365 + $0x18] sm:$0x77]
        %v420 = vld [vmem:[%s365 + $0x20] sm:$0x77]
        %v421 = vld [vmem:[%s365 + $0x28] sm:$0x77]
        %v422 = vld [vmem:[%s365 + $0x30] sm:$0x77]
        %v423 = vld [vmem:[%s365 + $0x38] sm:$0x77]
        %v424 = vld [vmem:[%s365 + $0x40] sm:$0x77]
        %v425 = vld [vmem:[%s365 + $0x48] sm:$0x77]
        %v426 = vld [vmem:[%s365 + $0x50] sm:$0x77]
        %v427 = vld [vmem:[%s365 + $0x58] sm:$0x77]
        %v428 = vld [vmem:[%s365 + $0x60] sm:$0x77]
        %v429 = vld [vmem:[%s365 + $0x68] sm:$0x77]
        %v430 = vld [vmem:[%s365 + $0x70] sm:$0x77]
        %v431 = vld [vmem:[%s365 + $0x78] sm:$0x77]
        %v432 = vld [vmem:[%s375] sm:$0x77]
        %v433 = vld [vmem:[%s375 + $0x8] sm:$0x77]
        %v434 = vld [vmem:[%s375 + $0x10] sm:$0x77]
        %v435 = vld [vmem:[%s375 + $0x18] sm:$0x77]
        %v436 = vld [vmem:[%s375 + $0x20] sm:$0x77]
        %v437 = vld [vmem:[%s375 + $0x28] sm:$0x77]
        %v438 = vld [vmem:[%s375 + $0x30] sm:$0x77]
        %v439 = vld [vmem:[%s375 + $0x38] sm:$0x77]
        %v440 = vld [vmem:[%s375 + $0x40] sm:$0x77]
        %v441 = vld [vmem:[%s375 + $0x48] sm:$0x77]
        %v442 = vld [vmem:[%s375 + $0x50] sm:$0x77]
        %v443 = vld [vmem:[%s375 + $0x58] sm:$0x77]
        %v444 = vld [vmem:[%s375 + $0x60] sm:$0x77]
        %v445 = vld [vmem:[%s375 + $0x68] sm:$0x77]
        %v446 = vld [vmem:[%s375 + $0x70] sm:$0x77]
        %v447 = vld [vmem:[%s375 + $0x78] sm:$0x77]
        %v448 = vmul.f32 %v395, %v416
        %v449 = vmul.f32 %v396, %v417
        %v450 = vmul.f32 %v397, %v418
        %v451 = vmul.f32 %v398, %v419
        %v452 = vmul.f32 %v399, %v420
        %v453 = vmul.f32 %v400, %v421
        %v454 = vmul.f32 %v401, %v422
        %v455 = vmul.f32 %v402, %v423
        %v456 = vmul.f32 %v403, %v424
        %v457 = vmul.f32 %v404, %v425
        %v458 = vmul.f32 %v405, %v426
        %v459 = vmul.f32 %v406, %v427
        %v460 = vmul.f32 %v407, %v428
        %v461 = vmul.f32 %v408, %v429
        %v462 = vmul.f32 %v409, %v430
        %v463 = vmul.f32 %v410, %v431
        %v480 = vcombine.high %v448, %v448
        %v481 = vcombine.high %v449, %v449
        %v482 = vcombine.high %v450, %v450
        %v483 = vcombine.high %v451, %v451
        %v484 = vcombine.high %v452, %v452
        %v485 = vcombine.high %v453, %v453
        %v486 = vcombine.high %v454, %v454
        %v487 = vcombine.high %v455, %v455
        %v488 = vcombine.high %v456, %v456
        %v489 = vcombine.high %v457, %v457
        %v490 = vcombine.high %v458, %v458
        %v491 = vcombine.high %v459, %v459
        %v492 = vcombine.high %v460, %v460
        %v493 = vcombine.high %v461, %v461
        %v494 = vcombine.high %v462, %v462
        %v495 = vcombine.high %v463, %v463
        %vm512 = vcmask 1042432
        %v513 = vsel %vm512, %v448, 0.0
        %v514 = vrot.slane %v513, 4
        %v515 = vadd.f32 %v513, %v514
        %v516 = vrot.slane %v515, 2
        %v517 = vadd.f32 %v515, %v516
        %v518 = vrot.slane %v517, 1
        %v519 = vadd.f32 %v517, %v518
        %v520 = vsel %vm512, %v480, 0.0
        %v521 = vrot.slane %v520, 4
        %v522 = vadd.f32 %v520, %v521
        %v523 = vrot.slane %v522, 2
        %v524 = vadd.f32 %v522, %v523
        %v525 = vrot.slane %v524, 1
        %v526 = vadd.f32 %v524, %v525
        %v527 = vsel %vm512, %v449, 0.0
        %v528 = vrot.slane %v527, 4
        %v529 = vadd.f32 %v527, %v528
        %v530 = vrot.slane %v529, 2
        %v531 = vadd.f32 %v529, %v530
        %v532 = vrot.slane %v531, 1
        %v533 = vadd.f32 %v531, %v532
        %v534 = vsel %vm512, %v481, 0.0
        %v535 = vrot.slane %v534, 4
        %v536 = vadd.f32 %v534, %v535
        %v537 = vrot.slane %v536, 2
        %v538 = vadd.f32 %v536, %v537
        %v539 = vrot.slane %v538, 1
        %v540 = vadd.f32 %v538, %v539
        %v541 = vsel %vm512, %v450, 0.0
        %v542 = vrot.slane %v541, 4
        %v543 = vadd.f32 %v541, %v542
        %v544 = vrot.slane %v543, 2
        %v545 = vadd.f32 %v543, %v544
        %v546 = vrot.slane %v545, 1
        %v547 = vadd.f32 %v545, %v546
        %v548 = vsel %vm512, %v482, 0.0
        %v549 = vrot.slane %v548, 4
        %v550 = vadd.f32 %v548, %v549
        %v551 = vrot.slane %v550, 2
        %v552 = vadd.f32 %v550, %v551
        %v553 = vrot.slane %v552, 1
        %v554 = vadd.f32 %v552, %v553
        %v555 = vsel %vm512, %v451, 0.0
        %v556 = vrot.slane %v555, 4
        %v557 = vadd.f32 %v555, %v556
        %v558 = vrot.slane %v557, 2
        %v559 = vadd.f32 %v557, %v558
        %v560 = vrot.slane %v559, 1
        %v561 = vadd.f32 %v559, %v560
        %v562 = vsel %vm512, %v483, 0.0
        %v563 = vrot.slane %v562, 4
        %v564 = vadd.f32 %v562, %v563
        %v565 = vrot.slane %v564, 2
        %v566 = vadd.f32 %v564, %v565
        %v567 = vrot.slane %v566, 1
        %v568 = vadd.f32 %v566, %v567
        %v569 = vsel %vm512, %v452, 0.0
        %v570 = vrot.slane %v569, 4
        %v571 = vadd.f32 %v569, %v570
        %v572 = vrot.slane %v571, 2
        %v573 = vadd.f32 %v571, %v572
        %v574 = vrot.slane %v573, 1
        %v575 = vadd.f32 %v573, %v574
        %v576 = vsel %vm512, %v484, 0.0
        %v577 = vrot.slane %v576, 4
        %v578 = vadd.f32 %v576, %v577
        %v579 = vrot.slane %v578, 2
        %v580 = vadd.f32 %v578, %v579
        %v581 = vrot.slane %v580, 1
        %v582 = vadd.f32 %v580, %v581
        %v583 = vsel %vm512, %v453, 0.0
        %v584 = vrot.slane %v583, 4
        %v585 = vadd.f32 %v583, %v584
        %v586 = vrot.slane %v585, 2
        %v587 = vadd.f32 %v585, %v586
        %v588 = vrot.slane %v587, 1
        %v589 = vadd.f32 %v587, %v588
        %v590 = vsel %vm512, %v485, 0.0
        %v591 = vrot.slane %v590, 4
        %v592 = vadd.f32 %v590, %v591
        %v593 = vrot.slane %v592, 2
        %v594 = vadd.f32 %v592, %v593
        %v595 = vrot.slane %v594, 1
        %v596 = vadd.f32 %v594, %v595
        %v597 = vsel %vm512, %v454, 0.0
        %v598 = vrot.slane %v597, 4
        %v599 = vadd.f32 %v597, %v598
        %v600 = vrot.slane %v599, 2
        %v601 = vadd.f32 %v599, %v600
        %v602 = vrot.slane %v601, 1
        %v603 = vadd.f32 %v601, %v602
        %v604 = vsel %vm512, %v486, 0.0
        %v605 = vrot.slane %v604, 4
        %v606 = vadd.f32 %v604, %v605
        %v607 = vrot.slane %v606, 2
        %v608 = vadd.f32 %v606, %v607
        %v609 = vrot.slane %v608, 1
        %v610 = vadd.f32 %v608, %v609
        %v611 = vsel %vm512, %v455, 0.0
        %v612 = vrot.slane %v611, 4
        %v613 = vadd.f32 %v611, %v612
        %v614 = vrot.slane %v613, 2
        %v615 = vadd.f32 %v613, %v614
        %v616 = vrot.slane %v615, 1
        %v617 = vadd.f32 %v615, %v616
        %v618 = vsel %vm512, %v487, 0.0
        %v619 = vrot.slane %v618, 4
        %v620 = vadd.f32 %v618, %v619
        %v621 = vrot.slane %v620, 2
        %v622 = vadd.f32 %v620, %v621
        %v623 = vrot.slane %v622, 1
        %v624 = vadd.f32 %v622, %v623
        %v625 = vsel %vm512, %v456, 0.0
        %v626 = vrot.slane %v625, 4
        %v627 = vadd.f32 %v625, %v626
        %v628 = vrot.slane %v627, 2
        %v629 = vadd.f32 %v627, %v628
        %v630 = vrot.slane %v629, 1
        %v631 = vadd.f32 %v629, %v630
        %v632 = vsel %vm512, %v488, 0.0
        %v633 = vrot.slane %v632, 4
        %v634 = vadd.f32 %v632, %v633
        %v635 = vrot.slane %v634, 2
        %v636 = vadd.f32 %v634, %v635
        %v637 = vrot.slane %v636, 1
        %v638 = vadd.f32 %v636, %v637
        %v639 = vsel %vm512, %v457, 0.0
        %v640 = vrot.slane %v639, 4
        %v641 = vadd.f32 %v639, %v640
        %v642 = vrot.slane %v641, 2
        %v643 = vadd.f32 %v641, %v642
        %v644 = vrot.slane %v643, 1
        %v645 = vadd.f32 %v643, %v644
        %v646 = vsel %vm512, %v489, 0.0
        %v647 = vrot.slane %v646, 4
        %v648 = vadd.f32 %v646, %v647
        %v649 = vrot.slane %v648, 2
        %v650 = vadd.f32 %v648, %v649
        %v651 = vrot.slane %v650, 1
        %v652 = vadd.f32 %v650, %v651
        %v653 = vsel %vm512, %v458, 0.0
        %v654 = vrot.slane %v653, 4
        %v655 = vadd.f32 %v653, %v654
        %v656 = vrot.slane %v655, 2
        %v657 = vadd.f32 %v655, %v656
        %v658 = vrot.slane %v657, 1
        %v659 = vadd.f32 %v657, %v658
        %v660 = vsel %vm512, %v490, 0.0
        %v661 = vrot.slane %v660, 4
        %v662 = vadd.f32 %v660, %v661
        %v663 = vrot.slane %v662, 2
        %v664 = vadd.f32 %v662, %v663
        %v665 = vrot.slane %v664, 1
        %v666 = vadd.f32 %v664, %v665
        %v667 = vsel %vm512, %v459, 0.0
        %v668 = vrot.slane %v667, 4
        %v669 = vadd.f32 %v667, %v668
        %v670 = vrot.slane %v669, 2
        %v671 = vadd.f32 %v669, %v670
        %v672 = vrot.slane %v671, 1
        %v673 = vadd.f32 %v671, %v672
        %v674 = vsel %vm512, %v491, 0.0
        %v675 = vrot.slane %v674, 4
        %v676 = vadd.f32 %v674, %v675
        %v677 = vrot.slane %v676, 2
        %v678 = vadd.f32 %v676, %v677
        %v679 = vrot.slane %v678, 1
        %v680 = vadd.f32 %v678, %v679
        %v681 = vsel %vm512, %v460, 0.0
        %v682 = vrot.slane %v681, 4
        %v683 = vadd.f32 %v681, %v682
        %v684 = vrot.slane %v683, 2
        %v685 = vadd.f32 %v683, %v684
        %v686 = vrot.slane %v685, 1
        %v687 = vadd.f32 %v685, %v686
        %v688 = vsel %vm512, %v492, 0.0
        %v689 = vrot.slane %v688, 4
        %v690 = vadd.f32 %v688, %v689
        %v691 = vrot.slane %v690, 2
        %v692 = vadd.f32 %v690, %v691
        %v693 = vrot.slane %v692, 1
        %v694 = vadd.f32 %v692, %v693
        %v695 = vsel %vm512, %v461, 0.0
        %v696 = vrot.slane %v695, 4
        %v697 = vadd.f32 %v695, %v696
        %v698 = vrot.slane %v697, 2
        %v699 = vadd.f32 %v697, %v698
        %v700 = vrot.slane %v699, 1
        %v701 = vadd.f32 %v699, %v700
        %v702 = vsel %vm512, %v493, 0.0
        %v703 = vrot.slane %v702, 4
        %v704 = vadd.f32 %v702, %v703
        %v705 = vrot.slane %v704, 2
        %v706 = vadd.f32 %v704, %v705
        %v707 = vrot.slane %v706, 1
        %v708 = vadd.f32 %v706, %v707
        %v709 = vsel %vm512, %v462, 0.0
        %v710 = vrot.slane %v709, 4
        %v711 = vadd.f32 %v709, %v710
        %v712 = vrot.slane %v711, 2
        %v713 = vadd.f32 %v711, %v712
        %v714 = vrot.slane %v713, 1
        %v715 = vadd.f32 %v713, %v714
        %v716 = vsel %vm512, %v494, 0.0
        %v717 = vrot.slane %v716, 4
        %v718 = vadd.f32 %v716, %v717
        %v719 = vrot.slane %v718, 2
        %v720 = vadd.f32 %v718, %v719
        %v721 = vrot.slane %v720, 1
        %v722 = vadd.f32 %v720, %v721
        %v723 = vsel %vm512, %v463, 0.0
        %v724 = vrot.slane %v723, 4
        %v725 = vadd.f32 %v723, %v724
        %v726 = vrot.slane %v725, 2
        %v727 = vadd.f32 %v725, %v726
        %v728 = vrot.slane %v727, 1
        %v729 = vadd.f32 %v727, %v728
        %v730 = vsel %vm512, %v495, 0.0
        %v731 = vrot.slane %v730, 4
        %v732 = vadd.f32 %v730, %v731
        %v733 = vrot.slane %v732, 2
        %v734 = vadd.f32 %v732, %v733
        %v735 = vrot.slane %v734, 1
        %v736 = vadd.f32 %v734, %v735
        %v737 = vmax.f32 %v519, 0.0
        %v738 = vmax.f32 %v526, 0.0
        %v739 = vmax.f32 %v533, 0.0
        %v740 = vmax.f32 %v540, 0.0
        %v741 = vmax.f32 %v547, 0.0
        %v742 = vmax.f32 %v554, 0.0
        %v743 = vmax.f32 %v561, 0.0
        %v744 = vmax.f32 %v568, 0.0
        %v745 = vmax.f32 %v575, 0.0
        %v746 = vmax.f32 %v582, 0.0
        %v747 = vmax.f32 %v589, 0.0
        %v748 = vmax.f32 %v596, 0.0
        %v749 = vmax.f32 %v603, 0.0
        %v750 = vmax.f32 %v610, 0.0
        %v751 = vmax.f32 %v617, 0.0
        %v752 = vmax.f32 %v624, 0.0
        %v753 = vmax.f32 %v631, 0.0
        %v754 = vmax.f32 %v638, 0.0
        %v755 = vmax.f32 %v645, 0.0
        %v756 = vmax.f32 %v652, 0.0
        %v757 = vmax.f32 %v659, 0.0
        %v758 = vmax.f32 %v666, 0.0
        %v759 = vmax.f32 %v673, 0.0
        %v760 = vmax.f32 %v680, 0.0
        %v761 = vmax.f32 %v687, 0.0
        %v762 = vmax.f32 %v694, 0.0
        %v763 = vmax.f32 %v701, 0.0
        %v764 = vmax.f32 %v708, 0.0
        %v765 = vmax.f32 %v715, 0.0
        %v766 = vmax.f32 %v722, 0.0
        %v767 = vmax.f32 %v729, 0.0
        %v768 = vmax.f32 %v736, 0.0
        %v769 = vmin.f32 %v737, 1.0
        %v770 = vmin.f32 %v738, 1.0
        %v771 = vmin.f32 %v739, 1.0
        %v772 = vmin.f32 %v740, 1.0
        %v773 = vmin.f32 %v741, 1.0
        %v774 = vmin.f32 %v742, 1.0
        %v775 = vmin.f32 %v743, 1.0
        %v776 = vmin.f32 %v744, 1.0
        %v777 = vmin.f32 %v745, 1.0
        %v778 = vmin.f32 %v746, 1.0
        %v779 = vmin.f32 %v747, 1.0
        %v780 = vmin.f32 %v748, 1.0
        %v781 = vmin.f32 %v749, 1.0
        %v782 = vmin.f32 %v750, 1.0
        %v783 = vmin.f32 %v751, 1.0
        %v784 = vmin.f32 %v752, 1.0
        %v785 = vmin.f32 %v753, 1.0
        %v786 = vmin.f32 %v754, 1.0
        %v787 = vmin.f32 %v755, 1.0
        %v788 = vmin.f32 %v756, 1.0
        %v789 = vmin.f32 %v757, 1.0
        %v790 = vmin.f32 %v758, 1.0
        %v791 = vmin.f32 %v759, 1.0
        %v792 = vmin.f32 %v760, 1.0
        %v793 = vmin.f32 %v761, 1.0
        %v794 = vmin.f32 %v762, 1.0
        %v795 = vmin.f32 %v763, 1.0
        %v796 = vmin.f32 %v764, 1.0
        %v797 = vmin.f32 %v765, 1.0
        %v798 = vmin.f32 %v766, 1.0
        %v799 = vmin.f32 %v767, 1.0
        %v800 = vmin.f32 %v768, 1.0
        %v801 = vsub.f32 %v432, 0.002
        %v802 = vsub.f32 %v433, 0.002
        %v803 = vsub.f32 %v434, 0.002
        %v804 = vsub.f32 %v435, 0.002
        %v805 = vsub.f32 %v436, 0.002
        %v806 = vsub.f32 %v437, 0.002
        %v807 = vsub.f32 %v438, 0.002
        %v808 = vsub.f32 %v439, 0.002
        %v809 = vsub.f32 %v440, 0.002
        %v810 = vsub.f32 %v441, 0.002
        %v811 = vsub.f32 %v442, 0.002
        %v812 = vsub.f32 %v443, 0.002
        %v813 = vsub.f32 %v444, 0.002
        %v814 = vsub.f32 %v445, 0.002
        %v815 = vsub.f32 %v446, 0.002
        %v816 = vsub.f32 %v447, 0.002
        %v817 = vmul.f32 %v801, %v801
        %v818 = vmul.f32 %v802, %v802
        %v819 = vmul.f32 %v803, %v803
        %v820 = vmul.f32 %v804, %v804
        %v821 = vmul.f32 %v805, %v805
        %v822 = vmul.f32 %v806, %v806
        %v823 = vmul.f32 %v807, %v807
        %v824 = vmul.f32 %v808, %v808
        %v825 = vmul.f32 %v809, %v809
        %v826 = vmul.f32 %v810, %v810
        %v827 = vmul.f32 %v811, %v811
        %v828 = vmul.f32 %v812, %v812
        %v829 = vmul.f32 %v813, %v813
        %v830 = vmul.f32 %v814, %v814
        %v831 = vmul.f32 %v815, %v815
        %v832 = vmul.f32 %v816, %v816
        %v833 = vmul.f32 %v432, %v432
        %v834 = vmul.f32 %v433, %v433
        %v835 = vmul.f32 %v434, %v434
        %v836 = vmul.f32 %v435, %v435
        %v837 = vmul.f32 %v436, %v436
        %v838 = vmul.f32 %v437, %v437
        %v839 = vmul.f32 %v438, %v438
        %v840 = vmul.f32 %v439, %v439
        %v841 = vmul.f32 %v440, %v440
        %v842 = vmul.f32 %v441, %v441
        %v843 = vmul.f32 %v442, %v442
        %v844 = vmul.f32 %v443, %v443
        %v845 = vmul.f32 %v444, %v444
        %v846 = vmul.f32 %v445, %v445
        %v847 = vmul.f32 %v446, %v446
        %v848 = vmul.f32 %v447, %v447
        %v865 = vrot.slane %v833, 5
        %v866 = vrot.slane %v865, 4
        %v867 = vrot.slane %v834, 5
        %v868 = vrot.slane %v867, 4
        %v869 = vrot.slane %v835, 5
        %v870 = vrot.slane %v869, 4
        %v871 = vrot.slane %v836, 5
        %v872 = vrot.slane %v871, 4
        %v873 = vrot.slane %v837, 5
        %v874 = vrot.slane %v873, 4
        %v875 = vrot.slane %v838, 5
        %v876 = vrot.slane %v875, 4
        %v877 = vrot.slane %v839, 5
        %v878 = vrot.slane %v877, 4
        %v879 = vrot.slane %v840, 5
        %v880 = vrot.slane %v879, 4
        %v881 = vrot.slane %v841, 5
        %v882 = vrot.slane %v881, 4
        %v883 = vrot.slane %v842, 5
        %v884 = vrot.slane %v883, 4
        %v885 = vrot.slane %v843, 5
        %v886 = vrot.slane %v885, 4
        %v887 = vrot.slane %v844, 5
        %v888 = vrot.slane %v887, 4
        %v889 = vrot.slane %v845, 5
        %v890 = vrot.slane %v889, 4
        %v891 = vrot.slane %v846, 5
        %v892 = vrot.slane %v891, 4
        %v893 = vrot.slane %v847, 5
        %v894 = vrot.slane %v893, 4
        %v895 = vrot.slane %v848, 5
        %v896 = vrot.slane %v895, 4
        %v913 = vadd.f32 %v817, %v866
        %v914 = vadd.f32 %v818, %v868
        %v915 = vadd.f32 %v819, %v870
        %v916 = vadd.f32 %v820, %v872
        %v917 = vadd.f32 %v821, %v874
        %v918 = vadd.f32 %v822, %v876
        %v919 = vadd.f32 %v823, %v878
        %v920 = vadd.f32 %v824, %v880
        %v921 = vadd.f32 %v825, %v882
        %v922 = vadd.f32 %v826, %v884
        %v923 = vadd.f32 %v827, %v886
        %v924 = vadd.f32 %v828, %v888
        %v925 = vadd.f32 %v829, %v890
        %v926 = vadd.f32 %v830, %v892
        %v927 = vadd.f32 %v831, %v894
        %v928 = vadd.f32 %v832, %v896
        %v929 = vrot.slane %v833, 6
        %v930 = vrot.slane %v929, 4
        %v931 = vrot.slane %v834, 6
        %v932 = vrot.slane %v931, 4
        %v933 = vrot.slane %v835, 6
        %v934 = vrot.slane %v933, 4
        %v935 = vrot.slane %v836, 6
        %v936 = vrot.slane %v935, 4
        %v937 = vrot.slane %v837, 6
        %v938 = vrot.slane %v937, 4
        %v939 = vrot.slane %v838, 6
        %v940 = vrot.slane %v939, 4
        %v941 = vrot.slane %v839, 6
        %v942 = vrot.slane %v941, 4
        %v943 = vrot.slane %v840, 6
        %v944 = vrot.slane %v943, 4
        %v945 = vrot.slane %v841, 6
        %v946 = vrot.slane %v945, 4
        %v947 = vrot.slane %v842, 6
        %v948 = vrot.slane %v947, 4
        %v949 = vrot.slane %v843, 6
        %v950 = vrot.slane %v949, 4
        %v951 = vrot.slane %v844, 6
        %v952 = vrot.slane %v951, 4
        %v953 = vrot.slane %v845, 6
        %v954 = vrot.slane %v953, 4
        %v955 = vrot.slane %v846, 6
        %v956 = vrot.slane %v955, 4
        %v957 = vrot.slane %v847, 6
        %v958 = vrot.slane %v957, 4
        %v959 = vrot.slane %v848, 6
        %v960 = vrot.slane %v959, 4
        %v977 = vadd.f32 %v913, %v930
        %v978 = vadd.f32 %v914, %v932
        %v979 = vadd.f32 %v915, %v934
        %v980 = vadd.f32 %v916, %v936
        %v981 = vadd.f32 %v917, %v938
        %v982 = vadd.f32 %v918, %v940
        %v983 = vadd.f32 %v919, %v942
        %v984 = vadd.f32 %v920, %v944
        %v985 = vadd.f32 %v921, %v946
        %v986 = vadd.f32 %v922, %v948
        %v987 = vadd.f32 %v923, %v950
        %v988 = vadd.f32 %v924, %v952
        %v989 = vadd.f32 %v925, %v954
        %v990 = vadd.f32 %v926, %v956
        %v991 = vadd.f32 %v927, %v958
        %v992 = vadd.f32 %v928, %v960
        %v993 = vrsqrt.pop %v977
        %v994 = vmul.f32 %v977, %v993
        %vm995 = vcmp.eq.f32.partialorder %v977, inf
        %v996 = vsel %vm995, %v977, %v994
        %vm997 = vcmp.eq.f32.partialorder %v977, 0.0
        %v998 = vand.u32 %v977, 2147483648
        %v999 = vsel %vm997, %v998, %v996
        %v1000 = vrsqrt.pop %v978
        %v1001 = vmul.f32 %v978, %v1000
        %vm1002 = vcmp.eq.f32.partialorder %v978, inf
        %v1003 = vsel %vm1002, %v978, %v1001
        %vm1004 = vcmp.eq.f32.partialorder %v978, 0.0
        %v1005 = vand.u32 %v978, 2147483648
        %v1006 = vsel %vm1004, %v1005, %v1003
        %v1007 = vrsqrt.pop %v979
        %v1008 = vmul.f32 %v979, %v1007
        %vm1009 = vcmp.eq.f32.partialorder %v979, inf
        %v1010 = vsel %vm1009, %v979, %v1008
        %vm1011 = vcmp.eq.f32.partialorder %v979, 0.0
        %v1012 = vand.u32 %v979, 2147483648
        %v1013 = vsel %vm1011, %v1012, %v1010
        %v1014 = vrsqrt.pop %v980
        %v1015 = vmul.f32 %v980, %v1014
        %vm1016 = vcmp.eq.f32.partialorder %v980, inf
        %v1017 = vsel %vm1016, %v980, %v1015
        %vm1018 = vcmp.eq.f32.partialorder %v980, 0.0
        %v1019 = vand.u32 %v980, 2147483648
        %v1020 = vsel %vm1018, %v1019, %v1017
        %v1021 = vrsqrt.pop %v981
        %v1022 = vmul.f32 %v981, %v1021
        %vm1023 = vcmp.eq.f32.partialorder %v981, inf
        %v1024 = vsel %vm1023, %v981, %v1022
        %vm1025 = vcmp.eq.f32.partialorder %v981, 0.0
        %v1026 = vand.u32 %v981, 2147483648
        %v1027 = vsel %vm1025, %v1026, %v1024
        %v1028 = vrsqrt.pop %v982
        %v1029 = vmul.f32 %v982, %v1028
        %vm1030 = vcmp.eq.f32.partialorder %v982, inf
        %v1031 = vsel %vm1030, %v982, %v1029
        %vm1032 = vcmp.eq.f32.partialorder %v982, 0.0
        %v1033 = vand.u32 %v982, 2147483648
        %v1034 = vsel %vm1032, %v1033, %v1031
        %v1035 = vrsqrt.pop %v983
        %v1036 = vmul.f32 %v983, %v1035
        %vm1037 = vcmp.eq.f32.partialorder %v983, inf
        %v1038 = vsel %vm1037, %v983, %v1036
        %vm1039 = vcmp.eq.f32.partialorder %v983, 0.0
        %v1040 = vand.u32 %v983, 2147483648
        %v1041 = vsel %vm1039, %v1040, %v1038
        %v1042 = vrsqrt.pop %v984
        %v1043 = vmul.f32 %v984, %v1042
        %vm1044 = vcmp.eq.f32.partialorder %v984, inf
        %v1045 = vsel %vm1044, %v984, %v1043
        %vm1046 = vcmp.eq.f32.partialorder %v984, 0.0
        %v1047 = vand.u32 %v984, 2147483648
        %v1048 = vsel %vm1046, %v1047, %v1045
        %v1049 = vrsqrt.pop %v985
        %v1050 = vmul.f32 %v985, %v1049
        %vm1051 = vcmp.eq.f32.partialorder %v985, inf
        %v1052 = vsel %vm1051, %v985, %v1050
        %vm1053 = vcmp.eq.f32.partialorder %v985, 0.0
        %v1054 = vand.u32 %v985, 2147483648
        %v1055 = vsel %vm1053, %v1054, %v1052
        %v1056 = vrsqrt.pop %v986
        %v1057 = vmul.f32 %v986, %v1056
        %vm1058 = vcmp.eq.f32.partialorder %v986, inf
        %v1059 = vsel %vm1058, %v986, %v1057
        %vm1060 = vcmp.eq.f32.partialorder %v986, 0.0
        %v1061 = vand.u32 %v986, 2147483648
        %v1062 = vsel %vm1060, %v1061, %v1059
        %v1063 = vrsqrt.pop %v987
        %v1064 = vmul.f32 %v987, %v1063
        %vm1065 = vcmp.eq.f32.partialorder %v987, inf
        %v1066 = vsel %vm1065, %v987, %v1064
        %vm1067 = vcmp.eq.f32.partialorder %v987, 0.0
        %v1068 = vand.u32 %v987, 2147483648
        %v1069 = vsel %vm1067, %v1068, %v1066
        %v1070 = vrsqrt.pop %v988
        %v1071 = vmul.f32 %v988, %v1070
        %vm1072 = vcmp.eq.f32.partialorder %v988, inf
        %v1073 = vsel %vm1072, %v988, %v1071
        %vm1074 = vcmp.eq.f32.partialorder %v988, 0.0
        %v1075 = vand.u32 %v988, 2147483648
        %v1076 = vsel %vm1074, %v1075, %v1073
        %v1077 = vrsqrt.pop %v989
        %v1078 = vmul.f32 %v989, %v1077
        %vm1079 = vcmp.eq.f32.partialorder %v989, inf
        %v1080 = vsel %vm1079, %v989, %v1078
        %vm1081 = vcmp.eq.f32.partialorder %v989, 0.0
        %v1082 = vand.u32 %v989, 2147483648
        %v1083 = vsel %vm1081, %v1082, %v1080
        %v1084 = vrsqrt.pop %v990
        %v1085 = vmul.f32 %v990, %v1084
        %vm1086 = vcmp.eq.f32.partialorder %v990, inf
        %v1087 = vsel %vm1086, %v990, %v1085
        %vm1088 = vcmp.eq.f32.partialorder %v990, 0.0
        %v1089 = vand.u32 %v990, 2147483648
        %v1090 = vsel %vm1088, %v1089, %v1087
        %v1091 = vrsqrt.pop %v991
        %v1092 = vmul.f32 %v991, %v1091
        %vm1093 = vcmp.eq.f32.partialorder %v991, inf
        %v1094 = vsel %vm1093, %v991, %v1092
        %vm1095 = vcmp.eq.f32.partialorder %v991, 0.0
        %v1096 = vand.u32 %v991, 2147483648
        %v1097 = vsel %vm1095, %v1096, %v1094
        %v1098 = vrsqrt.pop %v992
        %v1099 = vmul.f32 %v992, %v1098
        %vm1100 = vcmp.eq.f32.partialorder %v992, inf
        %v1101 = vsel %vm1100, %v992, %v1099
        %vm1102 = vcmp.eq.f32.partialorder %v992, 0.0
        %v1103 = vand.u32 %v992, 2147483648
        %v1104 = vsel %vm1102, %v1103, %v1101
        %v1105 = vmax.f32 %v833, 1e-20
        %v1106 = vmax.f32 %v834, 1e-20
        %v1107 = vmax.f32 %v835, 1e-20
        %v1108 = vmax.f32 %v836, 1e-20
        %v1109 = vmax.f32 %v837, 1e-20
        %v1110 = vmax.f32 %v838, 1e-20
        %v1111 = vmax.f32 %v839, 1e-20
        %v1112 = vmax.f32 %v840, 1e-20
        %v1113 = vmax.f32 %v841, 1e-20
        %v1114 = vmax.f32 %v842, 1e-20
        %v1115 = vmax.f32 %v843, 1e-20
        %v1116 = vmax.f32 %v844, 1e-20
        %v1117 = vmax.f32 %v845, 1e-20
        %v1118 = vmax.f32 %v846, 1e-20
        %v1119 = vmax.f32 %v847, 1e-20
        %v1120 = vmax.f32 %v848, 1e-20
        %v1137 = vrot.slane %v1105, 6
        %v1138 = vrot.slane %v1137, 4
        %v1139 = vrot.slane %v1106, 6
        %v1140 = vrot.slane %v1139, 4
        %v1141 = vrot.slane %v1107, 6
        %v1142 = vrot.slane %v1141, 4
        %v1143 = vrot.slane %v1108, 6
        %v1144 = vrot.slane %v1143, 4
        %v1145 = vrot.slane %v1109, 6
        %v1146 = vrot.slane %v1145, 4
        %v1147 = vrot.slane %v1110, 6
        %v1148 = vrot.slane %v1147, 4
        %v1149 = vrot.slane %v1111, 6
        %v1150 = vrot.slane %v1149, 4
        %v1151 = vrot.slane %v1112, 6
        %v1152 = vrot.slane %v1151, 4
        %v1153 = vrot.slane %v1113, 6
        %v1154 = vrot.slane %v1153, 4
        %v1155 = vrot.slane %v1114, 6
        %v1156 = vrot.slane %v1155, 4
        %v1157 = vrot.slane %v1115, 6
        %v1158 = vrot.slane %v1157, 4
        %v1159 = vrot.slane %v1116, 6
        %v1160 = vrot.slane %v1159, 4
        %v1161 = vrot.slane %v1117, 6
        %v1162 = vrot.slane %v1161, 4
        %v1163 = vrot.slane %v1118, 6
        %v1164 = vrot.slane %v1163, 4
        %v1165 = vrot.slane %v1119, 6
        %v1166 = vrot.slane %v1165, 4
        %v1167 = vrot.slane %v1120, 6
        %v1168 = vrot.slane %v1167, 4
        %v1185 = vrcp.pop %v1138
        %v1186 = vmul.f32 %v913, %v1185
        %v1187 = vrcp.pop %v1140
        %v1188 = vmul.f32 %v914, %v1187
        %v1189 = vrcp.pop %v1142
        %v1190 = vmul.f32 %v915, %v1189
        %v1191 = vrcp.pop %v1144
        %v1192 = vmul.f32 %v916, %v1191
        %v1193 = vrcp.pop %v1146
        %v1194 = vmul.f32 %v917, %v1193
        %v1195 = vrcp.pop %v1148
        %v1196 = vmul.f32 %v918, %v1195
        %v1197 = vrcp.pop %v1150
        %v1198 = vmul.f32 %v919, %v1197
        %v1199 = vrcp.pop %v1152
        %v1200 = vmul.f32 %v920, %v1199
        %v1201 = vrcp.pop %v1154
        %v1202 = vmul.f32 %v921, %v1201
        %v1203 = vrcp.pop %v1156
        %v1204 = vmul.f32 %v922, %v1203
        %v1205 = vrcp.pop %v1158
        %v1206 = vmul.f32 %v923, %v1205
        %v1207 = vrcp.pop %v1160
        %v1208 = vmul.f32 %v924, %v1207
        %v1209 = vrcp.pop %v1162
        %v1210 = vmul.f32 %v925, %v1209
        %v1211 = vrcp.pop %v1164
        %v1212 = vmul.f32 %v926, %v1211
        %v1213 = vrcp.pop %v1166
        %v1214 = vmul.f32 %v927, %v1213
        %v1215 = vrcp.pop %v1168
        %v1216 = vmul.f32 %v928, %v1215
        %v1217 = vsub.f32 0.0, %v1186
        %v1218 = vsub.f32 0.0, %v1188
        %v1219 = vsub.f32 0.0, %v1190
        %v1220 = vsub.f32 0.0, %v1192
        %v1221 = vsub.f32 0.0, %v1194
        %v1222 = vsub.f32 0.0, %v1196
        %v1223 = vsub.f32 0.0, %v1198
        %v1224 = vsub.f32 0.0, %v1200
        %v1225 = vsub.f32 0.0, %v1202
        %v1226 = vsub.f32 0.0, %v1204
        %v1227 = vsub.f32 0.0, %v1206
        %v1228 = vsub.f32 0.0, %v1208
        %v1229 = vsub.f32 0.0, %v1210
        %v1230 = vsub.f32 0.0, %v1212
        %v1231 = vsub.f32 0.0, %v1214
        %v1232 = vsub.f32 0.0, %v1216
        %v1233 = vmul.f32 %v1217, 6.3158383
        %v1234 = vmul.f32 %v1218, 6.3158383
        %v1235 = vmul.f32 %v1219, 6.3158383
        %v1236 = vmul.f32 %v1220, 6.3158383
        %v1237 = vmul.f32 %v1221, 6.3158383
        %v1238 = vmul.f32 %v1222, 6.3158383
        %v1239 = vmul.f32 %v1223, 6.3158383
        %v1240 = vmul.f32 %v1224, 6.3158383
        %v1241 = vmul.f32 %v1225, 6.3158383
        %v1242 = vmul.f32 %v1226, 6.3158383
        %v1243 = vmul.f32 %v1227, 6.3158383
        %v1244 = vmul.f32 %v1228, 6.3158383
        %v1245 = vmul.f32 %v1229, 6.3158383
        %v1246 = vmul.f32 %v1230, 6.3158383
        %v1247 = vmul.f32 %v1231, 6.3158383
        %v1248 = vmul.f32 %v1232, 6.3158383
        %v1249 = vmul.f32 %v1233, 1.442695
        %v1250 = vpow.pop %v1249
        %v1251 = vmul.f32 %v1234, 1.442695
        %v1252 = vpow.pop %v1251
        %v1253 = vmul.f32 %v1235, 1.442695
        %v1254 = vpow.pop %v1253
        %v1255 = vmul.f32 %v1236, 1.442695
        %v1256 = vpow.pop %v1255
        %v1257 = vmul.f32 %v1237, 1.442695
        %v1258 = vpow.pop %v1257
        %v1259 = vmul.f32 %v1238, 1.442695
        %v1260 = vpow.pop %v1259
        %v1261 = vmul.f32 %v1239, 1.442695
        %v1262 = vpow.pop %v1261
        %v1263 = vmul.f32 %v1240, 1.442695
        %v1264 = vpow.pop %v1263
        %v1265 = vmul.f32 %v1241, 1.442695
        %v1266 = vpow.pop %v1265
        %v1267 = vmul.f32 %v1242, 1.442695
        %v1268 = vpow.pop %v1267
        %v1269 = vmul.f32 %v1243, 1.442695
        %v1270 = vpow.pop %v1269
        %v1271 = vmul.f32 %v1244, 1.442695
        %v1272 = vpow.pop %v1271
        %v1273 = vmul.f32 %v1245, 1.442695
        %v1274 = vpow.pop %v1273
        %v1275 = vmul.f32 %v1246, 1.442695
        %v1276 = vpow.pop %v1275
        %v1277 = vmul.f32 %v1247, 1.442695
        %v1278 = vpow.pop %v1277
        %v1279 = vmul.f32 %v1248, 1.442695
        %v1280 = vpow.pop %v1279
        %vm1281 = vcmp.gt.f32.partialorder %v977, 1e-12
        %vm1282 = vcmp.gt.f32.partialorder %v978, 1e-12
        %vm1283 = vcmp.gt.f32.partialorder %v979, 1e-12
        %vm1284 = vcmp.gt.f32.partialorder %v980, 1e-12
        %vm1285 = vcmp.gt.f32.partialorder %v981, 1e-12
        %vm1286 = vcmp.gt.f32.partialorder %v982, 1e-12
        %vm1287 = vcmp.gt.f32.partialorder %v983, 1e-12
        %vm1288 = vcmp.gt.f32.partialorder %v984, 1e-12
        %vm1289 = vcmp.gt.f32.partialorder %v985, 1e-12
        %vm1290 = vcmp.gt.f32.partialorder %v986, 1e-12
        %vm1291 = vcmp.gt.f32.partialorder %v987, 1e-12
        %vm1292 = vcmp.gt.f32.partialorder %v988, 1e-12
        %vm1293 = vcmp.gt.f32.partialorder %v989, 1e-12
        %vm1294 = vcmp.gt.f32.partialorder %v990, 1e-12
        %vm1295 = vcmp.gt.f32.partialorder %v991, 1e-12
        %vm1296 = vcmp.gt.f32.partialorder %v992, 1e-12
        %v1313 = vlaneseq
        %v1314 = vshrl.u32 %v1313, 7
        %v1315 = vsub.s32 0, %v1314
        %v1316 = vrot.slane %v1250, %v1315
        %v1317 = vlaneseq
        %v1318 = vshrl.u32 %v1317, 7
        %v1319 = vsub.s32 4, %v1318
        %v1320 = vrot.slane %v1250, %v1319
        %v1321 = vlaneseq
        %v1322 = vshrl.u32 %v1321, 7
        %v1323 = vsub.s32 0, %v1322
        %v1324 = vrot.slane %v1252, %v1323
        %v1325 = vlaneseq
        %v1326 = vshrl.u32 %v1325, 7
        %v1327 = vsub.s32 4, %v1326
        %v1328 = vrot.slane %v1252, %v1327
        %v1329 = vlaneseq
        %v1330 = vshrl.u32 %v1329, 7
        %v1331 = vsub.s32 0, %v1330
        %v1332 = vrot.slane %v1254, %v1331
        %v1333 = vlaneseq
        %v1334 = vshrl.u32 %v1333, 7
        %v1335 = vsub.s32 4, %v1334
        %v1336 = vrot.slane %v1254, %v1335
        %v1337 = vlaneseq
        %v1338 = vshrl.u32 %v1337, 7
        %v1339 = vsub.s32 0, %v1338
        %v1340 = vrot.slane %v1256, %v1339
        %v1341 = vlaneseq
        %v1342 = vshrl.u32 %v1341, 7
        %v1343 = vsub.s32 4, %v1342
        %v1344 = vrot.slane %v1256, %v1343
        %v1345 = vlaneseq
        %v1346 = vshrl.u32 %v1345, 7
        %v1347 = vsub.s32 0, %v1346
        %v1348 = vrot.slane %v1258, %v1347
        %v1349 = vlaneseq
        %v1350 = vshrl.u32 %v1349, 7
        %v1351 = vsub.s32 4, %v1350
        %v1352 = vrot.slane %v1258, %v1351
        %v1353 = vlaneseq
        %v1354 = vshrl.u32 %v1353, 7
        %v1355 = vsub.s32 0, %v1354
        %v1356 = vrot.slane %v1260, %v1355
        %v1357 = vlaneseq
        %v1358 = vshrl.u32 %v1357, 7
        %v1359 = vsub.s32 4, %v1358
        %v1360 = vrot.slane %v1260, %v1359
        %v1361 = vlaneseq
        %v1362 = vshrl.u32 %v1361, 7
        %v1363 = vsub.s32 0, %v1362
        %v1364 = vrot.slane %v1262, %v1363
        %v1365 = vlaneseq
        %v1366 = vshrl.u32 %v1365, 7
        %v1367 = vsub.s32 4, %v1366
        %v1368 = vrot.slane %v1262, %v1367
        %v1369 = vlaneseq
        %v1370 = vshrl.u32 %v1369, 7
        %v1371 = vsub.s32 0, %v1370
        %v1372 = vrot.slane %v1264, %v1371
        %v1373 = vlaneseq
        %v1374 = vshrl.u32 %v1373, 7
        %v1375 = vsub.s32 4, %v1374
        %v1376 = vrot.slane %v1264, %v1375
        %v1377 = vlaneseq
        %v1378 = vshrl.u32 %v1377, 7
        %v1379 = vsub.s32 0, %v1378
        %v1380 = vrot.slane %v1266, %v1379
        %v1381 = vlaneseq
        %v1382 = vshrl.u32 %v1381, 7
        %v1383 = vsub.s32 4, %v1382
        %v1384 = vrot.slane %v1266, %v1383
        %v1385 = vlaneseq
        %v1386 = vshrl.u32 %v1385, 7
        %v1387 = vsub.s32 0, %v1386
        %v1388 = vrot.slane %v1268, %v1387
        %v1389 = vlaneseq
        %v1390 = vshrl.u32 %v1389, 7
        %v1391 = vsub.s32 4, %v1390
        %v1392 = vrot.slane %v1268, %v1391
        %v1393 = vlaneseq
        %v1394 = vshrl.u32 %v1393, 7
        %v1395 = vsub.s32 0, %v1394
        %v1396 = vrot.slane %v1270, %v1395
        %v1397 = vlaneseq
        %v1398 = vshrl.u32 %v1397, 7
        %v1399 = vsub.s32 4, %v1398
        %v1400 = vrot.slane %v1270, %v1399
        %v1401 = vlaneseq
        %v1402 = vshrl.u32 %v1401, 7
        %v1403 = vsub.s32 0, %v1402
        %v1404 = vrot.slane %v1272, %v1403
        %v1405 = vlaneseq
        %v1406 = vshrl.u32 %v1405, 7
        %v1407 = vsub.s32 4, %v1406
        %v1408 = vrot.slane %v1272, %v1407
        %v1409 = vlaneseq
        %v1410 = vshrl.u32 %v1409, 7
        %v1411 = vsub.s32 0, %v1410
        %v1412 = vrot.slane %v1274, %v1411
        %v1413 = vlaneseq
        %v1414 = vshrl.u32 %v1413, 7
        %v1415 = vsub.s32 4, %v1414
        %v1416 = vrot.slane %v1274, %v1415
        %v1417 = vlaneseq
        %v1418 = vshrl.u32 %v1417, 7
        %v1419 = vsub.s32 0, %v1418
        %v1420 = vrot.slane %v1276, %v1419
        %v1421 = vlaneseq
        %v1422 = vshrl.u32 %v1421, 7
        %v1423 = vsub.s32 4, %v1422
        %v1424 = vrot.slane %v1276, %v1423
        %v1425 = vlaneseq
        %v1426 = vshrl.u32 %v1425, 7
        %v1427 = vsub.s32 0, %v1426
        %v1428 = vrot.slane %v1278, %v1427
        %v1429 = vlaneseq
        %v1430 = vshrl.u32 %v1429, 7
        %v1431 = vsub.s32 4, %v1430
        %v1432 = vrot.slane %v1278, %v1431
        %v1433 = vlaneseq
        %v1434 = vshrl.u32 %v1433, 7
        %v1435 = vsub.s32 0, %v1434
        %v1436 = vrot.slane %v1280, %v1435
        %v1437 = vlaneseq
        %v1438 = vshrl.u32 %v1437, 7
        %v1439 = vsub.s32 4, %v1438
        %v1440 = vrot.slane %v1280, %v1439
        %v1473 = vmul.f32 %v769, %v1316
        %v1474 = vmul.f32 %v770, %v1320
        %v1475 = vmul.f32 %v771, %v1324
        %v1476 = vmul.f32 %v772, %v1328
        %v1477 = vmul.f32 %v773, %v1332
        %v1478 = vmul.f32 %v774, %v1336
        %v1479 = vmul.f32 %v775, %v1340
        %v1480 = vmul.f32 %v776, %v1344
        %v1481 = vmul.f32 %v777, %v1348
        %v1482 = vmul.f32 %v778, %v1352
        %v1483 = vmul.f32 %v779, %v1356
        %v1484 = vmul.f32 %v780, %v1360
        %v1485 = vmul.f32 %v781, %v1364
        %v1486 = vmul.f32 %v782, %v1368
        %v1487 = vmul.f32 %v783, %v1372
        %v1488 = vmul.f32 %v784, %v1376
        %v1489 = vmul.f32 %v785, %v1380
        %v1490 = vmul.f32 %v786, %v1384
        %v1491 = vmul.f32 %v787, %v1388
        %v1492 = vmul.f32 %v788, %v1392
        %v1493 = vmul.f32 %v789, %v1396
        %v1494 = vmul.f32 %v790, %v1400
        %v1495 = vmul.f32 %v791, %v1404
        %v1496 = vmul.f32 %v792, %v1408
        %v1497 = vmul.f32 %v793, %v1412
        %v1498 = vmul.f32 %v794, %v1416
        %v1499 = vmul.f32 %v795, %v1420
        %v1500 = vmul.f32 %v796, %v1424
        %v1501 = vmul.f32 %v797, %v1428
        %v1502 = vmul.f32 %v798, %v1432
        %v1503 = vmul.f32 %v799, %v1436
        %v1504 = vmul.f32 %v800, %v1440
        %v1505 = vmul.f32 %v412, %v412
        %v1506 = vmul.f32 %v413, %v413
        %v1507 = vmul.f32 %v414, %v414
        %v1508 = vmul.f32 %v415, %v415
        %v1509 = vmul.f32 %v1505, %v412
        %v1510 = vmul.f32 %v1506, %v413
        %v1511 = vmul.f32 %v1507, %v414
        %v1512 = vmul.f32 %v1508, %v415
        %v1517 = vlaneseq
        %v1518 = vshrl.u32 %v1517, 7
        %v1519 = vsub.s32 0, %v1518
        %v1520 = vrot.slane %v1509, %v1519
        %v1521 = vlaneseq
        %v1522 = vshrl.u32 %v1521, 7
        %v1523 = vsub.s32 1, %v1522
        %v1524 = vrot.slane %v1509, %v1523
        %v1525 = vlaneseq
        %v1526 = vshrl.u32 %v1525, 7
        %v1527 = vsub.s32 2, %v1526
        %v1528 = vrot.slane %v1509, %v1527
        %v1529 = vlaneseq
        %v1530 = vshrl.u32 %v1529, 7
        %v1531 = vsub.s32 3, %v1530
        %v1532 = vrot.slane %v1509, %v1531
        %v1533 = vlaneseq
        %v1534 = vshrl.u32 %v1533, 7
        %v1535 = vsub.s32 4, %v1534
        %v1536 = vrot.slane %v1509, %v1535
        %v1537 = vlaneseq
        %v1538 = vshrl.u32 %v1537, 7
        %v1539 = vsub.s32 5, %v1538
        %v1540 = vrot.slane %v1509, %v1539
        %v1541 = vlaneseq
        %v1542 = vshrl.u32 %v1541, 7
        %v1543 = vsub.s32 6, %v1542
        %v1544 = vrot.slane %v1509, %v1543
        %v1545 = vlaneseq
        %v1546 = vshrl.u32 %v1545, 7
        %v1547 = vsub.s32 7, %v1546
        %v1548 = vrot.slane %v1509, %v1547
        %v1549 = vlaneseq
        %v1550 = vshrl.u32 %v1549, 7
        %v1551 = vsub.s32 0, %v1550
        %v1552 = vrot.slane %v1510, %v1551
        %v1553 = vlaneseq
        %v1554 = vshrl.u32 %v1553, 7
        %v1555 = vsub.s32 1, %v1554
        %v1556 = vrot.slane %v1510, %v1555
        %v1557 = vlaneseq
        %v1558 = vshrl.u32 %v1557, 7
        %v1559 = vsub.s32 2, %v1558
        %v1560 = vrot.slane %v1510, %v1559
        %v1561 = vlaneseq
        %v1562 = vshrl.u32 %v1561, 7
        %v1563 = vsub.s32 3, %v1562
        %v1564 = vrot.slane %v1510, %v1563
        %v1565 = vlaneseq
        %v1566 = vshrl.u32 %v1565, 7
        %v1567 = vsub.s32 4, %v1566
        %v1568 = vrot.slane %v1510, %v1567
        %v1569 = vlaneseq
        %v1570 = vshrl.u32 %v1569, 7
        %v1571 = vsub.s32 5, %v1570
        %v1572 = vrot.slane %v1510, %v1571
        %v1573 = vlaneseq
        %v1574 = vshrl.u32 %v1573, 7
        %v1575 = vsub.s32 6, %v1574
        %v1576 = vrot.slane %v1510, %v1575
        %v1577 = vlaneseq
        %v1578 = vshrl.u32 %v1577, 7
        %v1579 = vsub.s32 7, %v1578
        %v1580 = vrot.slane %v1510, %v1579
        %v1581 = vlaneseq
        %v1582 = vshrl.u32 %v1581, 7
        %v1583 = vsub.s32 0, %v1582
        %v1584 = vrot.slane %v1511, %v1583
        %v1585 = vlaneseq
        %v1586 = vshrl.u32 %v1585, 7
        %v1587 = vsub.s32 1, %v1586
        %v1588 = vrot.slane %v1511, %v1587
        %v1589 = vlaneseq
        %v1590 = vshrl.u32 %v1589, 7
        %v1591 = vsub.s32 2, %v1590
        %v1592 = vrot.slane %v1511, %v1591
        %v1593 = vlaneseq
        %v1594 = vshrl.u32 %v1593, 7
        %v1595 = vsub.s32 3, %v1594
        %v1596 = vrot.slane %v1511, %v1595
        %v1597 = vlaneseq
        %v1598 = vshrl.u32 %v1597, 7
        %v1599 = vsub.s32 4, %v1598
        %v1600 = vrot.slane %v1511, %v1599
        %v1601 = vlaneseq
        %v1602 = vshrl.u32 %v1601, 7
        %v1603 = vsub.s32 5, %v1602
        %v1604 = vrot.slane %v1511, %v1603
        %v1605 = vlaneseq
        %v1606 = vshrl.u32 %v1605, 7
        %v1607 = vsub.s32 6, %v1606
        %v1608 = vrot.slane %v1511, %v1607
        %v1609 = vlaneseq
        %v1610 = vshrl.u32 %v1609, 7
        %v1611 = vsub.s32 7, %v1610
        %v1612 = vrot.slane %v1511, %v1611
        %v1613 = vlaneseq
        %v1614 = vshrl.u32 %v1613, 7
        %v1615 = vsub.s32 0, %v1614
        %v1616 = vrot.slane %v1512, %v1615
        %v1617 = vlaneseq
        %v1618 = vshrl.u32 %v1617, 7
        %v1619 = vsub.s32 1, %v1618
        %v1620 = vrot.slane %v1512, %v1619
        %v1621 = vlaneseq
        %v1622 = vshrl.u32 %v1621, 7
        %v1623 = vsub.s32 2, %v1622
        %v1624 = vrot.slane %v1512, %v1623
        %v1625 = vlaneseq
        %v1626 = vshrl.u32 %v1625, 7
        %v1627 = vsub.s32 3, %v1626
        %v1628 = vrot.slane %v1512, %v1627
        %v1629 = vlaneseq
        %v1630 = vshrl.u32 %v1629, 7
        %v1631 = vsub.s32 4, %v1630
        %v1632 = vrot.slane %v1512, %v1631
        %v1633 = vlaneseq
        %v1634 = vshrl.u32 %v1633, 7
        %v1635 = vsub.s32 5, %v1634
        %v1636 = vrot.slane %v1512, %v1635
        %v1637 = vlaneseq
        %v1638 = vshrl.u32 %v1637, 7
        %v1639 = vsub.s32 6, %v1638
        %v1640 = vrot.slane %v1512, %v1639
        %v1641 = vlaneseq
        %v1642 = vshrl.u32 %v1641, 7
        %v1643 = vsub.s32 7, %v1642
        %v1644 = vrot.slane %v1512, %v1643
        %v1677 = vmul.f32 %v1473, %v1520
        %v1678 = vmul.f32 %v1474, %v1524
        %v1679 = vmul.f32 %v1475, %v1528
        %v1680 = vmul.f32 %v1476, %v1532
        %v1681 = vmul.f32 %v1477, %v1536
        %v1682 = vmul.f32 %v1478, %v1540
        %v1683 = vmul.f32 %v1479, %v1544
        %v1684 = vmul.f32 %v1480, %v1548
        %v1685 = vmul.f32 %v1481, %v1552
        %v1686 = vmul.f32 %v1482, %v1556
        %v1687 = vmul.f32 %v1483, %v1560
        %v1688 = vmul.f32 %v1484, %v1564
        %v1689 = vmul.f32 %v1485, %v1568
        %v1690 = vmul.f32 %v1486, %v1572
        %v1691 = vmul.f32 %v1487, %v1576
        %v1692 = vmul.f32 %v1488, %v1580
        %v1693 = vmul.f32 %v1489, %v1584
        %v1694 = vmul.f32 %v1490, %v1588
        %v1695 = vmul.f32 %v1491, %v1592
        %v1696 = vmul.f32 %v1492, %v1596
        %v1697 = vmul.f32 %v1493, %v1600
        %v1698 = vmul.f32 %v1494, %v1604
        %v1699 = vmul.f32 %v1495, %v1608
        %v1700 = vmul.f32 %v1496, %v1612
        %v1701 = vmul.f32 %v1497, %v1616
        %v1702 = vmul.f32 %v1498, %v1620
        %v1703 = vmul.f32 %v1499, %v1624
        %v1704 = vmul.f32 %v1500, %v1628
        %v1705 = vmul.f32 %v1501, %v1632
        %v1706 = vmul.f32 %v1502, %v1636
        %v1707 = vmul.f32 %v1503, %v1640
        %v1708 = vmul.f32 %v1504, %v1644
        %v1709 = vmax.f32 %v977, 1e-20
        %v1710 = vmax.f32 %v978, 1e-20
        %v1711 = vmax.f32 %v979, 1e-20
        %v1712 = vmax.f32 %v980, 1e-20
        %v1713 = vmax.f32 %v981, 1e-20
        %v1714 = vmax.f32 %v982, 1e-20
        %v1715 = vmax.f32 %v983, 1e-20
        %v1716 = vmax.f32 %v984, 1e-20
        %v1717 = vmax.f32 %v985, 1e-20
        %v1718 = vmax.f32 %v986, 1e-20
        %v1719 = vmax.f32 %v987, 1e-20
        %v1720 = vmax.f32 %v988, 1e-20
        %v1721 = vmax.f32 %v989, 1e-20
        %v1722 = vmax.f32 %v990, 1e-20
        %v1723 = vmax.f32 %v991, 1e-20
        %v1724 = vmax.f32 %v992, 1e-20
        %v1725 = vrcp.pop %v1709
        %v1726 = vmul.f32 1.3637346e-05, %v1725
        %v1727 = vrcp.pop %v1710
        %v1728 = vmul.f32 1.3637346e-05, %v1727
        %v1729 = vrcp.pop %v1711
        %v1730 = vmul.f32 1.3637346e-05, %v1729
        %v1731 = vrcp.pop %v1712
        %v1732 = vmul.f32 1.3637346e-05, %v1731
        %v1733 = vrcp.pop %v1713
        %v1734 = vmul.f32 1.3637346e-05, %v1733
        %v1735 = vrcp.pop %v1714
        %v1736 = vmul.f32 1.3637346e-05, %v1735
        %v1737 = vrcp.pop %v1715
        %v1738 = vmul.f32 1.3637346e-05, %v1737
        %v1739 = vrcp.pop %v1716
        %v1740 = vmul.f32 1.3637346e-05, %v1739
        %v1741 = vrcp.pop %v1717
        %v1742 = vmul.f32 1.3637346e-05, %v1741
        %v1743 = vrcp.pop %v1718
        %v1744 = vmul.f32 1.3637346e-05, %v1743
        %v1745 = vrcp.pop %v1719
        %v1746 = vmul.f32 1.3637346e-05, %v1745
        %v1747 = vrcp.pop %v1720
        %v1748 = vmul.f32 1.3637346e-05, %v1747
        %v1749 = vrcp.pop %v1721
        %v1750 = vmul.f32 1.3637346e-05, %v1749
        %v1751 = vrcp.pop %v1722
        %v1752 = vmul.f32 1.3637346e-05, %v1751
        %v1753 = vrcp.pop %v1723
        %v1754 = vmul.f32 1.3637346e-05, %v1753
        %v1755 = vrcp.pop %v1724
        %v1756 = vmul.f32 1.3637346e-05, %v1755
        %v1773 = vlaneseq
        %v1774 = vshrl.u32 %v1773, 7
        %v1775 = vsub.s32 0, %v1774
        %v1776 = vrot.slane %v1726, %v1775
        %v1777 = vlaneseq
        %v1778 = vshrl.u32 %v1777, 7
        %v1779 = vsub.s32 4, %v1778
        %v1780 = vrot.slane %v1726, %v1779
        %v1781 = vlaneseq
        %v1782 = vshrl.u32 %v1781, 7
        %v1783 = vsub.s32 0, %v1782
        %v1784 = vrot.slane %v1728, %v1783
        %v1785 = vlaneseq
        %v1786 = vshrl.u32 %v1785, 7
        %v1787 = vsub.s32 4, %v1786
        %v1788 = vrot.slane %v1728, %v1787
        %v1789 = vlaneseq
        %v1790 = vshrl.u32 %v1789, 7
        %v1791 = vsub.s32 0, %v1790
        %v1792 = vrot.slane %v1730, %v1791
        %v1793 = vlaneseq
        %v1794 = vshrl.u32 %v1793, 7
        %v1795 = vsub.s32 4, %v1794
        %v1796 = vrot.slane %v1730, %v1795
        %v1797 = vlaneseq
        %v1798 = vshrl.u32 %v1797, 7
        %v1799 = vsub.s32 0, %v1798
        %v1800 = vrot.slane %v1732, %v1799
        %v1801 = vlaneseq
        %v1802 = vshrl.u32 %v1801, 7
        %v1803 = vsub.s32 4, %v1802
        %v1804 = vrot.slane %v1732, %v1803
        %v1805 = vlaneseq
        %v1806 = vshrl.u32 %v1805, 7
        %v1807 = vsub.s32 0, %v1806
        %v1808 = vrot.slane %v1734, %v1807
        %v1809 = vlaneseq
        %v1810 = vshrl.u32 %v1809, 7
        %v1811 = vsub.s32 4, %v1810
        %v1812 = vrot.slane %v1734, %v1811
        %v1813 = vlaneseq
        %v1814 = vshrl.u32 %v1813, 7
        %v1815 = vsub.s32 0, %v1814
        %v1816 = vrot.slane %v1736, %v1815
        %v1817 = vlaneseq
        %v1818 = vshrl.u32 %v1817, 7
        %v1819 = vsub.s32 4, %v1818
        %v1820 = vrot.slane %v1736, %v1819
        %v1821 = vlaneseq
        %v1822 = vshrl.u32 %v1821, 7
        %v1823 = vsub.s32 0, %v1822
        %v1824 = vrot.slane %v1738, %v1823
        %v1825 = vlaneseq
        %v1826 = vshrl.u32 %v1825, 7
        %v1827 = vsub.s32 4, %v1826
        %v1828 = vrot.slane %v1738, %v1827
        %v1829 = vlaneseq
        %v1830 = vshrl.u32 %v1829, 7
        %v1831 = vsub.s32 0, %v1830
        %v1832 = vrot.slane %v1740, %v1831
        %v1833 = vlaneseq
        %v1834 = vshrl.u32 %v1833, 7
        %v1835 = vsub.s32 4, %v1834
        %v1836 = vrot.slane %v1740, %v1835
        %v1837 = vlaneseq
        %v1838 = vshrl.u32 %v1837, 7
        %v1839 = vsub.s32 0, %v1838
        %v1840 = vrot.slane %v1742, %v1839
        %v1841 = vlaneseq
        %v1842 = vshrl.u32 %v1841, 7
        %v1843 = vsub.s32 4, %v1842
        %v1844 = vrot.slane %v1742, %v1843
        %v1845 = vlaneseq
        %v1846 = vshrl.u32 %v1845, 7
        %v1847 = vsub.s32 0, %v1846
        %v1848 = vrot.slane %v1744, %v1847
        %v1849 = vlaneseq
        %v1850 = vshrl.u32 %v1849, 7
        %v1851 = vsub.s32 4, %v1850
        %v1852 = vrot.slane %v1744, %v1851
        %v1853 = vlaneseq
        %v1854 = vshrl.u32 %v1853, 7
        %v1855 = vsub.s32 0, %v1854
        %v1856 = vrot.slane %v1746, %v1855
        %v1857 = vlaneseq
        %v1858 = vshrl.u32 %v1857, 7
        %v1859 = vsub.s32 4, %v1858
        %v1860 = vrot.slane %v1746, %v1859
        %v1861 = vlaneseq
        %v1862 = vshrl.u32 %v1861, 7
        %v1863 = vsub.s32 0, %v1862
        %v1864 = vrot.slane %v1748, %v1863
        %v1865 = vlaneseq
        %v1866 = vshrl.u32 %v1865, 7
        %v1867 = vsub.s32 4, %v1866
        %v1868 = vrot.slane %v1748, %v1867
        %v1869 = vlaneseq
        %v1870 = vshrl.u32 %v1869, 7
        %v1871 = vsub.s32 0, %v1870
        %v1872 = vrot.slane %v1750, %v1871
        %v1873 = vlaneseq
        %v1874 = vshrl.u32 %v1873, 7
        %v1875 = vsub.s32 4, %v1874
        %v1876 = vrot.slane %v1750, %v1875
        %v1877 = vlaneseq
        %v1878 = vshrl.u32 %v1877, 7
        %v1879 = vsub.s32 0, %v1878
        %v1880 = vrot.slane %v1752, %v1879
        %v1881 = vlaneseq
        %v1882 = vshrl.u32 %v1881, 7
        %v1883 = vsub.s32 4, %v1882
        %v1884 = vrot.slane %v1752, %v1883
        %v1885 = vlaneseq
        %v1886 = vshrl.u32 %v1885, 7
        %v1887 = vsub.s32 0, %v1886
        %v1888 = vrot.slane %v1754, %v1887
        %v1889 = vlaneseq
        %v1890 = vshrl.u32 %v1889, 7
        %v1891 = vsub.s32 4, %v1890
        %v1892 = vrot.slane %v1754, %v1891
        %v1893 = vlaneseq
        %v1894 = vshrl.u32 %v1893, 7
        %v1895 = vsub.s32 0, %v1894
        %v1896 = vrot.slane %v1756, %v1895
        %v1897 = vlaneseq
        %v1898 = vshrl.u32 %v1897, 7
        %v1899 = vsub.s32 4, %v1898
        %v1900 = vrot.slane %v1756, %v1899
        %v1933 = vmul.f32 %v1677, %v1776
        %v1934 = vmul.f32 %v1678, %v1780
        %v1935 = vmul.f32 %v1679, %v1784
        %v1936 = vmul.f32 %v1680, %v1788
        %v1937 = vmul.f32 %v1681, %v1792
        %v1938 = vmul.f32 %v1682, %v1796
        %v1939 = vmul.f32 %v1683, %v1800
        %v1940 = vmul.f32 %v1684, %v1804
        %v1941 = vmul.f32 %v1685, %v1808
        %v1942 = vmul.f32 %v1686, %v1812
        %v1943 = vmul.f32 %v1687, %v1816
        %v1944 = vmul.f32 %v1688, %v1820
        %v1945 = vmul.f32 %v1689, %v1824
        %v1946 = vmul.f32 %v1690, %v1828
        %v1947 = vmul.f32 %v1691, %v1832
        %v1948 = vmul.f32 %v1692, %v1836
        %v1949 = vmul.f32 %v1693, %v1840
        %v1950 = vmul.f32 %v1694, %v1844
        %v1951 = vmul.f32 %v1695, %v1848
        %v1952 = vmul.f32 %v1696, %v1852
        %v1953 = vmul.f32 %v1697, %v1856
        %v1954 = vmul.f32 %v1698, %v1860
        %v1955 = vmul.f32 %v1699, %v1864
        %v1956 = vmul.f32 %v1700, %v1868
        %v1957 = vmul.f32 %v1701, %v1872
        %v1958 = vmul.f32 %v1702, %v1876
        %v1959 = vmul.f32 %v1703, %v1880
        %v1960 = vmul.f32 %v1704, %v1884
        %v1961 = vmul.f32 %v1705, %v1888
        %v1962 = vmul.f32 %v1706, %v1892
        %v1963 = vmul.f32 %v1707, %v1896
        %v1964 = vmul.f32 %v1708, %v1900
        %v1997 = vcombine.low %v1933, %v1934
        %v1998 = vcombine.low %v1935, %v1936
        %v1999 = vcombine.low %v1937, %v1938
        %v2000 = vcombine.low %v1939, %v1940
        %v2001 = vcombine.low %v1941, %v1942
        %v2002 = vcombine.low %v1943, %v1944
        %v2003 = vcombine.low %v1945, %v1946
        %v2004 = vcombine.low %v1947, %v1948
        %v2005 = vcombine.low %v1949, %v1950
        %v2006 = vcombine.low %v1951, %v1952
        %v2007 = vcombine.low %v1953, %v1954
        %v2008 = vcombine.low %v1955, %v1956
        %v2009 = vcombine.low %v1957, %v1958
        %v2010 = vcombine.low %v1959, %v1960
        %v2011 = vcombine.low %v1961, %v1962
        %v2012 = vcombine.low %v1963, %v1964
        %v2029 = vsel %vm1281, %v1997, 0.0
        %v2030 = vsel %vm1282, %v1998, 0.0
        %v2031 = vsel %vm1283, %v1999, 0.0
        %v2032 = vsel %vm1284, %v2000, 0.0
        %v2033 = vsel %vm1285, %v2001, 0.0
        %v2034 = vsel %vm1286, %v2002, 0.0
        %v2035 = vsel %vm1287, %v2003, 0.0
        %v2036 = vsel %vm1288, %v2004, 0.0
        %v2037 = vsel %vm1289, %v2005, 0.0
        %v2038 = vsel %vm1290, %v2006, 0.0
        %v2039 = vsel %vm1291, %v2007, 0.0
        %v2040 = vsel %vm1292, %v2008, 0.0
        %v2041 = vsel %vm1293, %v2009, 0.0
        %v2042 = vsel %vm1294, %v2010, 0.0
        %v2043 = vsel %vm1295, %v2011, 0.0
        %v2044 = vsel %vm1296, %v2012, 0.0
        %v2045 = vadd.f32 %v833, %v866
        %v2046 = vadd.f32 %v834, %v868
        %v2047 = vadd.f32 %v835, %v870
        %v2048 = vadd.f32 %v836, %v872
        %v2049 = vadd.f32 %v837, %v874
        %v2050 = vadd.f32 %v838, %v876
        %v2051 = vadd.f32 %v839, %v878
        %v2052 = vadd.f32 %v840, %v880
        %v2053 = vadd.f32 %v841, %v882
        %v2054 = vadd.f32 %v842, %v884
        %v2055 = vadd.f32 %v843, %v886
        %v2056 = vadd.f32 %v844, %v888
        %v2057 = vadd.f32 %v845, %v890
        %v2058 = vadd.f32 %v846, %v892
        %v2059 = vadd.f32 %v847, %v894
        %v2060 = vadd.f32 %v848, %v896
        %v2061 = vadd.f32 %v2045, %v930
        %v2062 = vadd.f32 %v2046, %v932
        %v2063 = vadd.f32 %v2047, %v934
        %v2064 = vadd.f32 %v2048, %v936
        %v2065 = vadd.f32 %v2049, %v938
        %v2066 = vadd.f32 %v2050, %v940
        %v2067 = vadd.f32 %v2051, %v942
        %v2068 = vadd.f32 %v2052, %v944
        %v2069 = vadd.f32 %v2053, %v946
        %v2070 = vadd.f32 %v2054, %v948
        %v2071 = vadd.f32 %v2055, %v950
        %v2072 = vadd.f32 %v2056, %v952
        %v2073 = vadd.f32 %v2057, %v954
        %v2074 = vadd.f32 %v2058, %v956
        %v2075 = vadd.f32 %v2059, %v958
        %v2076 = vadd.f32 %v2060, %v960
        %v2077 = vrsqrt.pop %v2061
        %v2078 = vmul.f32 %v2061, %v2077
        %vm2079 = vcmp.eq.f32.partialorder %v2061, inf
        %v2080 = vsel %vm2079, %v2061, %v2078
        %vm2081 = vcmp.eq.f32.partialorder %v2061, 0.0
        %v2082 = vand.u32 %v2061, 2147483648
        %v2083 = vsel %vm2081, %v2082, %v2080
        %v2084 = vrsqrt.pop %v2062
        %v2085 = vmul.f32 %v2062, %v2084
        %vm2086 = vcmp.eq.f32.partialorder %v2062, inf
        %v2087 = vsel %vm2086, %v2062, %v2085
        %vm2088 = vcmp.eq.f32.partialorder %v2062, 0.0
        %v2089 = vand.u32 %v2062, 2147483648
        %v2090 = vsel %vm2088, %v2089, %v2087
        %v2091 = vrsqrt.pop %v2063
        %v2092 = vmul.f32 %v2063, %v2091
        %vm2093 = vcmp.eq.f32.partialorder %v2063, inf
        %v2094 = vsel %vm2093, %v2063, %v2092
        %vm2095 = vcmp.eq.f32.partialorder %v2063, 0.0
        %v2096 = vand.u32 %v2063, 2147483648
        %v2097 = vsel %vm2095, %v2096, %v2094
        %v2098 = vrsqrt.pop %v2064
        %v2099 = vmul.f32 %v2064, %v2098
        %vm2100 = vcmp.eq.f32.partialorder %v2064, inf
        %v2101 = vsel %vm2100, %v2064, %v2099
        %vm2102 = vcmp.eq.f32.partialorder %v2064, 0.0
        %v2103 = vand.u32 %v2064, 2147483648
        %v2104 = vsel %vm2102, %v2103, %v2101
        %v2105 = vrsqrt.pop %v2065
        %v2106 = vmul.f32 %v2065, %v2105
        %vm2107 = vcmp.eq.f32.partialorder %v2065, inf
        %v2108 = vsel %vm2107, %v2065, %v2106
        %vm2109 = vcmp.eq.f32.partialorder %v2065, 0.0
        %v2110 = vand.u32 %v2065, 2147483648
        %v2111 = vsel %vm2109, %v2110, %v2108
        %v2112 = vrsqrt.pop %v2066
        %v2113 = vmul.f32 %v2066, %v2112
        %vm2114 = vcmp.eq.f32.partialorder %v2066, inf
        %v2115 = vsel %vm2114, %v2066, %v2113
        %vm2116 = vcmp.eq.f32.partialorder %v2066, 0.0
        %v2117 = vand.u32 %v2066, 2147483648
        %v2118 = vsel %vm2116, %v2117, %v2115
        %v2119 = vrsqrt.pop %v2067
        %v2120 = vmul.f32 %v2067, %v2119
        %vm2121 = vcmp.eq.f32.partialorder %v2067, inf
        %v2122 = vsel %vm2121, %v2067, %v2120
        %vm2123 = vcmp.eq.f32.partialorder %v2067, 0.0
        %v2124 = vand.u32 %v2067, 2147483648
        %v2125 = vsel %vm2123, %v2124, %v2122
        %v2126 = vrsqrt.pop %v2068
        %v2127 = vmul.f32 %v2068, %v2126
        %vm2128 = vcmp.eq.f32.partialorder %v2068, inf
        %v2129 = vsel %vm2128, %v2068, %v2127
        %vm2130 = vcmp.eq.f32.partialorder %v2068, 0.0
        %v2131 = vand.u32 %v2068, 2147483648
        %v2132 = vsel %vm2130, %v2131, %v2129
        %v2133 = vrsqrt.pop %v2069
        %v2134 = vmul.f32 %v2069, %v2133
        %vm2135 = vcmp.eq.f32.partialorder %v2069, inf
        %v2136 = vsel %vm2135, %v2069, %v2134
        %vm2137 = vcmp.eq.f32.partialorder %v2069, 0.0
        %v2138 = vand.u32 %v2069, 2147483648
        %v2139 = vsel %vm2137, %v2138, %v2136
        %v2140 = vrsqrt.pop %v2070
        %v2141 = vmul.f32 %v2070, %v2140
        %vm2142 = vcmp.eq.f32.partialorder %v2070, inf
        %v2143 = vsel %vm2142, %v2070, %v2141
        %vm2144 = vcmp.eq.f32.partialorder %v2070, 0.0
        %v2145 = vand.u32 %v2070, 2147483648
        %v2146 = vsel %vm2144, %v2145, %v2143
        %v2147 = vrsqrt.pop %v2071
        %v2148 = vmul.f32 %v2071, %v2147
        %vm2149 = vcmp.eq.f32.partialorder %v2071, inf
        %v2150 = vsel %vm2149, %v2071, %v2148
        %vm2151 = vcmp.eq.f32.partialorder %v2071, 0.0
        %v2152 = vand.u32 %v2071, 2147483648
        %v2153 = vsel %vm2151, %v2152, %v2150
        %v2154 = vrsqrt.pop %v2072
        %v2155 = vmul.f32 %v2072, %v2154
        %vm2156 = vcmp.eq.f32.partialorder %v2072, inf
        %v2157 = vsel %vm2156, %v2072, %v2155
        %vm2158 = vcmp.eq.f32.partialorder %v2072, 0.0
        %v2159 = vand.u32 %v2072, 2147483648
        %v2160 = vsel %vm2158, %v2159, %v2157
        %v2161 = vrsqrt.pop %v2073
        %v2162 = vmul.f32 %v2073, %v2161
        %vm2163 = vcmp.eq.f32.partialorder %v2073, inf
        %v2164 = vsel %vm2163, %v2073, %v2162
        %vm2165 = vcmp.eq.f32.partialorder %v2073, 0.0
        %v2166 = vand.u32 %v2073, 2147483648
        %v2167 = vsel %vm2165, %v2166, %v2164
        %v2168 = vrsqrt.pop %v2074
        %v2169 = vmul.f32 %v2074, %v2168
        %vm2170 = vcmp.eq.f32.partialorder %v2074, inf
        %v2171 = vsel %vm2170, %v2074, %v2169
        %vm2172 = vcmp.eq.f32.partialorder %v2074, 0.0
        %v2173 = vand.u32 %v2074, 2147483648
        %v2174 = vsel %vm2172, %v2173, %v2171
        %v2175 = vrsqrt.pop %v2075
        %v2176 = vmul.f32 %v2075, %v2175
        %vm2177 = vcmp.eq.f32.partialorder %v2075, inf
        %v2178 = vsel %vm2177, %v2075, %v2176
        %vm2179 = vcmp.eq.f32.partialorder %v2075, 0.0
        %v2180 = vand.u32 %v2075, 2147483648
        %v2181 = vsel %vm2179, %v2180, %v2178
        %v2182 = vrsqrt.pop %v2076
        %v2183 = vmul.f32 %v2076, %v2182
        %vm2184 = vcmp.eq.f32.partialorder %v2076, inf
        %v2185 = vsel %vm2184, %v2076, %v2183
        %vm2186 = vcmp.eq.f32.partialorder %v2076, 0.0
        %v2187 = vand.u32 %v2076, 2147483648
        %v2188 = vsel %vm2186, %v2187, %v2185
        %v2189 = vadd.f32 %v2083, %v999
        %v2190 = vadd.f32 %v2090, %v1006
        %v2191 = vadd.f32 %v2097, %v1013
        %v2192 = vadd.f32 %v2104, %v1020
        %v2193 = vadd.f32 %v2111, %v1027
        %v2194 = vadd.f32 %v2118, %v1034
        %v2195 = vadd.f32 %v2125, %v1041
        %v2196 = vadd.f32 %v2132, %v1048
        %v2197 = vadd.f32 %v2139, %v1055
        %v2198 = vadd.f32 %v2146, %v1062
        %v2199 = vadd.f32 %v2153, %v1069
        %v2200 = vadd.f32 %v2160, %v1076
        %v2201 = vadd.f32 %v2167, %v1083
        %v2202 = vadd.f32 %v2174, %v1090
        %v2203 = vadd.f32 %v2181, %v1097
        %v2204 = vadd.f32 %v2188, %v1104
        %v2205 = vmul.f32 %v2189, 55.14706
        %v2206 = vmul.f32 %v2190, 55.14706
        %v2207 = vmul.f32 %v2191, 55.14706
        %v2208 = vmul.f32 %v2192, 55.14706
        %v2209 = vmul.f32 %v2193, 55.14706
        %v2210 = vmul.f32 %v2194, 55.14706
        %v2211 = vmul.f32 %v2195, 55.14706
        %v2212 = vmul.f32 %v2196, 55.14706
        %v2213 = vmul.f32 %v2197, 55.14706
        %v2214 = vmul.f32 %v2198, 55.14706
        %v2215 = vmul.f32 %v2199, 55.14706
        %v2216 = vmul.f32 %v2200, 55.14706
        %v2217 = vmul.f32 %v2201, 55.14706
        %v2218 = vmul.f32 %v2202, 55.14706
        %v2219 = vmul.f32 %v2203, 55.14706
        %v2220 = vmul.f32 %v2204, 55.14706
        %v2221 = vlaneseq
        %v2222 = vshrl.u32 %v2221, 7
        %v2223 = vadd.s32 %v2222, 8
        %v2224 = vadd.s32 %v2222, 16
        %v2225 = vadd.s32 %v2222, 24
        %v2226 = vadd.s32 %v2222, 32
        %v2227 = vadd.s32 %v2222, 40
        %v2228 = vadd.s32 %v2222, 48
        %v2229 = vadd.s32 %v2222, 56
        %v2230 = vadd.s32 %v2222, 64
        %v2231 = vcvt.s32.f32 %v2222
        %v2232 = vcvt.s32.f32 %v2223
        %v2233 = vcvt.s32.f32 %v2224
        %v2234 = vcvt.s32.f32 %v2225
        %v2235 = vcvt.s32.f32 %v2226
        %v2236 = vcvt.s32.f32 %v2227
        %v2237 = vcvt.s32.f32 %v2228
        %v2238 = vcvt.s32.f32 %v2229
        %v2239 = vcvt.s32.f32 %v2230
        %v2240 = vmul.f32 %v2231, 1.5
        %v2241 = vmul.f32 %v2232, 1.5
        %v2242 = vmul.f32 %v2233, 1.5
        %v2243 = vmul.f32 %v2234, 1.5
        %v2244 = vmul.f32 %v2235, 1.5
        %v2245 = vmul.f32 %v2236, 1.5
        %v2246 = vmul.f32 %v2237, 1.5
        %v2247 = vmul.f32 %v2238, 1.5
        %v2248 = vmul.f32 %v2239, 1.5
        %v2265 = vlaneseq
        %v2266 = vshrl.u32 %v2265, 7
        %v2267 = vsub.s32 0, %v2266
        %v2268 = vrot.slane %v2205, %v2267
        %v2269 = vlaneseq
        %v2270 = vshrl.u32 %v2269, 7
        %v2271 = vsub.s32 4, %v2270
        %v2272 = vrot.slane %v2205, %v2271
        %v2273 = vlaneseq
        %v2274 = vshrl.u32 %v2273, 7
        %v2275 = vsub.s32 0, %v2274
        %v2276 = vrot.slane %v2206, %v2275
        %v2277 = vlaneseq
        %v2278 = vshrl.u32 %v2277, 7
        %v2279 = vsub.s32 4, %v2278
        %v2280 = vrot.slane %v2206, %v2279
        %v2281 = vlaneseq
        %v2282 = vshrl.u32 %v2281, 7
        %v2283 = vsub.s32 0, %v2282
        %v2284 = vrot.slane %v2207, %v2283
        %v2285 = vlaneseq
        %v2286 = vshrl.u32 %v2285, 7
        %v2287 = vsub.s32 4, %v2286
        %v2288 = vrot.slane %v2207, %v2287
        %v2289 = vlaneseq
        %v2290 = vshrl.u32 %v2289, 7
        %v2291 = vsub.s32 0, %v2290
        %v2292 = vrot.slane %v2208, %v2291
        %v2293 = vlaneseq
        %v2294 = vshrl.u32 %v2293, 7
        %v2295 = vsub.s32 4, %v2294
        %v2296 = vrot.slane %v2208, %v2295
        %v2297 = vlaneseq
        %v2298 = vshrl.u32 %v2297, 7
        %v2299 = vsub.s32 0, %v2298
        %v2300 = vrot.slane %v2209, %v2299
        %v2301 = vlaneseq
        %v2302 = vshrl.u32 %v2301, 7
        %v2303 = vsub.s32 4, %v2302
        %v2304 = vrot.slane %v2209, %v2303
        %v2305 = vlaneseq
        %v2306 = vshrl.u32 %v2305, 7
        %v2307 = vsub.s32 0, %v2306
        %v2308 = vrot.slane %v2210, %v2307
        %v2309 = vlaneseq
        %v2310 = vshrl.u32 %v2309, 7
        %v2311 = vsub.s32 4, %v2310
        %v2312 = vrot.slane %v2210, %v2311
        %v2313 = vlaneseq
        %v2314 = vshrl.u32 %v2313, 7
        %v2315 = vsub.s32 0, %v2314
        %v2316 = vrot.slane %v2211, %v2315
        %v2317 = vlaneseq
        %v2318 = vshrl.u32 %v2317, 7
        %v2319 = vsub.s32 4, %v2318
        %v2320 = vrot.slane %v2211, %v2319
        %v2321 = vlaneseq
        %v2322 = vshrl.u32 %v2321, 7
        %v2323 = vsub.s32 0, %v2322
        %v2324 = vrot.slane %v2212, %v2323
        %v2325 = vlaneseq
        %v2326 = vshrl.u32 %v2325, 7
        %v2327 = vsub.s32 4, %v2326
        %v2328 = vrot.slane %v2212, %v2327
        %v2329 = vlaneseq
        %v2330 = vshrl.u32 %v2329, 7
        %v2331 = vsub.s32 0, %v2330
        %v2332 = vrot.slane %v2213, %v2331
        %v2333 = vlaneseq
        %v2334 = vshrl.u32 %v2333, 7
        %v2335 = vsub.s32 4, %v2334
        %v2336 = vrot.slane %v2213, %v2335
        %v2337 = vlaneseq
        %v2338 = vshrl.u32 %v2337, 7
        %v2339 = vsub.s32 0, %v2338
        %v2340 = vrot.slane %v2214, %v2339
        %v2341 = vlaneseq
        %v2342 = vshrl.u32 %v2341, 7
        %v2343 = vsub.s32 4, %v2342
        %v2344 = vrot.slane %v2214, %v2343
        %v2345 = vlaneseq
        %v2346 = vshrl.u32 %v2345, 7
        %v2347 = vsub.s32 0, %v2346
        %v2348 = vrot.slane %v2215, %v2347
        %v2349 = vlaneseq
        %v2350 = vshrl.u32 %v2349, 7
        %v2351 = vsub.s32 4, %v2350
        %v2352 = vrot.slane %v2215, %v2351
        %v2353 = vlaneseq
        %v2354 = vshrl.u32 %v2353, 7
        %v2355 = vsub.s32 0, %v2354
        %v2356 = vrot.slane %v2216, %v2355
        %v2357 = vlaneseq
        %v2358 = vshrl.u32 %v2357, 7
        %v2359 = vsub.s32 4, %v2358
        %v2360 = vrot.slane %v2216, %v2359
        %v2361 = vlaneseq
        %v2362 = vshrl.u32 %v2361, 7
        %v2363 = vsub.s32 0, %v2362
        %v2364 = vrot.slane %v2217, %v2363
        %v2365 = vlaneseq
        %v2366 = vshrl.u32 %v2365, 7
        %v2367 = vsub.s32 4, %v2366
        %v2368 = vrot.slane %v2217, %v2367
        %v2369 = vlaneseq
        %v2370 = vshrl.u32 %v2369, 7
        %v2371 = vsub.s32 0, %v2370
        %v2372 = vrot.slane %v2218, %v2371
        %v2373 = vlaneseq
        %v2374 = vshrl.u32 %v2373, 7
        %v2375 = vsub.s32 4, %v2374
        %v2376 = vrot.slane %v2218, %v2375
        %v2377 = vlaneseq
        %v2378 = vshrl.u32 %v2377, 7
        %v2379 = vsub.s32 0, %v2378
        %v2380 = vrot.slane %v2219, %v2379
        %v2381 = vlaneseq
        %v2382 = vshrl.u32 %v2381, 7
        %v2383 = vsub.s32 4, %v2382
        %v2384 = vrot.slane %v2219, %v2383
        %v2385 = vlaneseq
        %v2386 = vshrl.u32 %v2385, 7
        %v2387 = vsub.s32 0, %v2386
        %v2388 = vrot.slane %v2220, %v2387
        %v2389 = vlaneseq
        %v2390 = vshrl.u32 %v2389, 7
        %v2391 = vsub.s32 4, %v2390
        %v2392 = vrot.slane %v2220, %v2391
        %v2425 = vlaneseq
        %v2426 = vshrl.u32 %v2425, 7
        %v2427 = vsub.s32 0, %v2426
        %v2428 = vrot.slane %v2268, %v2427
        %v2429 = vlaneseq
        %v2430 = vshrl.u32 %v2429, 7
        %v2431 = vsub.s32 0, %v2430
        %v2432 = vrot.slane %v2272, %v2431
        %v2433 = vlaneseq
        %v2434 = vshrl.u32 %v2433, 7
        %v2435 = vsub.s32 0, %v2434
        %v2436 = vrot.slane %v2276, %v2435
        %v2437 = vlaneseq
        %v2438 = vshrl.u32 %v2437, 7
        %v2439 = vsub.s32 0, %v2438
        %v2440 = vrot.slane %v2280, %v2439
        %v2441 = vlaneseq
        %v2442 = vshrl.u32 %v2441, 7
        %v2443 = vsub.s32 0, %v2442
        %v2444 = vrot.slane %v2284, %v2443
        %v2445 = vlaneseq
        %v2446 = vshrl.u32 %v2445, 7
        %v2447 = vsub.s32 0, %v2446
        %v2448 = vrot.slane %v2288, %v2447
        %v2449 = vlaneseq
        %v2450 = vshrl.u32 %v2449, 7
        %v2451 = vsub.s32 0, %v2450
        %v2452 = vrot.slane %v2292, %v2451
        %v2453 = vlaneseq
        %v2454 = vshrl.u32 %v2453, 7
        %v2455 = vsub.s32 0, %v2454
        %v2456 = vrot.slane %v2296, %v2455
        %v2457 = vlaneseq
        %v2458 = vshrl.u32 %v2457, 7
        %v2459 = vsub.s32 0, %v2458
        %v2460 = vrot.slane %v2300, %v2459
        %v2461 = vlaneseq
        %v2462 = vshrl.u32 %v2461, 7
        %v2463 = vsub.s32 0, %v2462
        %v2464 = vrot.slane %v2304, %v2463
        %v2465 = vlaneseq
        %v2466 = vshrl.u32 %v2465, 7
        %v2467 = vsub.s32 0, %v2466
        %v2468 = vrot.slane %v2308, %v2467
        %v2469 = vlaneseq
        %v2470 = vshrl.u32 %v2469, 7
        %v2471 = vsub.s32 0, %v2470
        %v2472 = vrot.slane %v2312, %v2471
        %v2473 = vlaneseq
        %v2474 = vshrl.u32 %v2473, 7
        %v2475 = vsub.s32 0, %v2474
        %v2476 = vrot.slane %v2316, %v2475
        %v2477 = vlaneseq
        %v2478 = vshrl.u32 %v2477, 7
        %v2479 = vsub.s32 0, %v2478
        %v2480 = vrot.slane %v2320, %v2479
        %v2481 = vlaneseq
        %v2482 = vshrl.u32 %v2481, 7
        %v2483 = vsub.s32 0, %v2482
        %v2484 = vrot.slane %v2324, %v2483
        %v2485 = vlaneseq
        %v2486 = vshrl.u32 %v2485, 7
        %v2487 = vsub.s32 0, %v2486
        %v2488 = vrot.slane %v2328, %v2487
        %v2489 = vlaneseq
        %v2490 = vshrl.u32 %v2489, 7
        %v2491 = vsub.s32 0, %v2490
        %v2492 = vrot.slane %v2332, %v2491
        %v2493 = vlaneseq
        %v2494 = vshrl.u32 %v2493, 7
        %v2495 = vsub.s32 0, %v2494
        %v2496 = vrot.slane %v2336, %v2495
        %v2497 = vlaneseq
        %v2498 = vshrl.u32 %v2497, 7
        %v2499 = vsub.s32 0, %v2498
        %v2500 = vrot.slane %v2340, %v2499
        %v2501 = vlaneseq
        %v2502 = vshrl.u32 %v2501, 7
        %v2503 = vsub.s32 0, %v2502
        %v2504 = vrot.slane %v2344, %v2503
        %v2505 = vlaneseq
        %v2506 = vshrl.u32 %v2505, 7
        %v2507 = vsub.s32 0, %v2506
        %v2508 = vrot.slane %v2348, %v2507
        %v2509 = vlaneseq
        %v2510 = vshrl.u32 %v2509, 7
        %v2511 = vsub.s32 0, %v2510
        %v2512 = vrot.slane %v2352, %v2511
        %v2513 = vlaneseq
        %v2514 = vshrl.u32 %v2513, 7
        %v2515 = vsub.s32 0, %v2514
        %v2516 = vrot.slane %v2356, %v2515
        %v2517 = vlaneseq
        %v2518 = vshrl.u32 %v2517, 7
        %v2519 = vsub.s32 0, %v2518
        %v2520 = vrot.slane %v2360, %v2519
        %v2521 = vlaneseq
        %v2522 = vshrl.u32 %v2521, 7
        %v2523 = vsub.s32 0, %v2522
        %v2524 = vrot.slane %v2364, %v2523
        %v2525 = vlaneseq
        %v2526 = vshrl.u32 %v2525, 7
        %v2527 = vsub.s32 0, %v2526
        %v2528 = vrot.slane %v2368, %v2527
        %v2529 = vlaneseq
        %v2530 = vshrl.u32 %v2529, 7
        %v2531 = vsub.s32 0, %v2530
        %v2532 = vrot.slane %v2372, %v2531
        %v2533 = vlaneseq
        %v2534 = vshrl.u32 %v2533, 7
        %v2535 = vsub.s32 0, %v2534
        %v2536 = vrot.slane %v2376, %v2535
        %v2537 = vlaneseq
        %v2538 = vshrl.u32 %v2537, 7
        %v2539 = vsub.s32 0, %v2538
        %v2540 = vrot.slane %v2380, %v2539
        %v2541 = vlaneseq
        %v2542 = vshrl.u32 %v2541, 7
        %v2543 = vsub.s32 0, %v2542
        %v2544 = vrot.slane %v2384, %v2543
        %v2545 = vlaneseq
        %v2546 = vshrl.u32 %v2545, 7
        %v2547 = vsub.s32 0, %v2546
        %v2548 = vrot.slane %v2388, %v2547
        %v2549 = vlaneseq
        %v2550 = vshrl.u32 %v2549, 7
        %v2551 = vsub.s32 0, %v2550
        %v2552 = vrot.slane %v2392, %v2551
        %v2553 = vsub.f32 %v2428, %v2240
        %v2554 = vsub.f32 %v2432, %v2240
        %v2555 = vsub.f32 %v2436, %v2240
        %v2556 = vsub.f32 %v2440, %v2240
        %v2557 = vsub.f32 %v2444, %v2240
        %v2558 = vsub.f32 %v2448, %v2240
        %v2559 = vsub.f32 %v2452, %v2240
        %v2560 = vsub.f32 %v2456, %v2240
        %v2561 = vsub.f32 %v2460, %v2240
        %v2562 = vsub.f32 %v2464, %v2240
        %v2563 = vsub.f32 %v2468, %v2240
        %v2564 = vsub.f32 %v2472, %v2240
        %v2565 = vsub.f32 %v2476, %v2240
        %v2566 = vsub.f32 %v2480, %v2240
        %v2567 = vsub.f32 %v2484, %v2240
        %v2568 = vsub.f32 %v2488, %v2240
        %v2569 = vsub.f32 %v2492, %v2240
        %v2570 = vsub.f32 %v2496, %v2240
        %v2571 = vsub.f32 %v2500, %v2240
        %v2572 = vsub.f32 %v2504, %v2240
        %v2573 = vsub.f32 %v2508, %v2240
        %v2574 = vsub.f32 %v2512, %v2240
        %v2575 = vsub.f32 %v2516, %v2240
        %v2576 = vsub.f32 %v2520, %v2240
        %v2577 = vsub.f32 %v2524, %v2240
        %v2578 = vsub.f32 %v2528, %v2240
        %v2579 = vsub.f32 %v2532, %v2240
        %v2580 = vsub.f32 %v2536, %v2240
        %v2581 = vsub.f32 %v2540, %v2240
        %v2582 = vsub.f32 %v2544, %v2240
        %v2583 = vsub.f32 %v2548, %v2240
        %v2584 = vsub.f32 %v2552, %v2240
        %v2585 = vsub.f32 %v2428, %v2241
        %v2586 = vsub.f32 %v2432, %v2241
        %v2587 = vsub.f32 %v2436, %v2241
        %v2588 = vsub.f32 %v2440, %v2241
        %v2589 = vsub.f32 %v2444, %v2241
        %v2590 = vsub.f32 %v2448, %v2241
        %v2591 = vsub.f32 %v2452, %v2241
        %v2592 = vsub.f32 %v2456, %v2241
        %v2593 = vsub.f32 %v2460, %v2241
        %v2594 = vsub.f32 %v2464, %v2241
        %v2595 = vsub.f32 %v2468, %v2241
        %v2596 = vsub.f32 %v2472, %v2241
        %v2597 = vsub.f32 %v2476, %v2241
        %v2598 = vsub.f32 %v2480, %v2241
        %v2599 = vsub.f32 %v2484, %v2241
        %v2600 = vsub.f32 %v2488, %v2241
        %v2601 = vsub.f32 %v2492, %v2241
        %v2602 = vsub.f32 %v2496, %v2241
        %v2603 = vsub.f32 %v2500, %v2241
        %v2604 = vsub.f32 %v2504, %v2241
        %v2605 = vsub.f32 %v2508, %v2241
        %v2606 = vsub.f32 %v2512, %v2241
        %v2607 = vsub.f32 %v2516, %v2241
        %v2608 = vsub.f32 %v2520, %v2241
        %v2609 = vsub.f32 %v2524, %v2241
        %v2610 = vsub.f32 %v2528, %v2241
        %v2611 = vsub.f32 %v2532, %v2241
        %v2612 = vsub.f32 %v2536, %v2241
        %v2613 = vsub.f32 %v2540, %v2241
        %v2614 = vsub.f32 %v2544, %v2241
        %v2615 = vsub.f32 %v2548, %v2241
        %v2616 = vsub.f32 %v2552, %v2241
        %v2617 = vsub.f32 %v2428, %v2242
        %v2618 = vsub.f32 %v2432, %v2242
        %v2619 = vsub.f32 %v2436, %v2242
        %v2620 = vsub.f32 %v2440, %v2242
        %v2621 = vsub.f32 %v2444, %v2242
        %v2622 = vsub.f32 %v2448, %v2242
        %v2623 = vsub.f32 %v2452, %v2242
        %v2624 = vsub.f32 %v2456, %v2242
        %v2625 = vsub.f32 %v2460, %v2242
        %v2626 = vsub.f32 %v2464, %v2242
        %v2627 = vsub.f32 %v2468, %v2242
        %v2628 = vsub.f32 %v2472, %v2242
        %v2629 = vsub.f32 %v2476, %v2242
        %v2630 = vsub.f32 %v2480, %v2242
        %v2631 = vsub.f32 %v2484, %v2242
        %v2632 = vsub.f32 %v2488, %v2242
        %v2633 = vsub.f32 %v2492, %v2242
        %v2634 = vsub.f32 %v2496, %v2242
        %v2635 = vsub.f32 %v2500, %v2242
        %v2636 = vsub.f32 %v2504, %v2242
        %v2637 = vsub.f32 %v2508, %v2242
        %v2638 = vsub.f32 %v2512, %v2242
        %v2639 = vsub.f32 %v2516, %v2242
        %v2640 = vsub.f32 %v2520, %v2242
        %v2641 = vsub.f32 %v2524, %v2242
        %v2642 = vsub.f32 %v2528, %v2242
        %v2643 = vsub.f32 %v2532, %v2242
        %v2644 = vsub.f32 %v2536, %v2242
        %v2645 = vsub.f32 %v2540, %v2242
        %v2646 = vsub.f32 %v2544, %v2242
        %v2647 = vsub.f32 %v2548, %v2242
        %v2648 = vsub.f32 %v2552, %v2242
        %v2649 = vsub.f32 %v2428, %v2243
        %v2650 = vsub.f32 %v2432, %v2243
        %v2651 = vsub.f32 %v2436, %v2243
        %v2652 = vsub.f32 %v2440, %v2243
        %v2653 = vsub.f32 %v2444, %v2243
        %v2654 = vsub.f32 %v2448, %v2243
        %v2655 = vsub.f32 %v2452, %v2243
        %v2656 = vsub.f32 %v2456, %v2243
        %v2657 = vsub.f32 %v2460, %v2243
        %v2658 = vsub.f32 %v2464, %v2243
        %v2659 = vsub.f32 %v2468, %v2243
        %v2660 = vsub.f32 %v2472, %v2243
        %v2661 = vsub.f32 %v2476, %v2243
        %v2662 = vsub.f32 %v2480, %v2243
        %v2663 = vsub.f32 %v2484, %v2243
        %v2664 = vsub.f32 %v2488, %v2243
        %v2665 = vsub.f32 %v2492, %v2243
        %v2666 = vsub.f32 %v2496, %v2243
        %v2667 = vsub.f32 %v2500, %v2243
        %v2668 = vsub.f32 %v2504, %v2243
        %v2669 = vsub.f32 %v2508, %v2243
        %v2670 = vsub.f32 %v2512, %v2243
        %v2671 = vsub.f32 %v2516, %v2243
        %v2672 = vsub.f32 %v2520, %v2243
        %v2673 = vsub.f32 %v2524, %v2243
        %v2674 = vsub.f32 %v2528, %v2243
        %v2675 = vsub.f32 %v2532, %v2243
        %v2676 = vsub.f32 %v2536, %v2243
        %v2677 = vsub.f32 %v2540, %v2243
        %v2678 = vsub.f32 %v2544, %v2243
        %v2679 = vsub.f32 %v2548, %v2243
        %v2680 = vsub.f32 %v2552, %v2243
        %v2681 = vsub.f32 %v2428, %v2244
        %v2682 = vsub.f32 %v2432, %v2244
        %v2683 = vsub.f32 %v2436, %v2244
        %v2684 = vsub.f32 %v2440, %v2244
        %v2685 = vsub.f32 %v2444, %v2244
        %v2686 = vsub.f32 %v2448, %v2244
        %v2687 = vsub.f32 %v2452, %v2244
        %v2688 = vsub.f32 %v2456, %v2244
        %v2689 = vsub.f32 %v2460, %v2244
        %v2690 = vsub.f32 %v2464, %v2244
        %v2691 = vsub.f32 %v2468, %v2244
        %v2692 = vsub.f32 %v2472, %v2244
        %v2693 = vsub.f32 %v2476, %v2244
        %v2694 = vsub.f32 %v2480, %v2244
        %v2695 = vsub.f32 %v2484, %v2244
        %v2696 = vsub.f32 %v2488, %v2244
        %v2697 = vsub.f32 %v2492, %v2244
        %v2698 = vsub.f32 %v2496, %v2244
        %v2699 = vsub.f32 %v2500, %v2244
        %v2700 = vsub.f32 %v2504, %v2244
        %v2701 = vsub.f32 %v2508, %v2244
        %v2702 = vsub.f32 %v2512, %v2244
        %v2703 = vsub.f32 %v2516, %v2244
        %v2704 = vsub.f32 %v2520, %v2244
        %v2705 = vsub.f32 %v2524, %v2244
        %v2706 = vsub.f32 %v2528, %v2244
        %v2707 = vsub.f32 %v2532, %v2244
        %v2708 = vsub.f32 %v2536, %v2244
        %v2709 = vsub.f32 %v2540, %v2244
        %v2710 = vsub.f32 %v2544, %v2244
        %v2711 = vsub.f32 %v2548, %v2244
        %v2712 = vsub.f32 %v2552, %v2244
        %v2713 = vsub.f32 %v2428, %v2245
        %v2714 = vsub.f32 %v2432, %v2245
        %v2715 = vsub.f32 %v2436, %v2245
        %v2716 = vsub.f32 %v2440, %v2245
        %v2717 = vsub.f32 %v2444, %v2245
        %v2718 = vsub.f32 %v2448, %v2245
        %v2719 = vsub.f32 %v2452, %v2245
        %v2720 = vsub.f32 %v2456, %v2245
        %v2721 = vsub.f32 %v2460, %v2245
        %v2722 = vsub.f32 %v2464, %v2245
        %v2723 = vsub.f32 %v2468, %v2245
        %v2724 = vsub.f32 %v2472, %v2245
        %v2725 = vsub.f32 %v2476, %v2245
        %v2726 = vsub.f32 %v2480, %v2245
        %v2727 = vsub.f32 %v2484, %v2245
        %v2728 = vsub.f32 %v2488, %v2245
        %v2729 = vsub.f32 %v2492, %v2245
        %v2730 = vsub.f32 %v2496, %v2245
        %v2731 = vsub.f32 %v2500, %v2245
        %v2732 = vsub.f32 %v2504, %v2245
        %v2733 = vsub.f32 %v2508, %v2245
        %v2734 = vsub.f32 %v2512, %v2245
        %v2735 = vsub.f32 %v2516, %v2245
        %v2736 = vsub.f32 %v2520, %v2245
        %v2737 = vsub.f32 %v2524, %v2245
        %v2738 = vsub.f32 %v2528, %v2245
        %v2739 = vsub.f32 %v2532, %v2245
        %v2740 = vsub.f32 %v2536, %v2245
        %v2741 = vsub.f32 %v2540, %v2245
        %v2742 = vsub.f32 %v2544, %v2245
        %v2743 = vsub.f32 %v2548, %v2245
        %v2744 = vsub.f32 %v2552, %v2245
        %v2745 = vsub.f32 %v2428, %v2246
        %v2746 = vsub.f32 %v2432, %v2246
        %v2747 = vsub.f32 %v2436, %v2246
        %v2748 = vsub.f32 %v2440, %v2246
        %v2749 = vsub.f32 %v2444, %v2246
        %v2750 = vsub.f32 %v2448, %v2246
        %v2751 = vsub.f32 %v2452, %v2246
        %v2752 = vsub.f32 %v2456, %v2246
        %v2753 = vsub.f32 %v2460, %v2246
        %v2754 = vsub.f32 %v2464, %v2246
        %v2755 = vsub.f32 %v2468, %v2246
        %v2756 = vsub.f32 %v2472, %v2246
        %v2757 = vsub.f32 %v2476, %v2246
        %v2758 = vsub.f32 %v2480, %v2246
        %v2759 = vsub.f32 %v2484, %v2246
        %v2760 = vsub.f32 %v2488, %v2246
        %v2761 = vsub.f32 %v2492, %v2246
        %v2762 = vsub.f32 %v2496, %v2246
        %v2763 = vsub.f32 %v2500, %v2246
        %v2764 = vsub.f32 %v2504, %v2246
        %v2765 = vsub.f32 %v2508, %v2246
        %v2766 = vsub.f32 %v2512, %v2246
        %v2767 = vsub.f32 %v2516, %v2246
        %v2768 = vsub.f32 %v2520, %v2246
        %v2769 = vsub.f32 %v2524, %v2246
        %v2770 = vsub.f32 %v2528, %v2246
        %v2771 = vsub.f32 %v2532, %v2246
        %v2772 = vsub.f32 %v2536, %v2246
        %v2773 = vsub.f32 %v2540, %v2246
        %v2774 = vsub.f32 %v2544, %v2246
        %v2775 = vsub.f32 %v2548, %v2246
        %v2776 = vsub.f32 %v2552, %v2246
        %v2777 = vsub.f32 %v2428, %v2247
        %v2778 = vsub.f32 %v2432, %v2247
        %v2779 = vsub.f32 %v2436, %v2247
        %v2780 = vsub.f32 %v2440, %v2247
        %v2781 = vsub.f32 %v2444, %v2247
        %v2782 = vsub.f32 %v2448, %v2247
        %v2783 = vsub.f32 %v2452, %v2247
        %v2784 = vsub.f32 %v2456, %v2247
        %v2785 = vsub.f32 %v2460, %v2247
        %v2786 = vsub.f32 %v2464, %v2247
        %v2787 = vsub.f32 %v2468, %v2247
        %v2788 = vsub.f32 %v2472, %v2247
        %v2789 = vsub.f32 %v2476, %v2247
        %v2790 = vsub.f32 %v2480, %v2247
        %v2791 = vsub.f32 %v2484, %v2247
        %v2792 = vsub.f32 %v2488, %v2247
        %v2793 = vsub.f32 %v2492, %v2247
        %v2794 = vsub.f32 %v2496, %v2247
        %v2795 = vsub.f32 %v2500, %v2247
        %v2796 = vsub.f32 %v2504, %v2247
        %v2797 = vsub.f32 %v2508, %v2247
        %v2798 = vsub.f32 %v2512, %v2247
        %v2799 = vsub.f32 %v2516, %v2247
        %v2800 = vsub.f32 %v2520, %v2247
        %v2801 = vsub.f32 %v2524, %v2247
        %v2802 = vsub.f32 %v2528, %v2247
        %v2803 = vsub.f32 %v2532, %v2247
        %v2804 = vsub.f32 %v2536, %v2247
        %v2805 = vsub.f32 %v2540, %v2247
        %v2806 = vsub.f32 %v2544, %v2247
        %v2807 = vsub.f32 %v2548, %v2247
        %v2808 = vsub.f32 %v2552, %v2247
        %v2809 = vsub.f32 %v2428, %v2248
        %v2810 = vsub.f32 %v2432, %v2248
        %v2811 = vsub.f32 %v2436, %v2248
        %v2812 = vsub.f32 %v2440, %v2248
        %v2813 = vsub.f32 %v2444, %v2248
        %v2814 = vsub.f32 %v2448, %v2248
        %v2815 = vsub.f32 %v2452, %v2248
        %v2816 = vsub.f32 %v2456, %v2248
        %v2817 = vsub.f32 %v2460, %v2248
        %v2818 = vsub.f32 %v2464, %v2248
        %v2819 = vsub.f32 %v2468, %v2248
        %v2820 = vsub.f32 %v2472, %v2248
        %v2821 = vsub.f32 %v2476, %v2248
        %v2822 = vsub.f32 %v2480, %v2248
        %v2823 = vsub.f32 %v2484, %v2248
        %v2824 = vsub.f32 %v2488, %v2248
        %v2825 = vsub.f32 %v2492, %v2248
        %v2826 = vsub.f32 %v2496, %v2248
        %v2827 = vsub.f32 %v2500, %v2248
        %v2828 = vsub.f32 %v2504, %v2248
        %v2829 = vsub.f32 %v2508, %v2248
        %v2830 = vsub.f32 %v2512, %v2248
        %v2831 = vsub.f32 %v2516, %v2248
        %v2832 = vsub.f32 %v2520, %v2248
        %v2833 = vsub.f32 %v2524, %v2248
        %v2834 = vsub.f32 %v2528, %v2248
        %v2835 = vsub.f32 %v2532, %v2248
        %v2836 = vsub.f32 %v2536, %v2248
        %v2837 = vsub.f32 %v2540, %v2248
        %v2838 = vsub.f32 %v2544, %v2248
        %v2839 = vsub.f32 %v2548, %v2248
        %v2840 = vsub.f32 %v2552, %v2248
        %v2841 = vtanh.pop %v2553
        %v2842 = vtanh.pop %v2554
        %v2843 = vtanh.pop %v2555
        %v2844 = vtanh.pop %v2556
        %v2845 = vtanh.pop %v2557
        %v2846 = vtanh.pop %v2558
        %v2847 = vtanh.pop %v2559
        %v2848 = vtanh.pop %v2560
        %v2849 = vtanh.pop %v2561
        %v2850 = vtanh.pop %v2562
        %v2851 = vtanh.pop %v2563
        %v2852 = vtanh.pop %v2564
        %v2853 = vtanh.pop %v2565
        %v2854 = vtanh.pop %v2566
        %v2855 = vtanh.pop %v2567
        %v2856 = vtanh.pop %v2568
        %v2857 = vtanh.pop %v2569
        %v2858 = vtanh.pop %v2570
        %v2859 = vtanh.pop %v2571
        %v2860 = vtanh.pop %v2572
        %v2861 = vtanh.pop %v2573
        %v2862 = vtanh.pop %v2574
        %v2863 = vtanh.pop %v2575
        %v2864 = vtanh.pop %v2576
        %v2865 = vtanh.pop %v2577
        %v2866 = vtanh.pop %v2578
        %v2867 = vtanh.pop %v2579
        %v2868 = vtanh.pop %v2580
        %v2869 = vtanh.pop %v2581
        %v2870 = vtanh.pop %v2582
        %v2871 = vtanh.pop %v2583
        %v2872 = vtanh.pop %v2584
        %v2873 = vtanh.pop %v2585
        %v2874 = vtanh.pop %v2586
        %v2875 = vtanh.pop %v2587
        %v2876 = vtanh.pop %v2588
        %v2877 = vtanh.pop %v2589
        %v2878 = vtanh.pop %v2590
        %v2879 = vtanh.pop %v2591
        %v2880 = vtanh.pop %v2592
        %v2881 = vtanh.pop %v2593
        %v2882 = vtanh.pop %v2594
        %v2883 = vtanh.pop %v2595
        %v2884 = vtanh.pop %v2596
        %v2885 = vtanh.pop %v2597
        %v2886 = vtanh.pop %v2598
        %v2887 = vtanh.pop %v2599
        %v2888 = vtanh.pop %v2600
        %v2889 = vtanh.pop %v2601
        %v2890 = vtanh.pop %v2602
        %v2891 = vtanh.pop %v2603
        %v2892 = vtanh.pop %v2604
        %v2893 = vtanh.pop %v2605
        %v2894 = vtanh.pop %v2606
        %v2895 = vtanh.pop %v2607
        %v2896 = vtanh.pop %v2608
        %v2897 = vtanh.pop %v2609
        %v2898 = vtanh.pop %v2610
        %v2899 = vtanh.pop %v2611
        %v2900 = vtanh.pop %v2612
        %v2901 = vtanh.pop %v2613
        %v2902 = vtanh.pop %v2614
        %v2903 = vtanh.pop %v2615
        %v2904 = vtanh.pop %v2616
        %v2905 = vtanh.pop %v2617
        %v2906 = vtanh.pop %v2618
        %v2907 = vtanh.pop %v2619
        %v2908 = vtanh.pop %v2620
        %v2909 = vtanh.pop %v2621
        %v2910 = vtanh.pop %v2622
        %v2911 = vtanh.pop %v2623
        %v2912 = vtanh.pop %v2624
        %v2913 = vtanh.pop %v2625
        %v2914 = vtanh.pop %v2626
        %v2915 = vtanh.pop %v2627
        %v2916 = vtanh.pop %v2628
        %v2917 = vtanh.pop %v2629
        %v2918 = vtanh.pop %v2630
        %v2919 = vtanh.pop %v2631
        %v2920 = vtanh.pop %v2632
        %v2921 = vtanh.pop %v2633
        %v2922 = vtanh.pop %v2634
        %v2923 = vtanh.pop %v2635
        %v2924 = vtanh.pop %v2636
        %v2925 = vtanh.pop %v2637
        %v2926 = vtanh.pop %v2638
        %v2927 = vtanh.pop %v2639
        %v2928 = vtanh.pop %v2640
        %v2929 = vtanh.pop %v2641
        %v2930 = vtanh.pop %v2642
        %v2931 = vtanh.pop %v2643
        %v2932 = vtanh.pop %v2644
        %v2933 = vtanh.pop %v2645
        %v2934 = vtanh.pop %v2646
        %v2935 = vtanh.pop %v2647
        %v2936 = vtanh.pop %v2648
        %v2937 = vtanh.pop %v2649
        %v2938 = vtanh.pop %v2650
        %v2939 = vtanh.pop %v2651
        %v2940 = vtanh.pop %v2652
        %v2941 = vtanh.pop %v2653
        %v2942 = vtanh.pop %v2654
        %v2943 = vtanh.pop %v2655
        %v2944 = vtanh.pop %v2656
        %v2945 = vtanh.pop %v2657
        %v2946 = vtanh.pop %v2658
        %v2947 = vtanh.pop %v2659
        %v2948 = vtanh.pop %v2660
        %v2949 = vtanh.pop %v2661
        %v2950 = vtanh.pop %v2662
        %v2951 = vtanh.pop %v2663
        %v2952 = vtanh.pop %v2664
        %v2953 = vtanh.pop %v2665
        %v2954 = vtanh.pop %v2666
        %v2955 = vtanh.pop %v2667
        %v2956 = vtanh.pop %v2668
        %v2957 = vtanh.pop %v2669
        %v2958 = vtanh.pop %v2670
        %v2959 = vtanh.pop %v2671
        %v2960 = vtanh.pop %v2672
        %v2961 = vtanh.pop %v2673
        %v2962 = vtanh.pop %v2674
        %v2963 = vtanh.pop %v2675
        %v2964 = vtanh.pop %v2676
        %v2965 = vtanh.pop %v2677
        %v2966 = vtanh.pop %v2678
        %v2967 = vtanh.pop %v2679
        %v2968 = vtanh.pop %v2680
        %v2969 = vtanh.pop %v2681
        %v2970 = vtanh.pop %v2682
        %v2971 = vtanh.pop %v2683
        %v2972 = vtanh.pop %v2684
        %v2973 = vtanh.pop %v2685
        %v2974 = vtanh.pop %v2686
        %v2975 = vtanh.pop %v2687
        %v2976 = vtanh.pop %v2688
        %v2977 = vtanh.pop %v2689
        %v2978 = vtanh.pop %v2690
        %v2979 = vtanh.pop %v2691
        %v2980 = vtanh.pop %v2692
        %v2981 = vtanh.pop %v2693
        %v2982 = vtanh.pop %v2694
        %v2983 = vtanh.pop %v2695
        %v2984 = vtanh.pop %v2696
        %v2985 = vtanh.pop %v2697
        %v2986 = vtanh.pop %v2698
        %v2987 = vtanh.pop %v2699
        %v2988 = vtanh.pop %v2700
        %v2989 = vtanh.pop %v2701
        %v2990 = vtanh.pop %v2702
        %v2991 = vtanh.pop %v2703
        %v2992 = vtanh.pop %v2704
        %v2993 = vtanh.pop %v2705
        %v2994 = vtanh.pop %v2706
        %v2995 = vtanh.pop %v2707
        %v2996 = vtanh.pop %v2708
        %v2997 = vtanh.pop %v2709
        %v2998 = vtanh.pop %v2710
        %v2999 = vtanh.pop %v2711
        %v3000 = vtanh.pop %v2712
        %v3001 = vtanh.pop %v2713
        %v3002 = vtanh.pop %v2714
        %v3003 = vtanh.pop %v2715
        %v3004 = vtanh.pop %v2716
        %v3005 = vtanh.pop %v2717
        %v3006 = vtanh.pop %v2718
        %v3007 = vtanh.pop %v2719
        %v3008 = vtanh.pop %v2720
        %v3009 = vtanh.pop %v2721
        %v3010 = vtanh.pop %v2722
        %v3011 = vtanh.pop %v2723
        %v3012 = vtanh.pop %v2724
        %v3013 = vtanh.pop %v2725
        %v3014 = vtanh.pop %v2726
        %v3015 = vtanh.pop %v2727
        %v3016 = vtanh.pop %v2728
        %v3017 = vtanh.pop %v2729
        %v3018 = vtanh.pop %v2730
        %v3019 = vtanh.pop %v2731
        %v3020 = vtanh.pop %v2732
        %v3021 = vtanh.pop %v2733
        %v3022 = vtanh.pop %v2734
        %v3023 = vtanh.pop %v2735
        %v3024 = vtanh.pop %v2736
        %v3025 = vtanh.pop %v2737
        %v3026 = vtanh.pop %v2738
        %v3027 = vtanh.pop %v2739
        %v3028 = vtanh.pop %v2740
        %v3029 = vtanh.pop %v2741
        %v3030 = vtanh.pop %v2742
        %v3031 = vtanh.pop %v2743
        %v3032 = vtanh.pop %v2744
        %v3033 = vtanh.pop %v2745
        %v3034 = vtanh.pop %v2746
        %v3035 = vtanh.pop %v2747
        %v3036 = vtanh.pop %v2748
        %v3037 = vtanh.pop %v2749
        %v3038 = vtanh.pop %v2750
        %v3039 = vtanh.pop %v2751
        %v3040 = vtanh.pop %v2752
        %v3041 = vtanh.pop %v2753
        %v3042 = vtanh.pop %v2754
        %v3043 = vtanh.pop %v2755
        %v3044 = vtanh.pop %v2756
        %v3045 = vtanh.pop %v2757
        %v3046 = vtanh.pop %v2758
        %v3047 = vtanh.pop %v2759
        %v3048 = vtanh.pop %v2760
        %v3049 = vtanh.pop %v2761
        %v3050 = vtanh.pop %v2762
        %v3051 = vtanh.pop %v2763
        %v3052 = vtanh.pop %v2764
        %v3053 = vtanh.pop %v2765
        %v3054 = vtanh.pop %v2766
        %v3055 = vtanh.pop %v2767
        %v3056 = vtanh.pop %v2768
        %v3057 = vtanh.pop %v2769
        %v3058 = vtanh.pop %v2770
        %v3059 = vtanh.pop %v2771
        %v3060 = vtanh.pop %v2772
        %v3061 = vtanh.pop %v2773
        %v3062 = vtanh.pop %v2774
        %v3063 = vtanh.pop %v2775
        %v3064 = vtanh.pop %v2776
        %v3065 = vtanh.pop %v2777
        %v3066 = vtanh.pop %v2778
        %v3067 = vtanh.pop %v2779
        %v3068 = vtanh.pop %v2780
        %v3069 = vtanh.pop %v2781
        %v3070 = vtanh.pop %v2782
        %v3071 = vtanh.pop %v2783
        %v3072 = vtanh.pop %v2784
        %v3073 = vtanh.pop %v2785
        %v3074 = vtanh.pop %v2786
        %v3075 = vtanh.pop %v2787
        %v3076 = vtanh.pop %v2788
        %v3077 = vtanh.pop %v2789
        %v3078 = vtanh.pop %v2790
        %v3079 = vtanh.pop %v2791
        %v3080 = vtanh.pop %v2792
        %v3081 = vtanh.pop %v2793
        %v3082 = vtanh.pop %v2794
        %v3083 = vtanh.pop %v2795
        %v3084 = vtanh.pop %v2796
        %v3085 = vtanh.pop %v2797
        %v3086 = vtanh.pop %v2798
        %v3087 = vtanh.pop %v2799
        %v3088 = vtanh.pop %v2800
        %v3089 = vtanh.pop %v2801
        %v3090 = vtanh.pop %v2802
        %v3091 = vtanh.pop %v2803
        %v3092 = vtanh.pop %v2804
        %v3093 = vtanh.pop %v2805
        %v3094 = vtanh.pop %v2806
        %v3095 = vtanh.pop %v2807
        %v3096 = vtanh.pop %v2808
        %v3097 = vtanh.pop %v2809
        %v3098 = vtanh.pop %v2810
        %v3099 = vtanh.pop %v2811
        %v3100 = vtanh.pop %v2812
        %v3101 = vtanh.pop %v2813
        %v3102 = vtanh.pop %v2814
        %v3103 = vtanh.pop %v2815
        %v3104 = vtanh.pop %v2816
        %v3105 = vtanh.pop %v2817
        %v3106 = vtanh.pop %v2818
        %v3107 = vtanh.pop %v2819
        %v3108 = vtanh.pop %v2820
        %v3109 = vtanh.pop %v2821
        %v3110 = vtanh.pop %v2822
        %v3111 = vtanh.pop %v2823
        %v3112 = vtanh.pop %v2824
        %v3113 = vtanh.pop %v2825
        %v3114 = vtanh.pop %v2826
        %v3115 = vtanh.pop %v2827
        %v3116 = vtanh.pop %v2828
        %v3117 = vtanh.pop %v2829
        %v3118 = vtanh.pop %v2830
        %v3119 = vtanh.pop %v2831
        %v3120 = vtanh.pop %v2832
        %v3121 = vtanh.pop %v2833
        %v3122 = vtanh.pop %v2834
        %v3123 = vtanh.pop %v2835
        %v3124 = vtanh.pop %v2836
        %v3125 = vtanh.pop %v2837
        %v3126 = vtanh.pop %v2838
        %v3127 = vtanh.pop %v2839
        %v3128 = vtanh.pop %v2840
        %vm3417 = vcmask 1046528
        %v3418 = vrot.slane %v2841, 1
        %v3419 = vrot.slane %v2873, 1
        %v3420 = vsel %vm3417, %v3418, %v3419
        %v3421 = vrot.slane %v2842, 1
        %v3422 = vrot.slane %v2874, 1
        %v3423 = vsel %vm3417, %v3421, %v3422
        %v3424 = vrot.slane %v2843, 1
        %v3425 = vrot.slane %v2875, 1
        %v3426 = vsel %vm3417, %v3424, %v3425
        %v3427 = vrot.slane %v2844, 1
        %v3428 = vrot.slane %v2876, 1
        %v3429 = vsel %vm3417, %v3427, %v3428
        %v3430 = vrot.slane %v2845, 1
        %v3431 = vrot.slane %v2877, 1
        %v3432 = vsel %vm3417, %v3430, %v3431
        %v3433 = vrot.slane %v2846, 1
        %v3434 = vrot.slane %v2878, 1
        %v3435 = vsel %vm3417, %v3433, %v3434
        %v3436 = vrot.slane %v2847, 1
        %v3437 = vrot.slane %v2879, 1
        %v3438 = vsel %vm3417, %v3436, %v3437
        %v3439 = vrot.slane %v2848, 1
        %v3440 = vrot.slane %v2880, 1
        %v3441 = vsel %vm3417, %v3439, %v3440
        %v3442 = vrot.slane %v2849, 1
        %v3443 = vrot.slane %v2881, 1
        %v3444 = vsel %vm3417, %v3442, %v3443
        %v3445 = vrot.slane %v2850, 1
        %v3446 = vrot.slane %v2882, 1
        %v3447 = vsel %vm3417, %v3445, %v3446
        %v3448 = vrot.slane %v2851, 1
        %v3449 = vrot.slane %v2883, 1
        %v3450 = vsel %vm3417, %v3448, %v3449
        %v3451 = vrot.slane %v2852, 1
        %v3452 = vrot.slane %v2884, 1
        %v3453 = vsel %vm3417, %v3451, %v3452
        %v3454 = vrot.slane %v2853, 1
        %v3455 = vrot.slane %v2885, 1
        %v3456 = vsel %vm3417, %v3454, %v3455
        %v3457 = vrot.slane %v2854, 1
        %v3458 = vrot.slane %v2886, 1
        %v3459 = vsel %vm3417, %v3457, %v3458
        %v3460 = vrot.slane %v2855, 1
        %v3461 = vrot.slane %v2887, 1
        %v3462 = vsel %vm3417, %v3460, %v3461
        %v3463 = vrot.slane %v2856, 1
        %v3464 = vrot.slane %v2888, 1
        %v3465 = vsel %vm3417, %v3463, %v3464
        %v3466 = vrot.slane %v2857, 1
        %v3467 = vrot.slane %v2889, 1
        %v3468 = vsel %vm3417, %v3466, %v3467
        %v3469 = vrot.slane %v2858, 1
        %v3470 = vrot.slane %v2890, 1
        %v3471 = vsel %vm3417, %v3469, %v3470
        %v3472 = vrot.slane %v2859, 1
        %v3473 = vrot.slane %v2891, 1
        %v3474 = vsel %vm3417, %v3472, %v3473
        %v3475 = vrot.slane %v2860, 1
        %v3476 = vrot.slane %v2892, 1
        %v3477 = vsel %vm3417, %v3475, %v3476
        %v3478 = vrot.slane %v2861, 1
        %v3479 = vrot.slane %v2893, 1
        %v3480 = vsel %vm3417, %v3478, %v3479
        %v3481 = vrot.slane %v2862, 1
        %v3482 = vrot.slane %v2894, 1
        %v3483 = vsel %vm3417, %v3481, %v3482
        %v3484 = vrot.slane %v2863, 1
        %v3485 = vrot.slane %v2895, 1
        %v3486 = vsel %vm3417, %v3484, %v3485
        %v3487 = vrot.slane %v2864, 1
        %v3488 = vrot.slane %v2896, 1
        %v3489 = vsel %vm3417, %v3487, %v3488
        %v3490 = vrot.slane %v2865, 1
        %v3491 = vrot.slane %v2897, 1
        %v3492 = vsel %vm3417, %v3490, %v3491
        %v3493 = vrot.slane %v2866, 1
        %v3494 = vrot.slane %v2898, 1
        %v3495 = vsel %vm3417, %v3493, %v3494
        %v3496 = vrot.slane %v2867, 1
        %v3497 = vrot.slane %v2899, 1
        %v3498 = vsel %vm3417, %v3496, %v3497
        %v3499 = vrot.slane %v2868, 1
        %v3500 = vrot.slane %v2900, 1
        %v3501 = vsel %vm3417, %v3499, %v3500
        %v3502 = vrot.slane %v2869, 1
        %v3503 = vrot.slane %v2901, 1
        %v3504 = vsel %vm3417, %v3502, %v3503
        %v3505 = vrot.slane %v2870, 1
        %v3506 = vrot.slane %v2902, 1
        %v3507 = vsel %vm3417, %v3505, %v3506
        %v3508 = vrot.slane %v2871, 1
        %v3509 = vrot.slane %v2903, 1
        %v3510 = vsel %vm3417, %v3508, %v3509
        %v3511 = vrot.slane %v2872, 1
        %v3512 = vrot.slane %v2904, 1
        %v3513 = vsel %vm3417, %v3511, %v3512
        %v3514 = vrot.slane %v2905, 1
        %v3515 = vsel %vm3417, %v3419, %v3514
        %v3516 = vrot.slane %v2906, 1
        %v3517 = vsel %vm3417, %v3422, %v3516
        %v3518 = vrot.slane %v2907, 1
        %v3519 = vsel %vm3417, %v3425, %v3518
        %v3520 = vrot.slane %v2908, 1
        %v3521 = vsel %vm3417, %v3428, %v3520
        %v3522 = vrot.slane %v2909, 1
        %v3523 = vsel %vm3417, %v3431, %v3522
        %v3524 = vrot.slane %v2910, 1
        %v3525 = vsel %vm3417, %v3434, %v3524
        %v3526 = vrot.slane %v2911, 1
        %v3527 = vsel %vm3417, %v3437, %v3526
        %v3528 = vrot.slane %v2912, 1
        %v3529 = vsel %vm3417, %v3440, %v3528
        %v3530 = vrot.slane %v2913, 1
        %v3531 = vsel %vm3417, %v3443, %v3530
        %v3532 = vrot.slane %v2914, 1
        %v3533 = vsel %vm3417, %v3446, %v3532
        %v3534 = vrot.slane %v2915, 1
        %v3535 = vsel %vm3417, %v3449, %v3534
        %v3536 = vrot.slane %v2916, 1
        %v3537 = vsel %vm3417, %v3452, %v3536
        %v3538 = vrot.slane %v2917, 1
        %v3539 = vsel %vm3417, %v3455, %v3538
        %v3540 = vrot.slane %v2918, 1
        %v3541 = vsel %vm3417, %v3458, %v3540
        %v3542 = vrot.slane %v2919, 1
        %v3543 = vsel %vm3417, %v3461, %v3542
        %v3544 = vrot.slane %v2920, 1
        %v3545 = vsel %vm3417, %v3464, %v3544
        %v3546 = vrot.slane %v2921, 1
        %v3547 = vsel %vm3417, %v3467, %v3546
        %v3548 = vrot.slane %v2922, 1
        %v3549 = vsel %vm3417, %v3470, %v3548
        %v3550 = vrot.slane %v2923, 1
        %v3551 = vsel %vm3417, %v3473, %v3550
        %v3552 = vrot.slane %v2924, 1
        %v3553 = vsel %vm3417, %v3476, %v3552
        %v3554 = vrot.slane %v2925, 1
        %v3555 = vsel %vm3417, %v3479, %v3554
        %v3556 = vrot.slane %v2926, 1
        %v3557 = vsel %vm3417, %v3482, %v3556
        %v3558 = vrot.slane %v2927, 1
        %v3559 = vsel %vm3417, %v3485, %v3558
        %v3560 = vrot.slane %v2928, 1
        %v3561 = vsel %vm3417, %v3488, %v3560
        %v3562 = vrot.slane %v2929, 1
        %v3563 = vsel %vm3417, %v3491, %v3562
        %v3564 = vrot.slane %v2930, 1
        %v3565 = vsel %vm3417, %v3494, %v3564
        %v3566 = vrot.slane %v2931, 1
        %v3567 = vsel %vm3417, %v3497, %v3566
        %v3568 = vrot.slane %v2932, 1
        %v3569 = vsel %vm3417, %v3500, %v3568
        %v3570 = vrot.slane %v2933, 1
        %v3571 = vsel %vm3417, %v3503, %v3570
        %v3572 = vrot.slane %v2934, 1
        %v3573 = vsel %vm3417, %v3506, %v3572
        %v3574 = vrot.slane %v2935, 1
        %v3575 = vsel %vm3417, %v3509, %v3574
        %v3576 = vrot.slane %v2936, 1
        %v3577 = vsel %vm3417, %v3512, %v3576
        %v3578 = vrot.slane %v2937, 1
        %v3579 = vsel %vm3417, %v3514, %v3578
        %v3580 = vrot.slane %v2938, 1
        %v3581 = vsel %vm3417, %v3516, %v3580
        %v3582 = vrot.slane %v2939, 1
        %v3583 = vsel %vm3417, %v3518, %v3582
        %v3584 = vrot.slane %v2940, 1
        %v3585 = vsel %vm3417, %v3520, %v3584
        %v3586 = vrot.slane %v2941, 1
        %v3587 = vsel %vm3417, %v3522, %v3586
        %v3588 = vrot.slane %v2942, 1
        %v3589 = vsel %vm3417, %v3524, %v3588
        %v3590 = vrot.slane %v2943, 1
        %v3591 = vsel %vm3417, %v3526, %v3590
        %v3592 = vrot.slane %v2944, 1
        %v3593 = vsel %vm3417, %v3528, %v3592
        %v3594 = vrot.slane %v2945, 1
        %v3595 = vsel %vm3417, %v3530, %v3594
        %v3596 = vrot.slane %v2946, 1
        %v3597 = vsel %vm3417, %v3532, %v3596
        %v3598 = vrot.slane %v2947, 1
        %v3599 = vsel %vm3417, %v3534, %v3598
        %v3600 = vrot.slane %v2948, 1
        %v3601 = vsel %vm3417, %v3536, %v3600
        %v3602 = vrot.slane %v2949, 1
        %v3603 = vsel %vm3417, %v3538, %v3602
        %v3604 = vrot.slane %v2950, 1
        %v3605 = vsel %vm3417, %v3540, %v3604
        %v3606 = vrot.slane %v2951, 1
        %v3607 = vsel %vm3417, %v3542, %v3606
        %v3608 = vrot.slane %v2952, 1
        %v3609 = vsel %vm3417, %v3544, %v3608
        %v3610 = vrot.slane %v2953, 1
        %v3611 = vsel %vm3417, %v3546, %v3610
        %v3612 = vrot.slane %v2954, 1
        %v3613 = vsel %vm3417, %v3548, %v3612
        %v3614 = vrot.slane %v2955, 1
        %v3615 = vsel %vm3417, %v3550, %v3614
        %v3616 = vrot.slane %v2956, 1
        %v3617 = vsel %vm3417, %v3552, %v3616
        %v3618 = vrot.slane %v2957, 1
        %v3619 = vsel %vm3417, %v3554, %v3618
        %v3620 = vrot.slane %v2958, 1
        %v3621 = vsel %vm3417, %v3556, %v3620
        %v3622 = vrot.slane %v2959, 1
        %v3623 = vsel %vm3417, %v3558, %v3622
        %v3624 = vrot.slane %v2960, 1
        %v3625 = vsel %vm3417, %v3560, %v3624
        %v3626 = vrot.slane %v2961, 1
        %v3627 = vsel %vm3417, %v3562, %v3626
        %v3628 = vrot.slane %v2962, 1
        %v3629 = vsel %vm3417, %v3564, %v3628
        %v3630 = vrot.slane %v2963, 1
        %v3631 = vsel %vm3417, %v3566, %v3630
        %v3632 = vrot.slane %v2964, 1
        %v3633 = vsel %vm3417, %v3568, %v3632
        %v3634 = vrot.slane %v2965, 1
        %v3635 = vsel %vm3417, %v3570, %v3634
        %v3636 = vrot.slane %v2966, 1
        %v3637 = vsel %vm3417, %v3572, %v3636
        %v3638 = vrot.slane %v2967, 1
        %v3639 = vsel %vm3417, %v3574, %v3638
        %v3640 = vrot.slane %v2968, 1
        %v3641 = vsel %vm3417, %v3576, %v3640
        %v3642 = vrot.slane %v2969, 1
        %v3643 = vsel %vm3417, %v3578, %v3642
        %v3644 = vrot.slane %v2970, 1
        %v3645 = vsel %vm3417, %v3580, %v3644
        %v3646 = vrot.slane %v2971, 1
        %v3647 = vsel %vm3417, %v3582, %v3646
        %v3648 = vrot.slane %v2972, 1
        %v3649 = vsel %vm3417, %v3584, %v3648
        %v3650 = vrot.slane %v2973, 1
        %v3651 = vsel %vm3417, %v3586, %v3650
        %v3652 = vrot.slane %v2974, 1
        %v3653 = vsel %vm3417, %v3588, %v3652
        %v3654 = vrot.slane %v2975, 1
        %v3655 = vsel %vm3417, %v3590, %v3654
        %v3656 = vrot.slane %v2976, 1
        %v3657 = vsel %vm3417, %v3592, %v3656
        %v3658 = vrot.slane %v2977, 1
        %v3659 = vsel %vm3417, %v3594, %v3658
        %v3660 = vrot.slane %v2978, 1
        %v3661 = vsel %vm3417, %v3596, %v3660
        %v3662 = vrot.slane %v2979, 1
        %v3663 = vsel %vm3417, %v3598, %v3662
        %v3664 = vrot.slane %v2980, 1
        %v3665 = vsel %vm3417, %v3600, %v3664
        %v3666 = vrot.slane %v2981, 1
        %v3667 = vsel %vm3417, %v3602, %v3666
        %v3668 = vrot.slane %v2982, 1
        %v3669 = vsel %vm3417, %v3604, %v3668
        %v3670 = vrot.slane %v2983, 1
        %v3671 = vsel %vm3417, %v3606, %v3670
        %v3672 = vrot.slane %v2984, 1
        %v3673 = vsel %vm3417, %v3608, %v3672
        %v3674 = vrot.slane %v2985, 1
        %v3675 = vsel %vm3417, %v3610, %v3674
        %v3676 = vrot.slane %v2986, 1
        %v3677 = vsel %vm3417, %v3612, %v3676
        %v3678 = vrot.slane %v2987, 1
        %v3679 = vsel %vm3417, %v3614, %v3678
        %v3680 = vrot.slane %v2988, 1
        %v3681 = vsel %vm3417, %v3616, %v3680
        %v3682 = vrot.slane %v2989, 1
        %v3683 = vsel %vm3417, %v3618, %v3682
        %v3684 = vrot.slane %v2990, 1
        %v3685 = vsel %vm3417, %v3620, %v3684
        %v3686 = vrot.slane %v2991, 1
        %v3687 = vsel %vm3417, %v3622, %v3686
        %v3688 = vrot.slane %v2992, 1
        %v3689 = vsel %vm3417, %v3624, %v3688
        %v3690 = vrot.slane %v2993, 1
        %v3691 = vsel %vm3417, %v3626, %v3690
        %v3692 = vrot.slane %v2994, 1
        %v3693 = vsel %vm3417, %v3628, %v3692
        %v3694 = vrot.slane %v2995, 1
        %v3695 = vsel %vm3417, %v3630, %v3694
        %v3696 = vrot.slane %v2996, 1
        %v3697 = vsel %vm3417, %v3632, %v3696
        %v3698 = vrot.slane %v2997, 1
        %v3699 = vsel %vm3417, %v3634, %v3698
        %v3700 = vrot.slane %v2998, 1
        %v3701 = vsel %vm3417, %v3636, %v3700
        %v3702 = vrot.slane %v2999, 1
        %v3703 = vsel %vm3417, %v3638, %v3702
        %v3704 = vrot.slane %v3000, 1
        %v3705 = vsel %vm3417, %v3640, %v3704
        %v3706 = vrot.slane %v3001, 1
        %v3707 = vsel %vm3417, %v3642, %v3706
        %v3708 = vrot.slane %v3002, 1
        %v3709 = vsel %vm3417, %v3644, %v3708
        %v3710 = vrot.slane %v3003, 1
        %v3711 = vsel %vm3417, %v3646, %v3710
        %v3712 = vrot.slane %v3004, 1
        %v3713 = vsel %vm3417, %v3648, %v3712
        %v3714 = vrot.slane %v3005, 1
        %v3715 = vsel %vm3417, %v3650, %v3714
        %v3716 = vrot.slane %v3006, 1
        %v3717 = vsel %vm3417, %v3652, %v3716
        %v3718 = vrot.slane %v3007, 1
        %v3719 = vsel %vm3417, %v3654, %v3718
        %v3720 = vrot.slane %v3008, 1
        %v3721 = vsel %vm3417, %v3656, %v3720
        %v3722 = vrot.slane %v3009, 1
        %v3723 = vsel %vm3417, %v3658, %v3722
        %v3724 = vrot.slane %v3010, 1
        %v3725 = vsel %vm3417, %v3660, %v3724
        %v3726 = vrot.slane %v3011, 1
        %v3727 = vsel %vm3417, %v3662, %v3726
        %v3728 = vrot.slane %v3012, 1
        %v3729 = vsel %vm3417, %v3664, %v3728
        %v3730 = vrot.slane %v3013, 1
        %v3731 = vsel %vm3417, %v3666, %v3730
        %v3732 = vrot.slane %v3014, 1
        %v3733 = vsel %vm3417, %v3668, %v3732
        %v3734 = vrot.slane %v3015, 1
        %v3735 = vsel %vm3417, %v3670, %v3734
        %v3736 = vrot.slane %v3016, 1
        %v3737 = vsel %vm3417, %v3672, %v3736
        %v3738 = vrot.slane %v3017, 1
        %v3739 = vsel %vm3417, %v3674, %v3738
        %v3740 = vrot.slane %v3018, 1
        %v3741 = vsel %vm3417, %v3676, %v3740
        %v3742 = vrot.slane %v3019, 1
        %v3743 = vsel %vm3417, %v3678, %v3742
        %v3744 = vrot.slane %v3020, 1
        %v3745 = vsel %vm3417, %v3680, %v3744
        %v3746 = vrot.slane %v3021, 1
        %v3747 = vsel %vm3417, %v3682, %v3746
        %v3748 = vrot.slane %v3022, 1
        %v3749 = vsel %vm3417, %v3684, %v3748
        %v3750 = vrot.slane %v3023, 1
        %v3751 = vsel %vm3417, %v3686, %v3750
        %v3752 = vrot.slane %v3024, 1
        %v3753 = vsel %vm3417, %v3688, %v3752
        %v3754 = vrot.slane %v3025, 1
        %v3755 = vsel %vm3417, %v3690, %v3754
        %v3756 = vrot.slane %v3026, 1
        %v3757 = vsel %vm3417, %v3692, %v3756
        %v3758 = vrot.slane %v3027, 1
        %v3759 = vsel %vm3417, %v3694, %v3758
        %v3760 = vrot.slane %v3028, 1
        %v3761 = vsel %vm3417, %v3696, %v3760
        %v3762 = vrot.slane %v3029, 1
        %v3763 = vsel %vm3417, %v3698, %v3762
        %v3764 = vrot.slane %v3030, 1
        %v3765 = vsel %vm3417, %v3700, %v3764
        %v3766 = vrot.slane %v3031, 1
        %v3767 = vsel %vm3417, %v3702, %v3766
        %v3768 = vrot.slane %v3032, 1
        %v3769 = vsel %vm3417, %v3704, %v3768
        %v3770 = vrot.slane %v3033, 1
        %v3771 = vsel %vm3417, %v3706, %v3770
        %v3772 = vrot.slane %v3034, 1
        %v3773 = vsel %vm3417, %v3708, %v3772
        %v3774 = vrot.slane %v3035, 1
        %v3775 = vsel %vm3417, %v3710, %v3774
        %v3776 = vrot.slane %v3036, 1
        %v3777 = vsel %vm3417, %v3712, %v3776
        %v3778 = vrot.slane %v3037, 1
        %v3779 = vsel %vm3417, %v3714, %v3778
        %v3780 = vrot.slane %v3038, 1
        %v3781 = vsel %vm3417, %v3716, %v3780
        %v3782 = vrot.slane %v3039, 1
        %v3783 = vsel %vm3417, %v3718, %v3782
        %v3784 = vrot.slane %v3040, 1
        %v3785 = vsel %vm3417, %v3720, %v3784
        %v3786 = vrot.slane %v3041, 1
        %v3787 = vsel %vm3417, %v3722, %v3786
        %v3788 = vrot.slane %v3042, 1
        %v3789 = vsel %vm3417, %v3724, %v3788
        %v3790 = vrot.slane %v3043, 1
        %v3791 = vsel %vm3417, %v3726, %v3790
        %v3792 = vrot.slane %v3044, 1
        %v3793 = vsel %vm3417, %v3728, %v3792
        %v3794 = vrot.slane %v3045, 1
        %v3795 = vsel %vm3417, %v3730, %v3794
        %v3796 = vrot.slane %v3046, 1
        %v3797 = vsel %vm3417, %v3732, %v3796
        %v3798 = vrot.slane %v3047, 1
        %v3799 = vsel %vm3417, %v3734, %v3798
        %v3800 = vrot.slane %v3048, 1
        %v3801 = vsel %vm3417, %v3736, %v3800
        %v3802 = vrot.slane %v3049, 1
        %v3803 = vsel %vm3417, %v3738, %v3802
        %v3804 = vrot.slane %v3050, 1
        %v3805 = vsel %vm3417, %v3740, %v3804
        %v3806 = vrot.slane %v3051, 1
        %v3807 = vsel %vm3417, %v3742, %v3806
        %v3808 = vrot.slane %v3052, 1
        %v3809 = vsel %vm3417, %v3744, %v3808
        %v3810 = vrot.slane %v3053, 1
        %v3811 = vsel %vm3417, %v3746, %v3810
        %v3812 = vrot.slane %v3054, 1
        %v3813 = vsel %vm3417, %v3748, %v3812
        %v3814 = vrot.slane %v3055, 1
        %v3815 = vsel %vm3417, %v3750, %v3814
        %v3816 = vrot.slane %v3056, 1
        %v3817 = vsel %vm3417, %v3752, %v3816
        %v3818 = vrot.slane %v3057, 1
        %v3819 = vsel %vm3417, %v3754, %v3818
        %v3820 = vrot.slane %v3058, 1
        %v3821 = vsel %vm3417, %v3756, %v3820
        %v3822 = vrot.slane %v3059, 1
        %v3823 = vsel %vm3417, %v3758, %v3822
        %v3824 = vrot.slane %v3060, 1
        %v3825 = vsel %vm3417, %v3760, %v3824
        %v3826 = vrot.slane %v3061, 1
        %v3827 = vsel %vm3417, %v3762, %v3826
        %v3828 = vrot.slane %v3062, 1
        %v3829 = vsel %vm3417, %v3764, %v3828
        %v3830 = vrot.slane %v3063, 1
        %v3831 = vsel %vm3417, %v3766, %v3830
        %v3832 = vrot.slane %v3064, 1
        %v3833 = vsel %vm3417, %v3768, %v3832
        %v3834 = vrot.slane %v3065, 1
        %v3835 = vsel %vm3417, %v3770, %v3834
        %v3836 = vrot.slane %v3066, 1
        %v3837 = vsel %vm3417, %v3772, %v3836
        %v3838 = vrot.slane %v3067, 1
        %v3839 = vsel %vm3417, %v3774, %v3838
        %v3840 = vrot.slane %v3068, 1
        %v3841 = vsel %vm3417, %v3776, %v3840
        %v3842 = vrot.slane %v3069, 1
        %v3843 = vsel %vm3417, %v3778, %v3842
        %v3844 = vrot.slane %v3070, 1
        %v3845 = vsel %vm3417, %v3780, %v3844
        %v3846 = vrot.slane %v3071, 1
        %v3847 = vsel %vm3417, %v3782, %v3846
        %v3848 = vrot.slane %v3072, 1
        %v3849 = vsel %vm3417, %v3784, %v3848
        %v3850 = vrot.slane %v3073, 1
        %v3851 = vsel %vm3417, %v3786, %v3850
        %v3852 = vrot.slane %v3074, 1
        %v3853 = vsel %vm3417, %v3788, %v3852
        %v3854 = vrot.slane %v3075, 1
        %v3855 = vsel %vm3417, %v3790, %v3854
        %v3856 = vrot.slane %v3076, 1
        %v3857 = vsel %vm3417, %v3792, %v3856
        %v3858 = vrot.slane %v3077, 1
        %v3859 = vsel %vm3417, %v3794, %v3858
        %v3860 = vrot.slane %v3078, 1
        %v3861 = vsel %vm3417, %v3796, %v3860
        %v3862 = vrot.slane %v3079, 1
        %v3863 = vsel %vm3417, %v3798, %v3862
        %v3864 = vrot.slane %v3080, 1
        %v3865 = vsel %vm3417, %v3800, %v3864
        %v3866 = vrot.slane %v3081, 1
        %v3867 = vsel %vm3417, %v3802, %v3866
        %v3868 = vrot.slane %v3082, 1
        %v3869 = vsel %vm3417, %v3804, %v3868
        %v3870 = vrot.slane %v3083, 1
        %v3871 = vsel %vm3417, %v3806, %v3870
        %v3872 = vrot.slane %v3084, 1
        %v3873 = vsel %vm3417, %v3808, %v3872
        %v3874 = vrot.slane %v3085, 1
        %v3875 = vsel %vm3417, %v3810, %v3874
        %v3876 = vrot.slane %v3086, 1
        %v3877 = vsel %vm3417, %v3812, %v3876
        %v3878 = vrot.slane %v3087, 1
        %v3879 = vsel %vm3417, %v3814, %v3878
        %v3880 = vrot.slane %v3088, 1
        %v3881 = vsel %vm3417, %v3816, %v3880
        %v3882 = vrot.slane %v3089, 1
        %v3883 = vsel %vm3417, %v3818, %v3882
        %v3884 = vrot.slane %v3090, 1
        %v3885 = vsel %vm3417, %v3820, %v3884
        %v3886 = vrot.slane %v3091, 1
        %v3887 = vsel %vm3417, %v3822, %v3886
        %v3888 = vrot.slane %v3092, 1
        %v3889 = vsel %vm3417, %v3824, %v3888
        %v3890 = vrot.slane %v3093, 1
        %v3891 = vsel %vm3417, %v3826, %v3890
        %v3892 = vrot.slane %v3094, 1
        %v3893 = vsel %vm3417, %v3828, %v3892
        %v3894 = vrot.slane %v3095, 1
        %v3895 = vsel %vm3417, %v3830, %v3894
        %v3896 = vrot.slane %v3096, 1
        %v3897 = vsel %vm3417, %v3832, %v3896
        %v3898 = vrot.slane %v3097, 1
        %v3899 = vsel %vm3417, %v3834, %v3898
        %v3900 = vrot.slane %v3098, 1
        %v3901 = vsel %vm3417, %v3836, %v3900
        %v3902 = vrot.slane %v3099, 1
        %v3903 = vsel %vm3417, %v3838, %v3902
        %v3904 = vrot.slane %v3100, 1
        %v3905 = vsel %vm3417, %v3840, %v3904
        %v3906 = vrot.slane %v3101, 1
        %v3907 = vsel %vm3417, %v3842, %v3906
        %v3908 = vrot.slane %v3102, 1
        %v3909 = vsel %vm3417, %v3844, %v3908
        %v3910 = vrot.slane %v3103, 1
        %v3911 = vsel %vm3417, %v3846, %v3910
        %v3912 = vrot.slane %v3104, 1
        %v3913 = vsel %vm3417, %v3848, %v3912
        %v3914 = vrot.slane %v3105, 1
        %v3915 = vsel %vm3417, %v3850, %v3914
        %v3916 = vrot.slane %v3106, 1
        %v3917 = vsel %vm3417, %v3852, %v3916
        %v3918 = vrot.slane %v3107, 1
        %v3919 = vsel %vm3417, %v3854, %v3918
        %v3920 = vrot.slane %v3108, 1
        %v3921 = vsel %vm3417, %v3856, %v3920
        %v3922 = vrot.slane %v3109, 1
        %v3923 = vsel %vm3417, %v3858, %v3922
        %v3924 = vrot.slane %v3110, 1
        %v3925 = vsel %vm3417, %v3860, %v3924
        %v3926 = vrot.slane %v3111, 1
        %v3927 = vsel %vm3417, %v3862, %v3926
        %v3928 = vrot.slane %v3112, 1
        %v3929 = vsel %vm3417, %v3864, %v3928
        %v3930 = vrot.slane %v3113, 1
        %v3931 = vsel %vm3417, %v3866, %v3930
        %v3932 = vrot.slane %v3114, 1
        %v3933 = vsel %vm3417, %v3868, %v3932
        %v3934 = vrot.slane %v3115, 1
        %v3935 = vsel %vm3417, %v3870, %v3934
        %v3936 = vrot.slane %v3116, 1
        %v3937 = vsel %vm3417, %v3872, %v3936
        %v3938 = vrot.slane %v3117, 1
        %v3939 = vsel %vm3417, %v3874, %v3938
        %v3940 = vrot.slane %v3118, 1
        %v3941 = vsel %vm3417, %v3876, %v3940
        %v3942 = vrot.slane %v3119, 1
        %v3943 = vsel %vm3417, %v3878, %v3942
        %v3944 = vrot.slane %v3120, 1
        %v3945 = vsel %vm3417, %v3880, %v3944
        %v3946 = vrot.slane %v3121, 1
        %v3947 = vsel %vm3417, %v3882, %v3946
        %v3948 = vrot.slane %v3122, 1
        %v3949 = vsel %vm3417, %v3884, %v3948
        %v3950 = vrot.slane %v3123, 1
        %v3951 = vsel %vm3417, %v3886, %v3950
        %v3952 = vrot.slane %v3124, 1
        %v3953 = vsel %vm3417, %v3888, %v3952
        %v3954 = vrot.slane %v3125, 1
        %v3955 = vsel %vm3417, %v3890, %v3954
        %v3956 = vrot.slane %v3126, 1
        %v3957 = vsel %vm3417, %v3892, %v3956
        %v3958 = vrot.slane %v3127, 1
        %v3959 = vsel %vm3417, %v3894, %v3958
        %v3960 = vrot.slane %v3128, 1
        %v3961 = vsel %vm3417, %v3896, %v3960
        %v4218 = vsub.f32 %v2841, %v3420
        %v4219 = vsub.f32 %v2842, %v3423
        %v4220 = vsub.f32 %v2843, %v3426
        %v4221 = vsub.f32 %v2844, %v3429
        %v4222 = vsub.f32 %v2845, %v3432
        %v4223 = vsub.f32 %v2846, %v3435
        %v4224 = vsub.f32 %v2847, %v3438
        %v4225 = vsub.f32 %v2848, %v3441
        %v4226 = vsub.f32 %v2849, %v3444
        %v4227 = vsub.f32 %v2850, %v3447
        %v4228 = vsub.f32 %v2851, %v3450
        %v4229 = vsub.f32 %v2852, %v3453
        %v4230 = vsub.f32 %v2853, %v3456
        %v4231 = vsub.f32 %v2854, %v3459
        %v4232 = vsub.f32 %v2855, %v3462
        %v4233 = vsub.f32 %v2856, %v3465
        %v4234 = vsub.f32 %v2857, %v3468
        %v4235 = vsub.f32 %v2858, %v3471
        %v4236 = vsub.f32 %v2859, %v3474
        %v4237 = vsub.f32 %v2860, %v3477
        %v4238 = vsub.f32 %v2861, %v3480
        %v4239 = vsub.f32 %v2862, %v3483
        %v4240 = vsub.f32 %v2863, %v3486
        %v4241 = vsub.f32 %v2864, %v3489
        %v4242 = vsub.f32 %v2865, %v3492
        %v4243 = vsub.f32 %v2866, %v3495
        %v4244 = vsub.f32 %v2867, %v3498
        %v4245 = vsub.f32 %v2868, %v3501
        %v4246 = vsub.f32 %v2869, %v3504
        %v4247 = vsub.f32 %v2870, %v3507
        %v4248 = vsub.f32 %v2871, %v3510
        %v4249 = vsub.f32 %v2872, %v3513
        %v4250 = vsub.f32 %v2873, %v3515
        %v4251 = vsub.f32 %v2874, %v3517
        %v4252 = vsub.f32 %v2875, %v3519
        %v4253 = vsub.f32 %v2876, %v3521
        %v4254 = vsub.f32 %v2877, %v3523
        %v4255 = vsub.f32 %v2878, %v3525
        %v4256 = vsub.f32 %v2879, %v3527
        %v4257 = vsub.f32 %v2880, %v3529
        %v4258 = vsub.f32 %v2881, %v3531
        %v4259 = vsub.f32 %v2882, %v3533
        %v4260 = vsub.f32 %v2883, %v3535
        %v4261 = vsub.f32 %v2884, %v3537
        %v4262 = vsub.f32 %v2885, %v3539
        %v4263 = vsub.f32 %v2886, %v3541
        %v4264 = vsub.f32 %v2887, %v3543
        %v4265 = vsub.f32 %v2888, %v3545
        %v4266 = vsub.f32 %v2889, %v3547
        %v4267 = vsub.f32 %v2890, %v3549
        %v4268 = vsub.f32 %v2891, %v3551
        %v4269 = vsub.f32 %v2892, %v3553
        %v4270 = vsub.f32 %v2893, %v3555
        %v4271 = vsub.f32 %v2894, %v3557
        %v4272 = vsub.f32 %v2895, %v3559
        %v4273 = vsub.f32 %v2896, %v3561
        %v4274 = vsub.f32 %v2897, %v3563
        %v4275 = vsub.f32 %v2898, %v3565
        %v4276 = vsub.f32 %v2899, %v3567
        %v4277 = vsub.f32 %v2900, %v3569
        %v4278 = vsub.f32 %v2901, %v3571
        %v4279 = vsub.f32 %v2902, %v3573
        %v4280 = vsub.f32 %v2903, %v3575
        %v4281 = vsub.f32 %v2904, %v3577
        %v4282 = vsub.f32 %v2905, %v3579
        %v4283 = vsub.f32 %v2906, %v3581
        %v4284 = vsub.f32 %v2907, %v3583
        %v4285 = vsub.f32 %v2908, %v3585
        %v4286 = vsub.f32 %v2909, %v3587
        %v4287 = vsub.f32 %v2910, %v3589
        %v4288 = vsub.f32 %v2911, %v3591
        %v4289 = vsub.f32 %v2912, %v3593
        %v4290 = vsub.f32 %v2913, %v3595
        %v4291 = vsub.f32 %v2914, %v3597
        %v4292 = vsub.f32 %v2915, %v3599
        %v4293 = vsub.f32 %v2916, %v3601
        %v4294 = vsub.f32 %v2917, %v3603
        %v4295 = vsub.f32 %v2918, %v3605
        %v4296 = vsub.f32 %v2919, %v3607
        %v4297 = vsub.f32 %v2920, %v3609
        %v4298 = vsub.f32 %v2921, %v3611
        %v4299 = vsub.f32 %v2922, %v3613
        %v4300 = vsub.f32 %v2923, %v3615
        %v4301 = vsub.f32 %v2924, %v3617
        %v4302 = vsub.f32 %v2925, %v3619
        %v4303 = vsub.f32 %v2926, %v3621
        %v4304 = vsub.f32 %v2927, %v3623
        %v4305 = vsub.f32 %v2928, %v3625
        %v4306 = vsub.f32 %v2929, %v3627
        %v4307 = vsub.f32 %v2930, %v3629
        %v4308 = vsub.f32 %v2931, %v3631
        %v4309 = vsub.f32 %v2932, %v3633
        %v4310 = vsub.f32 %v2933, %v3635
        %v4311 = vsub.f32 %v2934, %v3637
        %v4312 = vsub.f32 %v2935, %v3639
        %v4313 = vsub.f32 %v2936, %v3641
        %v4314 = vsub.f32 %v2937, %v3643
        %v4315 = vsub.f32 %v2938, %v3645
        %v4316 = vsub.f32 %v2939, %v3647
        %v4317 = vsub.f32 %v2940, %v3649
        %v4318 = vsub.f32 %v2941, %v3651
        %v4319 = vsub.f32 %v2942, %v3653
        %v4320 = vsub.f32 %v2943, %v3655
        %v4321 = vsub.f32 %v2944, %v3657
        %v4322 = vsub.f32 %v2945, %v3659
        %v4323 = vsub.f32 %v2946, %v3661
        %v4324 = vsub.f32 %v2947, %v3663
        %v4325 = vsub.f32 %v2948, %v3665
        %v4326 = vsub.f32 %v2949, %v3667
        %v4327 = vsub.f32 %v2950, %v3669
        %v4328 = vsub.f32 %v2951, %v3671
        %v4329 = vsub.f32 %v2952, %v3673
        %v4330 = vsub.f32 %v2953, %v3675
        %v4331 = vsub.f32 %v2954, %v3677
        %v4332 = vsub.f32 %v2955, %v3679
        %v4333 = vsub.f32 %v2956, %v3681
        %v4334 = vsub.f32 %v2957, %v3683
        %v4335 = vsub.f32 %v2958, %v3685
        %v4336 = vsub.f32 %v2959, %v3687
        %v4337 = vsub.f32 %v2960, %v3689
        %v4338 = vsub.f32 %v2961, %v3691
        %v4339 = vsub.f32 %v2962, %v3693
        %v4340 = vsub.f32 %v2963, %v3695
        %v4341 = vsub.f32 %v2964, %v3697
        %v4342 = vsub.f32 %v2965, %v3699
        %v4343 = vsub.f32 %v2966, %v3701
        %v4344 = vsub.f32 %v2967, %v3703
        %v4345 = vsub.f32 %v2968, %v3705
        %v4346 = vsub.f32 %v2969, %v3707
        %v4347 = vsub.f32 %v2970, %v3709
        %v4348 = vsub.f32 %v2971, %v3711
        %v4349 = vsub.f32 %v2972, %v3713
        %v4350 = vsub.f32 %v2973, %v3715
        %v4351 = vsub.f32 %v2974, %v3717
        %v4352 = vsub.f32 %v2975, %v3719
        %v4353 = vsub.f32 %v2976, %v3721
        %v4354 = vsub.f32 %v2977, %v3723
        %v4355 = vsub.f32 %v2978, %v3725
        %v4356 = vsub.f32 %v2979, %v3727
        %v4357 = vsub.f32 %v2980, %v3729
        %v4358 = vsub.f32 %v2981, %v3731
        %v4359 = vsub.f32 %v2982, %v3733
        %v4360 = vsub.f32 %v2983, %v3735
        %v4361 = vsub.f32 %v2984, %v3737
        %v4362 = vsub.f32 %v2985, %v3739
        %v4363 = vsub.f32 %v2986, %v3741
        %v4364 = vsub.f32 %v2987, %v3743
        %v4365 = vsub.f32 %v2988, %v3745
        %v4366 = vsub.f32 %v2989, %v3747
        %v4367 = vsub.f32 %v2990, %v3749
        %v4368 = vsub.f32 %v2991, %v3751
        %v4369 = vsub.f32 %v2992, %v3753
        %v4370 = vsub.f32 %v2993, %v3755
        %v4371 = vsub.f32 %v2994, %v3757
        %v4372 = vsub.f32 %v2995, %v3759
        %v4373 = vsub.f32 %v2996, %v3761
        %v4374 = vsub.f32 %v2997, %v3763
        %v4375 = vsub.f32 %v2998, %v3765
        %v4376 = vsub.f32 %v2999, %v3767
        %v4377 = vsub.f32 %v3000, %v3769
        %v4378 = vsub.f32 %v3001, %v3771
        %v4379 = vsub.f32 %v3002, %v3773
        %v4380 = vsub.f32 %v3003, %v3775
        %v4381 = vsub.f32 %v3004, %v3777
        %v4382 = vsub.f32 %v3005, %v3779
        %v4383 = vsub.f32 %v3006, %v3781
        %v4384 = vsub.f32 %v3007, %v3783
        %v4385 = vsub.f32 %v3008, %v3785
        %v4386 = vsub.f32 %v3009, %v3787
        %v4387 = vsub.f32 %v3010, %v3789
        %v4388 = vsub.f32 %v3011, %v3791
        %v4389 = vsub.f32 %v3012, %v3793
        %v4390 = vsub.f32 %v3013, %v3795
        %v4391 = vsub.f32 %v3014, %v3797
        %v4392 = vsub.f32 %v3015, %v3799
        %v4393 = vsub.f32 %v3016, %v3801
        %v4394 = vsub.f32 %v3017, %v3803
        %v4395 = vsub.f32 %v3018, %v3805
        %v4396 = vsub.f32 %v3019, %v3807
        %v4397 = vsub.f32 %v3020, %v3809
        %v4398 = vsub.f32 %v3021, %v3811
        %v4399 = vsub.f32 %v3022, %v3813
        %v4400 = vsub.f32 %v3023, %v3815
        %v4401 = vsub.f32 %v3024, %v3817
        %v4402 = vsub.f32 %v3025, %v3819
        %v4403 = vsub.f32 %v3026, %v3821
        %v4404 = vsub.f32 %v3027, %v3823
        %v4405 = vsub.f32 %v3028, %v3825
        %v4406 = vsub.f32 %v3029, %v3827
        %v4407 = vsub.f32 %v3030, %v3829
        %v4408 = vsub.f32 %v3031, %v3831
        %v4409 = vsub.f32 %v3032, %v3833
        %v4410 = vsub.f32 %v3033, %v3835
        %v4411 = vsub.f32 %v3034, %v3837
        %v4412 = vsub.f32 %v3035, %v3839
        %v4413 = vsub.f32 %v3036, %v3841
        %v4414 = vsub.f32 %v3037, %v3843
        %v4415 = vsub.f32 %v3038, %v3845
        %v4416 = vsub.f32 %v3039, %v3847
        %v4417 = vsub.f32 %v3040, %v3849
        %v4418 = vsub.f32 %v3041, %v3851
        %v4419 = vsub.f32 %v3042, %v3853
        %v4420 = vsub.f32 %v3043, %v3855
        %v4421 = vsub.f32 %v3044, %v3857
        %v4422 = vsub.f32 %v3045, %v3859
        %v4423 = vsub.f32 %v3046, %v3861
        %v4424 = vsub.f32 %v3047, %v3863
        %v4425 = vsub.f32 %v3048, %v3865
        %v4426 = vsub.f32 %v3049, %v3867
        %v4427 = vsub.f32 %v3050, %v3869
        %v4428 = vsub.f32 %v3051, %v3871
        %v4429 = vsub.f32 %v3052, %v3873
        %v4430 = vsub.f32 %v3053, %v3875
        %v4431 = vsub.f32 %v3054, %v3877
        %v4432 = vsub.f32 %v3055, %v3879
        %v4433 = vsub.f32 %v3056, %v3881
        %v4434 = vsub.f32 %v3057, %v3883
        %v4435 = vsub.f32 %v3058, %v3885
        %v4436 = vsub.f32 %v3059, %v3887
        %v4437 = vsub.f32 %v3060, %v3889
        %v4438 = vsub.f32 %v3061, %v3891
        %v4439 = vsub.f32 %v3062, %v3893
        %v4440 = vsub.f32 %v3063, %v3895
        %v4441 = vsub.f32 %v3064, %v3897
        %v4442 = vsub.f32 %v3065, %v3899
        %v4443 = vsub.f32 %v3066, %v3901
        %v4444 = vsub.f32 %v3067, %v3903
        %v4445 = vsub.f32 %v3068, %v3905
        %v4446 = vsub.f32 %v3069, %v3907
        %v4447 = vsub.f32 %v3070, %v3909
        %v4448 = vsub.f32 %v3071, %v3911
        %v4449 = vsub.f32 %v3072, %v3913
        %v4450 = vsub.f32 %v3073, %v3915
        %v4451 = vsub.f32 %v3074, %v3917
        %v4452 = vsub.f32 %v3075, %v3919
        %v4453 = vsub.f32 %v3076, %v3921
        %v4454 = vsub.f32 %v3077, %v3923
        %v4455 = vsub.f32 %v3078, %v3925
        %v4456 = vsub.f32 %v3079, %v3927
        %v4457 = vsub.f32 %v3080, %v3929
        %v4458 = vsub.f32 %v3081, %v3931
        %v4459 = vsub.f32 %v3082, %v3933
        %v4460 = vsub.f32 %v3083, %v3935
        %v4461 = vsub.f32 %v3084, %v3937
        %v4462 = vsub.f32 %v3085, %v3939
        %v4463 = vsub.f32 %v3086, %v3941
        %v4464 = vsub.f32 %v3087, %v3943
        %v4465 = vsub.f32 %v3088, %v3945
        %v4466 = vsub.f32 %v3089, %v3947
        %v4467 = vsub.f32 %v3090, %v3949
        %v4468 = vsub.f32 %v3091, %v3951
        %v4469 = vsub.f32 %v3092, %v3953
        %v4470 = vsub.f32 %v3093, %v3955
        %v4471 = vsub.f32 %v3094, %v3957
        %v4472 = vsub.f32 %v3095, %v3959
        %v4473 = vsub.f32 %v3096, %v3961
        %v4474 = vld [vmem:[#allocation2] sm:$0xff]
        %v4475 = vld [vmem:[#allocation2 + $0x8] sm:$0xff]
        %v4476 = vld [vmem:[#allocation2 + $0x10] sm:$0xff]
        %v4477 = vld [vmem:[#allocation2 + $0x18] sm:$0xff]
        %v4478 = vld [vmem:[#allocation2 + $0x20] sm:$0xff]
        %v4479 = vld [vmem:[#allocation2 + $0x28] sm:$0xff]
        %v4480 = vld [vmem:[#allocation2 + $0x30] sm:$0xff]
        %v4481 = vld [vmem:[#allocation2 + $0x38] sm:$0xff]
        %v4498 = vlaneseq
        %v4499 = vshrl.u32 %v4498, 7
        %v4500 = vsub.s32 0, %v4499
        %v4501 = vrot.slane %v2029, %v4500
        %v4502 = vlaneseq
        %v4503 = vshrl.u32 %v4502, 7
        %v4504 = vsub.s32 4, %v4503
        %v4505 = vrot.slane %v2029, %v4504
        %v4506 = vlaneseq
        %v4507 = vshrl.u32 %v4506, 7
        %v4508 = vsub.s32 0, %v4507
        %v4509 = vrot.slane %v2030, %v4508
        %v4510 = vlaneseq
        %v4511 = vshrl.u32 %v4510, 7
        %v4512 = vsub.s32 4, %v4511
        %v4513 = vrot.slane %v2030, %v4512
        %v4514 = vlaneseq
        %v4515 = vshrl.u32 %v4514, 7
        %v4516 = vsub.s32 0, %v4515
        %v4517 = vrot.slane %v2031, %v4516
        %v4518 = vlaneseq
        %v4519 = vshrl.u32 %v4518, 7
        %v4520 = vsub.s32 4, %v4519
        %v4521 = vrot.slane %v2031, %v4520
        %v4522 = vlaneseq
        %v4523 = vshrl.u32 %v4522, 7
        %v4524 = vsub.s32 0, %v4523
        %v4525 = vrot.slane %v2032, %v4524
        %v4526 = vlaneseq
        %v4527 = vshrl.u32 %v4526, 7
        %v4528 = vsub.s32 4, %v4527
        %v4529 = vrot.slane %v2032, %v4528
        %v4530 = vlaneseq
        %v4531 = vshrl.u32 %v4530, 7
        %v4532 = vsub.s32 0, %v4531
        %v4533 = vrot.slane %v2033, %v4532
        %v4534 = vlaneseq
        %v4535 = vshrl.u32 %v4534, 7
        %v4536 = vsub.s32 4, %v4535
        %v4537 = vrot.slane %v2033, %v4536
        %v4538 = vlaneseq
        %v4539 = vshrl.u32 %v4538, 7
        %v4540 = vsub.s32 0, %v4539
        %v4541 = vrot.slane %v2034, %v4540
        %v4542 = vlaneseq
        %v4543 = vshrl.u32 %v4542, 7
        %v4544 = vsub.s32 4, %v4543
        %v4545 = vrot.slane %v2034, %v4544
        %v4546 = vlaneseq
        %v4547 = vshrl.u32 %v4546, 7
        %v4548 = vsub.s32 0, %v4547
        %v4549 = vrot.slane %v2035, %v4548
        %v4550 = vlaneseq
        %v4551 = vshrl.u32 %v4550, 7
        %v4552 = vsub.s32 4, %v4551
        %v4553 = vrot.slane %v2035, %v4552
        %v4554 = vlaneseq
        %v4555 = vshrl.u32 %v4554, 7
        %v4556 = vsub.s32 0, %v4555
        %v4557 = vrot.slane %v2036, %v4556
        %v4558 = vlaneseq
        %v4559 = vshrl.u32 %v4558, 7
        %v4560 = vsub.s32 4, %v4559
        %v4561 = vrot.slane %v2036, %v4560
        %v4562 = vlaneseq
        %v4563 = vshrl.u32 %v4562, 7
        %v4564 = vsub.s32 0, %v4563
        %v4565 = vrot.slane %v2037, %v4564
        %v4566 = vlaneseq
        %v4567 = vshrl.u32 %v4566, 7
        %v4568 = vsub.s32 4, %v4567
        %v4569 = vrot.slane %v2037, %v4568
        %v4570 = vlaneseq
        %v4571 = vshrl.u32 %v4570, 7
        %v4572 = vsub.s32 0, %v4571
        %v4573 = vrot.slane %v2038, %v4572
        %v4574 = vlaneseq
        %v4575 = vshrl.u32 %v4574, 7
        %v4576 = vsub.s32 4, %v4575
        %v4577 = vrot.slane %v2038, %v4576
        %v4578 = vlaneseq
        %v4579 = vshrl.u32 %v4578, 7
        %v4580 = vsub.s32 0, %v4579
        %v4581 = vrot.slane %v2039, %v4580
        %v4582 = vlaneseq
        %v4583 = vshrl.u32 %v4582, 7
        %v4584 = vsub.s32 4, %v4583
        %v4585 = vrot.slane %v2039, %v4584
        %v4586 = vlaneseq
        %v4587 = vshrl.u32 %v4586, 7
        %v4588 = vsub.s32 0, %v4587
        %v4589 = vrot.slane %v2040, %v4588
        %v4590 = vlaneseq
        %v4591 = vshrl.u32 %v4590, 7
        %v4592 = vsub.s32 4, %v4591
        %v4593 = vrot.slane %v2040, %v4592
        %v4594 = vlaneseq
        %v4595 = vshrl.u32 %v4594, 7
        %v4596 = vsub.s32 0, %v4595
        %v4597 = vrot.slane %v2041, %v4596
        %v4598 = vlaneseq
        %v4599 = vshrl.u32 %v4598, 7
        %v4600 = vsub.s32 4, %v4599
        %v4601 = vrot.slane %v2041, %v4600
        %v4602 = vlaneseq
        %v4603 = vshrl.u32 %v4602, 7
        %v4604 = vsub.s32 0, %v4603
        %v4605 = vrot.slane %v2042, %v4604
        %v4606 = vlaneseq
        %v4607 = vshrl.u32 %v4606, 7
        %v4608 = vsub.s32 4, %v4607
        %v4609 = vrot.slane %v2042, %v4608
        %v4610 = vlaneseq
        %v4611 = vshrl.u32 %v4610, 7
        %v4612 = vsub.s32 0, %v4611
        %v4613 = vrot.slane %v2043, %v4612
        %v4614 = vlaneseq
        %v4615 = vshrl.u32 %v4614, 7
        %v4616 = vsub.s32 4, %v4615
        %v4617 = vrot.slane %v2043, %v4616
        %v4618 = vlaneseq
        %v4619 = vshrl.u32 %v4618, 7
        %v4620 = vsub.s32 0, %v4619
        %v4621 = vrot.slane %v2044, %v4620
        %v4622 = vlaneseq
        %v4623 = vshrl.u32 %v4622, 7
        %v4624 = vsub.s32 4, %v4623
        %v4625 = vrot.slane %v2044, %v4624
        %v4658 = vlaneseq
        %v4659 = vshrl.u32 %v4658, 7
        %v4660 = vsub.s32 0, %v4659
        %v4661 = vrot.slane %v4501, %v4660
        %v4662 = vlaneseq
        %v4663 = vshrl.u32 %v4662, 7
        %v4664 = vsub.s32 0, %v4663
        %v4665 = vrot.slane %v4505, %v4664
        %v4666 = vlaneseq
        %v4667 = vshrl.u32 %v4666, 7
        %v4668 = vsub.s32 0, %v4667
        %v4669 = vrot.slane %v4509, %v4668
        %v4670 = vlaneseq
        %v4671 = vshrl.u32 %v4670, 7
        %v4672 = vsub.s32 0, %v4671
        %v4673 = vrot.slane %v4513, %v4672
        %v4674 = vlaneseq
        %v4675 = vshrl.u32 %v4674, 7
        %v4676 = vsub.s32 0, %v4675
        %v4677 = vrot.slane %v4517, %v4676
        %v4678 = vlaneseq
        %v4679 = vshrl.u32 %v4678, 7
        %v4680 = vsub.s32 0, %v4679
        %v4681 = vrot.slane %v4521, %v4680
        %v4682 = vlaneseq
        %v4683 = vshrl.u32 %v4682, 7
        %v4684 = vsub.s32 0, %v4683
        %v4685 = vrot.slane %v4525, %v4684
        %v4686 = vlaneseq
        %v4687 = vshrl.u32 %v4686, 7
        %v4688 = vsub.s32 0, %v4687
        %v4689 = vrot.slane %v4529, %v4688
        %v4690 = vlaneseq
        %v4691 = vshrl.u32 %v4690, 7
        %v4692 = vsub.s32 0, %v4691
        %v4693 = vrot.slane %v4533, %v4692
        %v4694 = vlaneseq
        %v4695 = vshrl.u32 %v4694, 7
        %v4696 = vsub.s32 0, %v4695
        %v4697 = vrot.slane %v4537, %v4696
        %v4698 = vlaneseq
        %v4699 = vshrl.u32 %v4698, 7
        %v4700 = vsub.s32 0, %v4699
        %v4701 = vrot.slane %v4541, %v4700
        %v4702 = vlaneseq
        %v4703 = vshrl.u32 %v4702, 7
        %v4704 = vsub.s32 0, %v4703
        %v4705 = vrot.slane %v4545, %v4704
        %v4706 = vlaneseq
        %v4707 = vshrl.u32 %v4706, 7
        %v4708 = vsub.s32 0, %v4707
        %v4709 = vrot.slane %v4549, %v4708
        %v4710 = vlaneseq
        %v4711 = vshrl.u32 %v4710, 7
        %v4712 = vsub.s32 0, %v4711
        %v4713 = vrot.slane %v4553, %v4712
        %v4714 = vlaneseq
        %v4715 = vshrl.u32 %v4714, 7
        %v4716 = vsub.s32 0, %v4715
        %v4717 = vrot.slane %v4557, %v4716
        %v4718 = vlaneseq
        %v4719 = vshrl.u32 %v4718, 7
        %v4720 = vsub.s32 0, %v4719
        %v4721 = vrot.slane %v4561, %v4720
        %v4722 = vlaneseq
        %v4723 = vshrl.u32 %v4722, 7
        %v4724 = vsub.s32 0, %v4723
        %v4725 = vrot.slane %v4565, %v4724
        %v4726 = vlaneseq
        %v4727 = vshrl.u32 %v4726, 7
        %v4728 = vsub.s32 0, %v4727
        %v4729 = vrot.slane %v4569, %v4728
        %v4730 = vlaneseq
        %v4731 = vshrl.u32 %v4730, 7
        %v4732 = vsub.s32 0, %v4731
        %v4733 = vrot.slane %v4573, %v4732
        %v4734 = vlaneseq
        %v4735 = vshrl.u32 %v4734, 7
        %v4736 = vsub.s32 0, %v4735
        %v4737 = vrot.slane %v4577, %v4736
        %v4738 = vlaneseq
        %v4739 = vshrl.u32 %v4738, 7
        %v4740 = vsub.s32 0, %v4739
        %v4741 = vrot.slane %v4581, %v4740
        %v4742 = vlaneseq
        %v4743 = vshrl.u32 %v4742, 7
        %v4744 = vsub.s32 0, %v4743
        %v4745 = vrot.slane %v4585, %v4744
        %v4746 = vlaneseq
        %v4747 = vshrl.u32 %v4746, 7
        %v4748 = vsub.s32 0, %v4747
        %v4749 = vrot.slane %v4589, %v4748
        %v4750 = vlaneseq
        %v4751 = vshrl.u32 %v4750, 7
        %v4752 = vsub.s32 0, %v4751
        %v4753 = vrot.slane %v4593, %v4752
        %v4754 = vlaneseq
        %v4755 = vshrl.u32 %v4754, 7
        %v4756 = vsub.s32 0, %v4755
        %v4757 = vrot.slane %v4597, %v4756
        %v4758 = vlaneseq
        %v4759 = vshrl.u32 %v4758, 7
        %v4760 = vsub.s32 0, %v4759
        %v4761 = vrot.slane %v4601, %v4760
        %v4762 = vlaneseq
        %v4763 = vshrl.u32 %v4762, 7
        %v4764 = vsub.s32 0, %v4763
        %v4765 = vrot.slane %v4605, %v4764
        %v4766 = vlaneseq
        %v4767 = vshrl.u32 %v4766, 7
        %v4768 = vsub.s32 0, %v4767
        %v4769 = vrot.slane %v4609, %v4768
        %v4770 = vlaneseq
        %v4771 = vshrl.u32 %v4770, 7
        %v4772 = vsub.s32 0, %v4771
        %v4773 = vrot.slane %v4613, %v4772
        %v4774 = vlaneseq
        %v4775 = vshrl.u32 %v4774, 7
        %v4776 = vsub.s32 0, %v4775
        %v4777 = vrot.slane %v4617, %v4776
        %v4778 = vlaneseq
        %v4779 = vshrl.u32 %v4778, 7
        %v4780 = vsub.s32 0, %v4779
        %v4781 = vrot.slane %v4621, %v4780
        %v4782 = vlaneseq
        %v4783 = vshrl.u32 %v4782, 7
        %v4784 = vsub.s32 0, %v4783
        %v4785 = vrot.slane %v4625, %v4784
        %v4786 = vmul.f32 %v4218, %v4661
        %v4787 = vmul.f32 %v4219, %v4665
        %v4788 = vmul.f32 %v4220, %v4669
        %v4789 = vmul.f32 %v4221, %v4673
        %v4790 = vmul.f32 %v4222, %v4677
        %v4791 = vmul.f32 %v4223, %v4681
        %v4792 = vmul.f32 %v4224, %v4685
        %v4793 = vmul.f32 %v4225, %v4689
        %v4794 = vmul.f32 %v4226, %v4693
        %v4795 = vmul.f32 %v4227, %v4697
        %v4796 = vmul.f32 %v4228, %v4701
        %v4797 = vmul.f32 %v4229, %v4705
        %v4798 = vmul.f32 %v4230, %v4709
        %v4799 = vmul.f32 %v4231, %v4713
        %v4800 = vmul.f32 %v4232, %v4717
        %v4801 = vmul.f32 %v4233, %v4721
        %v4802 = vmul.f32 %v4234, %v4725
        %v4803 = vmul.f32 %v4235, %v4729
        %v4804 = vmul.f32 %v4236, %v4733
        %v4805 = vmul.f32 %v4237, %v4737
        %v4806 = vmul.f32 %v4238, %v4741
        %v4807 = vmul.f32 %v4239, %v4745
        %v4808 = vmul.f32 %v4240, %v4749
        %v4809 = vmul.f32 %v4241, %v4753
        %v4810 = vmul.f32 %v4242, %v4757
        %v4811 = vmul.f32 %v4243, %v4761
        %v4812 = vmul.f32 %v4244, %v4765
        %v4813 = vmul.f32 %v4245, %v4769
        %v4814 = vmul.f32 %v4246, %v4773
        %v4815 = vmul.f32 %v4247, %v4777
        %v4816 = vmul.f32 %v4248, %v4781
        %v4817 = vmul.f32 %v4249, %v4785
        %v4818 = vmul.f32 %v4250, %v4661
        %v4819 = vmul.f32 %v4251, %v4665
        %v4820 = vmul.f32 %v4252, %v4669
        %v4821 = vmul.f32 %v4253, %v4673
        %v4822 = vmul.f32 %v4254, %v4677
        %v4823 = vmul.f32 %v4255, %v4681
        %v4824 = vmul.f32 %v4256, %v4685
        %v4825 = vmul.f32 %v4257, %v4689
        %v4826 = vmul.f32 %v4258, %v4693
        %v4827 = vmul.f32 %v4259, %v4697
        %v4828 = vmul.f32 %v4260, %v4701
        %v4829 = vmul.f32 %v4261, %v4705
        %v4830 = vmul.f32 %v4262, %v4709
        %v4831 = vmul.f32 %v4263, %v4713
        %v4832 = vmul.f32 %v4264, %v4717
        %v4833 = vmul.f32 %v4265, %v4721
        %v4834 = vmul.f32 %v4266, %v4725
        %v4835 = vmul.f32 %v4267, %v4729
        %v4836 = vmul.f32 %v4268, %v4733
        %v4837 = vmul.f32 %v4269, %v4737
        %v4838 = vmul.f32 %v4270, %v4741
        %v4839 = vmul.f32 %v4271, %v4745
        %v4840 = vmul.f32 %v4272, %v4749
        %v4841 = vmul.f32 %v4273, %v4753
        %v4842 = vmul.f32 %v4274, %v4757
        %v4843 = vmul.f32 %v4275, %v4761
        %v4844 = vmul.f32 %v4276, %v4765
        %v4845 = vmul.f32 %v4277, %v4769
        %v4846 = vmul.f32 %v4278, %v4773
        %v4847 = vmul.f32 %v4279, %v4777
        %v4848 = vmul.f32 %v4280, %v4781
        %v4849 = vmul.f32 %v4281, %v4785
        %v4850 = vmul.f32 %v4282, %v4661
        %v4851 = vmul.f32 %v4283, %v4665
        %v4852 = vmul.f32 %v4284, %v4669
        %v4853 = vmul.f32 %v4285, %v4673
        %v4854 = vmul.f32 %v4286, %v4677
        %v4855 = vmul.f32 %v4287, %v4681
        %v4856 = vmul.f32 %v4288, %v4685
        %v4857 = vmul.f32 %v4289, %v4689
        %v4858 = vmul.f32 %v4290, %v4693
        %v4859 = vmul.f32 %v4291, %v4697
        %v4860 = vmul.f32 %v4292, %v4701
        %v4861 = vmul.f32 %v4293, %v4705
        %v4862 = vmul.f32 %v4294, %v4709
        %v4863 = vmul.f32 %v4295, %v4713
        %v4864 = vmul.f32 %v4296, %v4717
        %v4865 = vmul.f32 %v4297, %v4721
        %v4866 = vmul.f32 %v4298, %v4725
        %v4867 = vmul.f32 %v4299, %v4729
        %v4868 = vmul.f32 %v4300, %v4733
        %v4869 = vmul.f32 %v4301, %v4737
        %v4870 = vmul.f32 %v4302, %v4741
        %v4871 = vmul.f32 %v4303, %v4745
        %v4872 = vmul.f32 %v4304, %v4749
        %v4873 = vmul.f32 %v4305, %v4753
        %v4874 = vmul.f32 %v4306, %v4757
        %v4875 = vmul.f32 %v4307, %v4761
        %v4876 = vmul.f32 %v4308, %v4765
        %v4877 = vmul.f32 %v4309, %v4769
        %v4878 = vmul.f32 %v4310, %v4773
        %v4879 = vmul.f32 %v4311, %v4777
        %v4880 = vmul.f32 %v4312, %v4781
        %v4881 = vmul.f32 %v4313, %v4785
        %v4882 = vmul.f32 %v4314, %v4661
        %v4883 = vmul.f32 %v4315, %v4665
        %v4884 = vmul.f32 %v4316, %v4669
        %v4885 = vmul.f32 %v4317, %v4673
        %v4886 = vmul.f32 %v4318, %v4677
        %v4887 = vmul.f32 %v4319, %v4681
        %v4888 = vmul.f32 %v4320, %v4685
        %v4889 = vmul.f32 %v4321, %v4689
        %v4890 = vmul.f32 %v4322, %v4693
        %v4891 = vmul.f32 %v4323, %v4697
        %v4892 = vmul.f32 %v4324, %v4701
        %v4893 = vmul.f32 %v4325, %v4705
        %v4894 = vmul.f32 %v4326, %v4709
        %v4895 = vmul.f32 %v4327, %v4713
        %v4896 = vmul.f32 %v4328, %v4717
        %v4897 = vmul.f32 %v4329, %v4721
        %v4898 = vmul.f32 %v4330, %v4725
        %v4899 = vmul.f32 %v4331, %v4729
        %v4900 = vmul.f32 %v4332, %v4733
        %v4901 = vmul.f32 %v4333, %v4737
        %v4902 = vmul.f32 %v4334, %v4741
        %v4903 = vmul.f32 %v4335, %v4745
        %v4904 = vmul.f32 %v4336, %v4749
        %v4905 = vmul.f32 %v4337, %v4753
        %v4906 = vmul.f32 %v4338, %v4757
        %v4907 = vmul.f32 %v4339, %v4761
        %v4908 = vmul.f32 %v4340, %v4765
        %v4909 = vmul.f32 %v4341, %v4769
        %v4910 = vmul.f32 %v4342, %v4773
        %v4911 = vmul.f32 %v4343, %v4777
        %v4912 = vmul.f32 %v4344, %v4781
        %v4913 = vmul.f32 %v4345, %v4785
        %v4914 = vmul.f32 %v4346, %v4661
        %v4915 = vmul.f32 %v4347, %v4665
        %v4916 = vmul.f32 %v4348, %v4669
        %v4917 = vmul.f32 %v4349, %v4673
        %v4918 = vmul.f32 %v4350, %v4677
        %v4919 = vmul.f32 %v4351, %v4681
        %v4920 = vmul.f32 %v4352, %v4685
        %v4921 = vmul.f32 %v4353, %v4689
        %v4922 = vmul.f32 %v4354, %v4693
        %v4923 = vmul.f32 %v4355, %v4697
        %v4924 = vmul.f32 %v4356, %v4701
        %v4925 = vmul.f32 %v4357, %v4705
        %v4926 = vmul.f32 %v4358, %v4709
        %v4927 = vmul.f32 %v4359, %v4713
        %v4928 = vmul.f32 %v4360, %v4717
        %v4929 = vmul.f32 %v4361, %v4721
        %v4930 = vmul.f32 %v4362, %v4725
        %v4931 = vmul.f32 %v4363, %v4729
        %v4932 = vmul.f32 %v4364, %v4733
        %v4933 = vmul.f32 %v4365, %v4737
        %v4934 = vmul.f32 %v4366, %v4741
        %v4935 = vmul.f32 %v4367, %v4745
        %v4936 = vmul.f32 %v4368, %v4749
        %v4937 = vmul.f32 %v4369, %v4753
        %v4938 = vmul.f32 %v4370, %v4757
        %v4939 = vmul.f32 %v4371, %v4761
        %v4940 = vmul.f32 %v4372, %v4765
        %v4941 = vmul.f32 %v4373, %v4769
        %v4942 = vmul.f32 %v4374, %v4773
        %v4943 = vmul.f32 %v4375, %v4777
        %v4944 = vmul.f32 %v4376, %v4781
        %v4945 = vmul.f32 %v4377, %v4785
        %v4946 = vmul.f32 %v4378, %v4661
        %v4947 = vmul.f32 %v4379, %v4665
        %v4948 = vmul.f32 %v4380, %v4669
        %v4949 = vmul.f32 %v4381, %v4673
        %v4950 = vmul.f32 %v4382, %v4677
        %v4951 = vmul.f32 %v4383, %v4681
        %v4952 = vmul.f32 %v4384, %v4685
        %v4953 = vmul.f32 %v4385, %v4689
        %v4954 = vmul.f32 %v4386, %v4693
        %v4955 = vmul.f32 %v4387, %v4697
        %v4956 = vmul.f32 %v4388, %v4701
        %v4957 = vmul.f32 %v4389, %v4705
        %v4958 = vmul.f32 %v4390, %v4709
        %v4959 = vmul.f32 %v4391, %v4713
        %v4960 = vmul.f32 %v4392, %v4717
        %v4961 = vmul.f32 %v4393, %v4721
        %v4962 = vmul.f32 %v4394, %v4725
        %v4963 = vmul.f32 %v4395, %v4729
        %v4964 = vmul.f32 %v4396, %v4733
        %v4965 = vmul.f32 %v4397, %v4737
        %v4966 = vmul.f32 %v4398, %v4741
        %v4967 = vmul.f32 %v4399, %v4745
        %v4968 = vmul.f32 %v4400, %v4749
        %v4969 = vmul.f32 %v4401, %v4753
        %v4970 = vmul.f32 %v4402, %v4757
        %v4971 = vmul.f32 %v4403, %v4761
        %v4972 = vmul.f32 %v4404, %v4765
        %v4973 = vmul.f32 %v4405, %v4769
        %v4974 = vmul.f32 %v4406, %v4773
        %v4975 = vmul.f32 %v4407, %v4777
        %v4976 = vmul.f32 %v4408, %v4781
        %v4977 = vmul.f32 %v4409, %v4785
        %v4978 = vmul.f32 %v4410, %v4661
        %v4979 = vmul.f32 %v4411, %v4665
        %v4980 = vmul.f32 %v4412, %v4669
        %v4981 = vmul.f32 %v4413, %v4673
        %v4982 = vmul.f32 %v4414, %v4677
        %v4983 = vmul.f32 %v4415, %v4681
        %v4984 = vmul.f32 %v4416, %v4685
        %v4985 = vmul.f32 %v4417, %v4689
        %v4986 = vmul.f32 %v4418, %v4693
        %v4987 = vmul.f32 %v4419, %v4697
        %v4988 = vmul.f32 %v4420, %v4701
        %v4989 = vmul.f32 %v4421, %v4705
        %v4990 = vmul.f32 %v4422, %v4709
        %v4991 = vmul.f32 %v4423, %v4713
        %v4992 = vmul.f32 %v4424, %v4717
        %v4993 = vmul.f32 %v4425, %v4721
        %v4994 = vmul.f32 %v4426, %v4725
        %v4995 = vmul.f32 %v4427, %v4729
        %v4996 = vmul.f32 %v4428, %v4733
        %v4997 = vmul.f32 %v4429, %v4737
        %v4998 = vmul.f32 %v4430, %v4741
        %v4999 = vmul.f32 %v4431, %v4745
        %v5000 = vmul.f32 %v4432, %v4749
        %v5001 = vmul.f32 %v4433, %v4753
        %v5002 = vmul.f32 %v4434, %v4757
        %v5003 = vmul.f32 %v4435, %v4761
        %v5004 = vmul.f32 %v4436, %v4765
        %v5005 = vmul.f32 %v4437, %v4769
        %v5006 = vmul.f32 %v4438, %v4773
        %v5007 = vmul.f32 %v4439, %v4777
        %v5008 = vmul.f32 %v4440, %v4781
        %v5009 = vmul.f32 %v4441, %v4785
        %v5010 = vmul.f32 %v4442, %v4661
        %v5011 = vmul.f32 %v4443, %v4665
        %v5012 = vmul.f32 %v4444, %v4669
        %v5013 = vmul.f32 %v4445, %v4673
        %v5014 = vmul.f32 %v4446, %v4677
        %v5015 = vmul.f32 %v4447, %v4681
        %v5016 = vmul.f32 %v4448, %v4685
        %v5017 = vmul.f32 %v4449, %v4689
        %v5018 = vmul.f32 %v4450, %v4693
        %v5019 = vmul.f32 %v4451, %v4697
        %v5020 = vmul.f32 %v4452, %v4701
        %v5021 = vmul.f32 %v4453, %v4705
        %v5022 = vmul.f32 %v4454, %v4709
        %v5023 = vmul.f32 %v4455, %v4713
        %v5024 = vmul.f32 %v4456, %v4717
        %v5025 = vmul.f32 %v4457, %v4721
        %v5026 = vmul.f32 %v4458, %v4725
        %v5027 = vmul.f32 %v4459, %v4729
        %v5028 = vmul.f32 %v4460, %v4733
        %v5029 = vmul.f32 %v4461, %v4737
        %v5030 = vmul.f32 %v4462, %v4741
        %v5031 = vmul.f32 %v4463, %v4745
        %v5032 = vmul.f32 %v4464, %v4749
        %v5033 = vmul.f32 %v4465, %v4753
        %v5034 = vmul.f32 %v4466, %v4757
        %v5035 = vmul.f32 %v4467, %v4761
        %v5036 = vmul.f32 %v4468, %v4765
        %v5037 = vmul.f32 %v4469, %v4769
        %v5038 = vmul.f32 %v4470, %v4773
        %v5039 = vmul.f32 %v4471, %v4777
        %v5040 = vmul.f32 %v4472, %v4781
        %v5041 = vmul.f32 %v4473, %v4785
        %v5042 = vadd.f32 %v4786, %v4787
        %v5043 = vadd.f32 %v5042, %v4788
        %v5044 = vadd.f32 %v5043, %v4789
        %v5045 = vadd.f32 %v5044, %v4790
        %v5046 = vadd.f32 %v5045, %v4791
        %v5047 = vadd.f32 %v5046, %v4792
        %v5048 = vadd.f32 %v5047, %v4793
        %v5049 = vadd.f32 %v5048, %v4794
        %v5050 = vadd.f32 %v5049, %v4795
        %v5051 = vadd.f32 %v5050, %v4796
        %v5052 = vadd.f32 %v5051, %v4797
        %v5053 = vadd.f32 %v5052, %v4798
        %v5054 = vadd.f32 %v5053, %v4799
        %v5055 = vadd.f32 %v5054, %v4800
        %v5056 = vadd.f32 %v5055, %v4801
        %v5057 = vadd.f32 %v5056, %v4802
        %v5058 = vadd.f32 %v5057, %v4803
        %v5059 = vadd.f32 %v5058, %v4804
        %v5060 = vadd.f32 %v5059, %v4805
        %v5061 = vadd.f32 %v5060, %v4806
        %v5062 = vadd.f32 %v5061, %v4807
        %v5063 = vadd.f32 %v5062, %v4808
        %v5064 = vadd.f32 %v5063, %v4809
        %v5065 = vadd.f32 %v5064, %v4810
        %v5066 = vadd.f32 %v5065, %v4811
        %v5067 = vadd.f32 %v5066, %v4812
        %v5068 = vadd.f32 %v5067, %v4813
        %v5069 = vadd.f32 %v5068, %v4814
        %v5070 = vadd.f32 %v5069, %v4815
        %v5071 = vadd.f32 %v5070, %v4816
        %v5072 = vadd.f32 %v5071, %v4817
        %5073 = vadd.xlane.f32.xlu0 %v5072
        %v5074 = vpop.xlane.xlu0 %5073
        %v5075 = vadd.f32 %v4818, %v4819
        %v5076 = vadd.f32 %v5075, %v4820
        %v5077 = vadd.f32 %v5076, %v4821
        %v5078 = vadd.f32 %v5077, %v4822
        %v5079 = vadd.f32 %v5078, %v4823
        %v5080 = vadd.f32 %v5079, %v4824
        %v5081 = vadd.f32 %v5080, %v4825
        %v5082 = vadd.f32 %v5081, %v4826
        %v5083 = vadd.f32 %v5082, %v4827
        %v5084 = vadd.f32 %v5083, %v4828
        %v5085 = vadd.f32 %v5084, %v4829
        %v5086 = vadd.f32 %v5085, %v4830
        %v5087 = vadd.f32 %v5086, %v4831
        %v5088 = vadd.f32 %v5087, %v4832
        %v5089 = vadd.f32 %v5088, %v4833
        %v5090 = vadd.f32 %v5089, %v4834
        %v5091 = vadd.f32 %v5090, %v4835
        %v5092 = vadd.f32 %v5091, %v4836
        %v5093 = vadd.f32 %v5092, %v4837
        %v5094 = vadd.f32 %v5093, %v4838
        %v5095 = vadd.f32 %v5094, %v4839
        %v5096 = vadd.f32 %v5095, %v4840
        %v5097 = vadd.f32 %v5096, %v4841
        %v5098 = vadd.f32 %v5097, %v4842
        %v5099 = vadd.f32 %v5098, %v4843
        %v5100 = vadd.f32 %v5099, %v4844
        %v5101 = vadd.f32 %v5100, %v4845
        %v5102 = vadd.f32 %v5101, %v4846
        %v5103 = vadd.f32 %v5102, %v4847
        %v5104 = vadd.f32 %v5103, %v4848
        %v5105 = vadd.f32 %v5104, %v4849
        %5106 = vadd.xlane.f32.xlu0 %v5105
        %v5107 = vpop.xlane.xlu0 %5106
        %v5108 = vadd.f32 %v4850, %v4851
        %v5109 = vadd.f32 %v5108, %v4852
        %v5110 = vadd.f32 %v5109, %v4853
        %v5111 = vadd.f32 %v5110, %v4854
        %v5112 = vadd.f32 %v5111, %v4855
        %v5113 = vadd.f32 %v5112, %v4856
        %v5114 = vadd.f32 %v5113, %v4857
        %v5115 = vadd.f32 %v5114, %v4858
        %v5116 = vadd.f32 %v5115, %v4859
        %v5117 = vadd.f32 %v5116, %v4860
        %v5118 = vadd.f32 %v5117, %v4861
        %v5119 = vadd.f32 %v5118, %v4862
        %v5120 = vadd.f32 %v5119, %v4863
        %v5121 = vadd.f32 %v5120, %v4864
        %v5122 = vadd.f32 %v5121, %v4865
        %v5123 = vadd.f32 %v5122, %v4866
        %v5124 = vadd.f32 %v5123, %v4867
        %v5125 = vadd.f32 %v5124, %v4868
        %v5126 = vadd.f32 %v5125, %v4869
        %v5127 = vadd.f32 %v5126, %v4870
        %v5128 = vadd.f32 %v5127, %v4871
        %v5129 = vadd.f32 %v5128, %v4872
        %v5130 = vadd.f32 %v5129, %v4873
        %v5131 = vadd.f32 %v5130, %v4874
        %v5132 = vadd.f32 %v5131, %v4875
        %v5133 = vadd.f32 %v5132, %v4876
        %v5134 = vadd.f32 %v5133, %v4877
        %v5135 = vadd.f32 %v5134, %v4878
        %v5136 = vadd.f32 %v5135, %v4879
        %v5137 = vadd.f32 %v5136, %v4880
        %v5138 = vadd.f32 %v5137, %v4881
        %5139 = vadd.xlane.f32.xlu0 %v5138
        %v5140 = vpop.xlane.xlu0 %5139
        %v5141 = vadd.f32 %v4882, %v4883
        %v5142 = vadd.f32 %v5141, %v4884
        %v5143 = vadd.f32 %v5142, %v4885
        %v5144 = vadd.f32 %v5143, %v4886
        %v5145 = vadd.f32 %v5144, %v4887
        %v5146 = vadd.f32 %v5145, %v4888
        %v5147 = vadd.f32 %v5146, %v4889
        %v5148 = vadd.f32 %v5147, %v4890
        %v5149 = vadd.f32 %v5148, %v4891
        %v5150 = vadd.f32 %v5149, %v4892
        %v5151 = vadd.f32 %v5150, %v4893
        %v5152 = vadd.f32 %v5151, %v4894
        %v5153 = vadd.f32 %v5152, %v4895
        %v5154 = vadd.f32 %v5153, %v4896
        %v5155 = vadd.f32 %v5154, %v4897
        %v5156 = vadd.f32 %v5155, %v4898
        %v5157 = vadd.f32 %v5156, %v4899
        %v5158 = vadd.f32 %v5157, %v4900
        %v5159 = vadd.f32 %v5158, %v4901
        %v5160 = vadd.f32 %v5159, %v4902
        %v5161 = vadd.f32 %v5160, %v4903
        %v5162 = vadd.f32 %v5161, %v4904
        %v5163 = vadd.f32 %v5162, %v4905
        %v5164 = vadd.f32 %v5163, %v4906
        %v5165 = vadd.f32 %v5164, %v4907
        %v5166 = vadd.f32 %v5165, %v4908
        %v5167 = vadd.f32 %v5166, %v4909
        %v5168 = vadd.f32 %v5167, %v4910
        %v5169 = vadd.f32 %v5168, %v4911
        %v5170 = vadd.f32 %v5169, %v4912
        %v5171 = vadd.f32 %v5170, %v4913
        %5172 = vadd.xlane.f32.xlu0 %v5171
        %v5173 = vpop.xlane.xlu0 %5172
        %v5174 = vadd.f32 %v4914, %v4915
        %v5175 = vadd.f32 %v5174, %v4916
        %v5176 = vadd.f32 %v5175, %v4917
        %v5177 = vadd.f32 %v5176, %v4918
        %v5178 = vadd.f32 %v5177, %v4919
        %v5179 = vadd.f32 %v5178, %v4920
        %v5180 = vadd.f32 %v5179, %v4921
        %v5181 = vadd.f32 %v5180, %v4922
        %v5182 = vadd.f32 %v5181, %v4923
        %v5183 = vadd.f32 %v5182, %v4924
        %v5184 = vadd.f32 %v5183, %v4925
        %v5185 = vadd.f32 %v5184, %v4926
        %v5186 = vadd.f32 %v5185, %v4927
        %v5187 = vadd.f32 %v5186, %v4928
        %v5188 = vadd.f32 %v5187, %v4929
        %v5189 = vadd.f32 %v5188, %v4930
        %v5190 = vadd.f32 %v5189, %v4931
        %v5191 = vadd.f32 %v5190, %v4932
        %v5192 = vadd.f32 %v5191, %v4933
        %v5193 = vadd.f32 %v5192, %v4934
        %v5194 = vadd.f32 %v5193, %v4935
        %v5195 = vadd.f32 %v5194, %v4936
        %v5196 = vadd.f32 %v5195, %v4937
        %v5197 = vadd.f32 %v5196, %v4938
        %v5198 = vadd.f32 %v5197, %v4939
        %v5199 = vadd.f32 %v5198, %v4940
        %v5200 = vadd.f32 %v5199, %v4941
        %v5201 = vadd.f32 %v5200, %v4942
        %v5202 = vadd.f32 %v5201, %v4943
        %v5203 = vadd.f32 %v5202, %v4944
        %v5204 = vadd.f32 %v5203, %v4945
        %5205 = vadd.xlane.f32.xlu0 %v5204
        %v5206 = vpop.xlane.xlu0 %5205
        %v5207 = vadd.f32 %v4946, %v4947
        %v5208 = vadd.f32 %v5207, %v4948
        %v5209 = vadd.f32 %v5208, %v4949
        %v5210 = vadd.f32 %v5209, %v4950
        %v5211 = vadd.f32 %v5210, %v4951
        %v5212 = vadd.f32 %v5211, %v4952
        %v5213 = vadd.f32 %v5212, %v4953
        %v5214 = vadd.f32 %v5213, %v4954
        %v5215 = vadd.f32 %v5214, %v4955
        %v5216 = vadd.f32 %v5215, %v4956
        %v5217 = vadd.f32 %v5216, %v4957
        %v5218 = vadd.f32 %v5217, %v4958
        %v5219 = vadd.f32 %v5218, %v4959
        %v5220 = vadd.f32 %v5219, %v4960
        %v5221 = vadd.f32 %v5220, %v4961
        %v5222 = vadd.f32 %v5221, %v4962
        %v5223 = vadd.f32 %v5222, %v4963
        %v5224 = vadd.f32 %v5223, %v4964
        %v5225 = vadd.f32 %v5224, %v4965
        %v5226 = vadd.f32 %v5225, %v4966
        %v5227 = vadd.f32 %v5226, %v4967
        %v5228 = vadd.f32 %v5227, %v4968
        %v5229 = vadd.f32 %v5228, %v4969
        %v5230 = vadd.f32 %v5229, %v4970
        %v5231 = vadd.f32 %v5230, %v4971
        %v5232 = vadd.f32 %v5231, %v4972
        %v5233 = vadd.f32 %v5232, %v4973
        %v5234 = vadd.f32 %v5233, %v4974
        %v5235 = vadd.f32 %v5234, %v4975
        %v5236 = vadd.f32 %v5235, %v4976
        %v5237 = vadd.f32 %v5236, %v4977
        %5238 = vadd.xlane.f32.xlu0 %v5237
        %v5239 = vpop.xlane.xlu0 %5238
        %v5240 = vadd.f32 %v4978, %v4979
        %v5241 = vadd.f32 %v5240, %v4980
        %v5242 = vadd.f32 %v5241, %v4981
        %v5243 = vadd.f32 %v5242, %v4982
        %v5244 = vadd.f32 %v5243, %v4983
        %v5245 = vadd.f32 %v5244, %v4984
        %v5246 = vadd.f32 %v5245, %v4985
        %v5247 = vadd.f32 %v5246, %v4986
        %v5248 = vadd.f32 %v5247, %v4987
        %v5249 = vadd.f32 %v5248, %v4988
        %v5250 = vadd.f32 %v5249, %v4989
        %v5251 = vadd.f32 %v5250, %v4990
        %v5252 = vadd.f32 %v5251, %v4991
        %v5253 = vadd.f32 %v5252, %v4992
        %v5254 = vadd.f32 %v5253, %v4993
        %v5255 = vadd.f32 %v5254, %v4994
        %v5256 = vadd.f32 %v5255, %v4995
        %v5257 = vadd.f32 %v5256, %v4996
        %v5258 = vadd.f32 %v5257, %v4997
        %v5259 = vadd.f32 %v5258, %v4998
        %v5260 = vadd.f32 %v5259, %v4999
        %v5261 = vadd.f32 %v5260, %v5000
        %v5262 = vadd.f32 %v5261, %v5001
        %v5263 = vadd.f32 %v5262, %v5002
        %v5264 = vadd.f32 %v5263, %v5003
        %v5265 = vadd.f32 %v5264, %v5004
        %v5266 = vadd.f32 %v5265, %v5005
        %v5267 = vadd.f32 %v5266, %v5006
        %v5268 = vadd.f32 %v5267, %v5007
        %v5269 = vadd.f32 %v5268, %v5008
        %v5270 = vadd.f32 %v5269, %v5009
        %5271 = vadd.xlane.f32.xlu0 %v5270
        %v5272 = vpop.xlane.xlu0 %5271
        %v5273 = vadd.f32 %v5010, %v5011
        %v5274 = vadd.f32 %v5273, %v5012
        %v5275 = vadd.f32 %v5274, %v5013
        %v5276 = vadd.f32 %v5275, %v5014
        %v5277 = vadd.f32 %v5276, %v5015
        %v5278 = vadd.f32 %v5277, %v5016
        %v5279 = vadd.f32 %v5278, %v5017
        %v5280 = vadd.f32 %v5279, %v5018
        %v5281 = vadd.f32 %v5280, %v5019
        %v5282 = vadd.f32 %v5281, %v5020
        %v5283 = vadd.f32 %v5282, %v5021
        %v5284 = vadd.f32 %v5283, %v5022
        %v5285 = vadd.f32 %v5284, %v5023
        %v5286 = vadd.f32 %v5285, %v5024
        %v5287 = vadd.f32 %v5286, %v5025
        %v5288 = vadd.f32 %v5287, %v5026
        %v5289 = vadd.f32 %v5288, %v5027
        %v5290 = vadd.f32 %v5289, %v5028
        %v5291 = vadd.f32 %v5290, %v5029
        %v5292 = vadd.f32 %v5291, %v5030
        %v5293 = vadd.f32 %v5292, %v5031
        %v5294 = vadd.f32 %v5293, %v5032
        %v5295 = vadd.f32 %v5294, %v5033
        %v5296 = vadd.f32 %v5295, %v5034
        %v5297 = vadd.f32 %v5296, %v5035
        %v5298 = vadd.f32 %v5297, %v5036
        %v5299 = vadd.f32 %v5298, %v5037
        %v5300 = vadd.f32 %v5299, %v5038
        %v5301 = vadd.f32 %v5300, %v5039
        %v5302 = vadd.f32 %v5301, %v5040
        %v5303 = vadd.f32 %v5302, %v5041
        %5304 = vadd.xlane.f32.xlu0 %v5303
        %v5305 = vpop.xlane.xlu0 %5304
        %v5306 = vadd.f32 %v4474, %v5074
        %v5307 = vadd.f32 %v4475, %v5107
        %v5308 = vadd.f32 %v4476, %v5140
        %v5309 = vadd.f32 %v4477, %v5173
        %v5310 = vadd.f32 %v4478, %v5206
        %v5311 = vadd.f32 %v4479, %v5239
        %v5312 = vadd.f32 %v4480, %v5272
        %v5313 = vadd.f32 %v4481, %v5305
        %vm5314 = vcmask 7168
        %5315 = vst.msk [vmem:[#allocation2] sm:$0xff] %vm5314, %v5306
        %5316 = vst.msk [vmem:[#allocation2 + $0x8] sm:$0xff] %vm5314, %v5307
        %5317 = vst.msk [vmem:[#allocation2 + $0x10] sm:$0xff] %vm5314, %v5308
        %5318 = vst.msk [vmem:[#allocation2 + $0x18] sm:$0xff] %vm5314, %v5309
        %5319 = vst.msk [vmem:[#allocation2 + $0x20] sm:$0xff] %vm5314, %v5310
        %5320 = vst.msk [vmem:[#allocation2 + $0x28] sm:$0xff] %vm5314, %v5311
        %5321 = vst.msk [vmem:[#allocation2 + $0x30] sm:$0xff] %vm5314, %v5312
        %5322 = vst.msk [vmem:[#allocation2 + $0x38] sm:$0xff] %vm5314, %v5313
        // Predicated region
        $region57: #{tpu_custom_call.1} parent=43 // pred_check
          %p5323 = pneg %p377
        $region58: #{tpu_custom_call.1} parent=43 // pred_check_branch
          %5325 = sbr.rel (%p5323) target = $region60
        $region59: #{tpu_custom_call.1} parent=43 // pred_region
          %v5326 = vld [vmem:[#allocation2] sm:$0xff]
          %v5327 = vld [vmem:[#allocation2 + $0x8] sm:$0xff]
          %v5328 = vld [vmem:[#allocation2 + $0x10] sm:$0xff]
          %v5329 = vld [vmem:[#allocation2 + $0x18] sm:$0xff]
          %v5330 = vld [vmem:[#allocation2 + $0x20] sm:$0xff]
          %v5331 = vld [vmem:[#allocation2 + $0x28] sm:$0xff]
          %v5332 = vld [vmem:[#allocation2 + $0x30] sm:$0xff]
          %v5333 = vld [vmem:[#allocation2 + $0x38] sm:$0xff]
          %v5334 = vlaneseq
          %v5335 = vand.u32 %v5334, 127
          %vm5336 = vcmp.eq.s32.totalorder %v2222, %v5335
          %vm5337 = vcmp.eq.s32.totalorder %v2223, %v5335
          %vm5338 = vcmp.eq.s32.totalorder %v2224, %v5335
          %vm5339 = vcmp.eq.s32.totalorder %v2225, %v5335
          %vm5340 = vcmp.eq.s32.totalorder %v2226, %v5335
          %vm5341 = vcmp.eq.s32.totalorder %v2227, %v5335
          %vm5342 = vcmp.eq.s32.totalorder %v2228, %v5335
          %vm5343 = vcmp.eq.s32.totalorder %v2229, %v5335
          %v5344 = vsel %vm5336, 1, 0
          %v5345 = vsel %vm5337, 1, 0
          %v5346 = vsel %vm5338, 1, 0
          %v5347 = vsel %vm5339, 1, 0
          %v5348 = vsel %vm5340, 1, 0
          %v5349 = vsel %vm5341, 1, 0
          %v5350 = vsel %vm5342, 1, 0
          %v5351 = vsel %vm5343, 1, 0
          %v5352 = vcvt.s32.f32 %v5344
          %v5353 = vcvt.s32.f32 %v5345
          %v5354 = vcvt.s32.f32 %v5346
          %v5355 = vcvt.s32.f32 %v5347
          %v5356 = vcvt.s32.f32 %v5348
          %v5357 = vcvt.s32.f32 %v5349
          %v5358 = vcvt.s32.f32 %v5350
          %v5359 = vcvt.s32.f32 %v5351
          %vm5360 = vcmp.lt.s32.totalorder %v2222, %v5335
          %vm5361 = vcmp.lt.s32.totalorder %v2223, %v5335
          %vm5362 = vcmp.lt.s32.totalorder %v2224, %v5335
          %vm5363 = vcmp.lt.s32.totalorder %v2225, %v5335
          %vm5364 = vcmp.lt.s32.totalorder %v2226, %v5335
          %vm5365 = vcmp.lt.s32.totalorder %v2227, %v5335
          %vm5366 = vcmp.lt.s32.totalorder %v2228, %v5335
          %vm5367 = vcmp.lt.s32.totalorder %v2229, %v5335
          %v5368 = vsel %vm5360, 1, 0
          %v5369 = vsel %vm5361, 1, 0
          %v5370 = vsel %vm5362, 1, 0
          %v5371 = vsel %vm5363, 1, 0
          %v5372 = vsel %vm5364, 1, 0
          %v5373 = vsel %vm5365, 1, 0
          %v5374 = vsel %vm5366, 1, 0
          %v5375 = vsel %vm5367, 1, 0
          %v5376 = vcvt.s32.f32 %v5368
          %v5377 = vcvt.s32.f32 %v5369
          %v5378 = vcvt.s32.f32 %v5370
          %v5379 = vcvt.s32.f32 %v5371
          %v5380 = vcvt.s32.f32 %v5372
          %v5381 = vcvt.s32.f32 %v5373
          %v5382 = vcvt.s32.f32 %v5374
          %v5383 = vcvt.s32.f32 %v5375
          %5385 = vset.pattern.permute.xlu0 0
          %5386 = vperm.xlu0 %5385, %v5326
          %v5387 = vpop.permute.xlu0 %5386
          %5390 = vset.pattern.permute.xlu0 0
          %5391 = vperm.xlu0 %5390, %v5327
          %v5392 = vpop.permute.xlu0 %5391
          %5395 = vset.pattern.permute.xlu0 0
          %5396 = vperm.xlu0 %5395, %v5328
          %v5397 = vpop.permute.xlu0 %5396
          %5400 = vset.pattern.permute.xlu0 0
          %5401 = vperm.xlu0 %5400, %v5329
          %v5402 = vpop.permute.xlu0 %5401
          %5405 = vset.pattern.permute.xlu0 0
          %5406 = vperm.xlu0 %5405, %v5330
          %v5407 = vpop.permute.xlu0 %5406
          %5410 = vset.pattern.permute.xlu0 0
          %5411 = vperm.xlu0 %5410, %v5331
          %v5412 = vpop.permute.xlu0 %5411
          %5415 = vset.pattern.permute.xlu0 0
          %5416 = vperm.xlu0 %5415, %v5332
          %v5417 = vpop.permute.xlu0 %5416
          %5420 = vset.pattern.permute.xlu0 0
          %5421 = vperm.xlu0 %5420, %v5333
          %v5422 = vpop.permute.xlu0 %5421
          %v5424 = vmul.f32 %v5387, %v5352
          %v5425 = vmul.f32 %v5392, %v5353
          %v5426 = vmul.f32 %v5397, %v5354
          %v5427 = vmul.f32 %v5402, %v5355
          %v5428 = vmul.f32 %v5407, %v5356
          %v5429 = vmul.f32 %v5412, %v5357
          %v5430 = vmul.f32 %v5417, %v5358
          %v5431 = vmul.f32 %v5422, %v5359
          %v5432 = vadd.f32 %v5424, %v5425
          %v5433 = vadd.f32 %v5432, %v5426
          %v5434 = vadd.f32 %v5433, %v5427
          %v5435 = vadd.f32 %v5434, %v5428
          %v5436 = vadd.f32 %v5435, %v5429
          %v5437 = vadd.f32 %v5436, %v5430
          %v5438 = vadd.f32 %v5437, %v5431
          %v5439 = vrot.slane %v5438, 4
          %v5440 = vadd.f32 %v5438, %v5439
          %v5441 = vrot.slane %v5440, 2
          %v5442 = vadd.f32 %v5440, %v5441
          %v5443 = vrot.slane %v5442, 1
          %v5444 = vadd.f32 %v5442, %v5443
          %5445 = vst [vmem:[%s350] sm:$0x1] %v5444
          %s5446 = sld [smem:[#allocation3]]
          %s5447 = sld [smem:[#allocation3 + $0x1]]
          %v5448 = vstv %s5446
          %v5449 = vmul.f32 %v5326, %v5448
          %v5450 = vmul.f32 %v5327, %v5448
          %v5451 = vmul.f32 %v5328, %v5448
          %v5452 = vmul.f32 %v5329, %v5448
          %v5453 = vmul.f32 %v5330, %v5448
          %v5454 = vmul.f32 %v5331, %v5448
          %v5455 = vmul.f32 %v5332, %v5448
          %v5456 = vmul.f32 %v5333, %v5448
          %v5457 = vstv %s5447
          %v5458 = vadd.f32 %v5449, %v5457
          %v5459 = vadd.f32 %v5450, %v5457
          %v5460 = vadd.f32 %v5451, %v5457
          %v5461 = vadd.f32 %v5452, %v5457
          %v5462 = vadd.f32 %v5453, %v5457
          %v5463 = vadd.f32 %v5454, %v5457
          %v5464 = vadd.f32 %v5455, %v5457
          %v5465 = vadd.f32 %v5456, %v5457
          %5467 = vset.pattern.permute.xlu0 0
          %5468 = vperm.xlu0 %5467, %v5458
          %v5469 = vpop.permute.xlu0 %5468
          %5472 = vset.pattern.permute.xlu0 0
          %5473 = vperm.xlu0 %5472, %v5459
          %v5474 = vpop.permute.xlu0 %5473
          %5477 = vset.pattern.permute.xlu0 0
          %5478 = vperm.xlu0 %5477, %v5460
          %v5479 = vpop.permute.xlu0 %5478
          %5482 = vset.pattern.permute.xlu0 0
          %5483 = vperm.xlu0 %5482, %v5461
          %v5484 = vpop.permute.xlu0 %5483
          %5487 = vset.pattern.permute.xlu0 0
          %5488 = vperm.xlu0 %5487, %v5462
          %v5489 = vpop.permute.xlu0 %5488
          %5492 = vset.pattern.permute.xlu0 0
          %5493 = vperm.xlu0 %5492, %v5463
          %v5494 = vpop.permute.xlu0 %5493
          %5497 = vset.pattern.permute.xlu0 0
          %5498 = vperm.xlu0 %5497, %v5464
          %v5499 = vpop.permute.xlu0 %5498
          %5502 = vset.pattern.permute.xlu0 0
          %5503 = vperm.xlu0 %5502, %v5465
          %v5504 = vpop.permute.xlu0 %5503
          %v5506 = vmul.f32 %v5469, %v5352
          %v5507 = vmul.f32 %v5474, %v5353
          %v5508 = vmul.f32 %v5479, %v5354
          %v5509 = vmul.f32 %v5484, %v5355
          %v5510 = vmul.f32 %v5489, %v5356
          %v5511 = vmul.f32 %v5494, %v5357
          %v5512 = vmul.f32 %v5499, %v5358
          %v5513 = vmul.f32 %v5504, %v5359
          %v5514 = vadd.f32 %v5506, %v5507
          %v5515 = vadd.f32 %v5514, %v5508
          %v5516 = vadd.f32 %v5515, %v5509
          %v5517 = vadd.f32 %v5516, %v5510
          %v5518 = vadd.f32 %v5517, %v5511
          %v5519 = vadd.f32 %v5518, %v5512
          %v5520 = vadd.f32 %v5519, %v5513
          %v5521 = vrot.slane %v5520, 4
          %v5522 = vadd.f32 %v5520, %v5521
          %v5523 = vrot.slane %v5522, 2
          %v5524 = vadd.f32 %v5522, %v5523
          %v5525 = vrot.slane %v5524, 1
          %v5526 = vadd.f32 %v5524, %v5525
          %v5527 = vmul.f32 %v5469, %v5376
          %v5528 = vmul.f32 %v5474, %v5377
          %v5529 = vmul.f32 %v5479, %v5378
          %v5530 = vmul.f32 %v5484, %v5379
          %v5531 = vmul.f32 %v5489, %v5380
          %v5532 = vmul.f32 %v5494, %v5381
          %v5533 = vmul.f32 %v5499, %v5382
          %v5534 = vmul.f32 %v5504, %v5383
          %v5535 = vadd.f32 %v5527, %v5528
          %v5536 = vadd.f32 %v5535, %v5529
          %v5537 = vadd.f32 %v5536, %v5530
          %v5538 = vadd.f32 %v5537, %v5531
          %v5539 = vadd.f32 %v5538, %v5532
          %v5540 = vadd.f32 %v5539, %v5533
          %v5541 = vadd.f32 %v5540, %v5534
          %v5542 = vrot.slane %v5541, 4
          %v5543 = vadd.f32 %v5541, %v5542
          %v5544 = vrot.slane %v5543, 2
          %v5545 = vadd.f32 %v5543, %v5544
          %v5546 = vrot.slane %v5545, 1
          %v5547 = vadd.f32 %v5545, %v5546
          %v5548 = vsub.f32 0.0, %v5526
          %v5549 = vmul.f32 %v5548, 1.442695
          %v5550 = vpow.pop %v5549
          %v5551 = vsub.f32 1.0, %v5550
          %v5552 = vsub.f32 0.0, %v5547
          %v5553 = vmul.f32 %v5552, 1.442695
          %v5554 = vpow.pop %v5553
          %v5555 = vmul.f32 %v5551, %v5554
          %p5556 = scmp.lt.s32.totalorder %s31, 0
          %s5557 = ssub.s32 0, %s31
          %s5558 = scalar_select %p5556, %s5557, %s31
          %s5559 = sand.u32 %s5558, 7
          %s5560 = ssub.s32 0, %s5559
          %s5561 = scalar_select %p5556, %s5560, %s5559
          %p5562 = scmp.ne.s32.totalorder %s5561, 0
          %p5563 = scmp.lt.s32.totalorder %s5561, 0
          %p5564 = pnand %p5563, %p5562
          %p5565 = pneg %p5564
          %s5566 = sadd.s32 %s5561, 8
          %s5567 = scalar_select %p5565, %s5566, %s5561
          %s5568 = smul.u32 %s5567, 128
          %s5569 = sld [smem:[#allocation6 + %s5568]]
          %v5570 = vsub.s32 %v5335, %v2222
          %v5571 = vsub.s32 %v5335, %v2223
          %v5572 = vsub.s32 %v5335, %v2224
          %v5573 = vsub.s32 %v5335, %v2225
          %v5574 = vsub.s32 %v5335, %v2226
          %v5575 = vsub.s32 %v5335, %v2227
          %v5576 = vsub.s32 %v5335, %v2228
          %v5577 = vsub.s32 %v5335, %v2229
          %vm5578 = vcmp.eq.s32.totalorder %v5570, 4294967292
          %vm5579 = vcmp.eq.s32.totalorder %v5571, 4294967292
          %vm5580 = vcmp.eq.s32.totalorder %v5572, 4294967292
          %vm5581 = vcmp.eq.s32.totalorder %v5573, 4294967292
          %vm5582 = vcmp.eq.s32.totalorder %v5574, 4294967292
          %vm5583 = vcmp.eq.s32.totalorder %v5575, 4294967292
          %vm5584 = vcmp.eq.s32.totalorder %v5576, 4294967292
          %vm5585 = vcmp.eq.s32.totalorder %v5577, 4294967292
          %v5586 = vstv %s5569
          %v5587 = vsel %vm5578, %v5586, 0.0
          %v5588 = vsel %vm5579, %v5586, 0.0
          %v5589 = vsel %vm5580, %v5586, 0.0
          %v5590 = vsel %vm5581, %v5586, 0.0
          %v5591 = vsel %vm5582, %v5586, 0.0
          %v5592 = vsel %vm5583, %v5586, 0.0
          %v5593 = vsel %vm5584, %v5586, 0.0
          %v5594 = vsel %vm5585, %v5586, 0.0
          %v5595 = vadd.f32 %v5587, 0.0
          %v5596 = vadd.f32 %v5588, 0.0
          %v5597 = vadd.f32 %v5589, 0.0
          %v5598 = vadd.f32 %v5590, 0.0
          %v5599 = vadd.f32 %v5591, 0.0
          %v5600 = vadd.f32 %v5592, 0.0
          %v5601 = vadd.f32 %v5593, 0.0
          %v5602 = vadd.f32 %v5594, 0.0
          %s5603 = sadd.s32 %s5568, 1
          %s5604 = sld [smem:[#allocation6 + %s5603]]
          %vm5605 = vcmp.eq.s32.totalorder %v5570, 4294967293
          %vm5606 = vcmp.eq.s32.totalorder %v5571, 4294967293
          %vm5607 = vcmp.eq.s32.totalorder %v5572, 4294967293
          %vm5608 = vcmp.eq.s32.totalorder %v5573, 4294967293
          %vm5609 = vcmp.eq.s32.totalorder %v5574, 4294967293
          %vm5610 = vcmp.eq.s32.totalorder %v5575, 4294967293
          %vm5611 = vcmp.eq.s32.totalorder %v5576, 4294967293
          %vm5612 = vcmp.eq.s32.totalorder %v5577, 4294967293
          %v5613 = vstv %s5604
          %v5614 = vsel %vm5605, %v5613, 0.0
          %v5615 = vsel %vm5606, %v5613, 0.0
          %v5616 = vsel %vm5607, %v5613, 0.0
          %v5617 = vsel %vm5608, %v5613, 0.0
          %v5618 = vsel %vm5609, %v5613, 0.0
          %v5619 = vsel %vm5610, %v5613, 0.0
          %v5620 = vsel %vm5611, %v5613, 0.0
          %v5621 = vsel %vm5612, %v5613, 0.0
          %v5622 = vadd.f32 %v5595, %v5614
          %v5623 = vadd.f32 %v5596, %v5615
          %v5624 = vadd.f32 %v5597, %v5616
          %v5625 = vadd.f32 %v5598, %v5617
          %v5626 = vadd.f32 %v5599, %v5618
          %v5627 = vadd.f32 %v5600, %v5619
          %v5628 = vadd.f32 %v5601, %v5620
          %v5629 = vadd.f32 %v5602, %v5621
          %s5630 = sadd.s32 %s5568, 2
          %s5631 = sld [smem:[#allocation6 + %s5630]]
          %vm5632 = vcmp.eq.s32.totalorder %v5570, 4294967294
          %vm5633 = vcmp.eq.s32.totalorder %v5571, 4294967294
          %vm5634 = vcmp.eq.s32.totalorder %v5572, 4294967294
          %vm5635 = vcmp.eq.s32.totalorder %v5573, 4294967294
          %vm5636 = vcmp.eq.s32.totalorder %v5574, 4294967294
          %vm5637 = vcmp.eq.s32.totalorder %v5575, 4294967294
          %vm5638 = vcmp.eq.s32.totalorder %v5576, 4294967294
          %vm5639 = vcmp.eq.s32.totalorder %v5577, 4294967294
          %v5640 = vstv %s5631
          %v5641 = vsel %vm5632, %v5640, 0.0
          %v5642 = vsel %vm5633, %v5640, 0.0
          %v5643 = vsel %vm5634, %v5640, 0.0
          %v5644 = vsel %vm5635, %v5640, 0.0
          %v5645 = vsel %vm5636, %v5640, 0.0
          %v5646 = vsel %vm5637, %v5640, 0.0
          %v5647 = vsel %vm5638, %v5640, 0.0
          %v5648 = vsel %vm5639, %v5640, 0.0
          %v5649 = vadd.f32 %v5622, %v5641
          %v5650 = vadd.f32 %v5623, %v5642
          %v5651 = vadd.f32 %v5624, %v5643
          %v5652 = vadd.f32 %v5625, %v5644
          %v5653 = vadd.f32 %v5626, %v5645
          %v5654 = vadd.f32 %v5627, %v5646
          %v5655 = vadd.f32 %v5628, %v5647
          %v5656 = vadd.f32 %v5629, %v5648
          %s5657 = sadd.s32 %s5568, 3
          %s5658 = sld [smem:[#allocation6 + %s5657]]
          %vm5659 = vcmp.eq.s32.totalorder %v5570, 4294967295
          %vm5660 = vcmp.eq.s32.totalorder %v5571, 4294967295
          %vm5661 = vcmp.eq.s32.totalorder %v5572, 4294967295
          %vm5662 = vcmp.eq.s32.totalorder %v5573, 4294967295
          %vm5663 = vcmp.eq.s32.totalorder %v5574, 4294967295
          %vm5664 = vcmp.eq.s32.totalorder %v5575, 4294967295
          %vm5665 = vcmp.eq.s32.totalorder %v5576, 4294967295
          %vm5666 = vcmp.eq.s32.totalorder %v5577, 4294967295
          %v5667 = vstv %s5658
          %v5668 = vsel %vm5659, %v5667, 0.0
          %v5669 = vsel %vm5660, %v5667, 0.0
          %v5670 = vsel %vm5661, %v5667, 0.0
          %v5671 = vsel %vm5662, %v5667, 0.0
          %v5672 = vsel %vm5663, %v5667, 0.0
          %v5673 = vsel %vm5664, %v5667, 0.0
          %v5674 = vsel %vm5665, %v5667, 0.0
          %v5675 = vsel %vm5666, %v5667, 0.0
          %v5676 = vadd.f32 %v5649, %v5668
          %v5677 = vadd.f32 %v5650, %v5669
          %v5678 = vadd.f32 %v5651, %v5670
          %v5679 = vadd.f32 %v5652, %v5671
          %v5680 = vadd.f32 %v5653, %v5672
          %v5681 = vadd.f32 %v5654, %v5673
          %v5682 = vadd.f32 %v5655, %v5674
          %v5683 = vadd.f32 %v5656, %v5675
          %s5684 = sadd.s32 %s5568, 4
          %s5685 = sld [smem:[#allocation6 + %s5684]]
          %vm5686 = vcmp.eq.s32.totalorder %v5570, 0
          %vm5687 = vcmp.eq.s32.totalorder %v5571, 0
          %vm5688 = vcmp.eq.s32.totalorder %v5572, 0
          %vm5689 = vcmp.eq.s32.totalorder %v5573, 0
          %vm5690 = vcmp.eq.s32.totalorder %v5574, 0
          %vm5691 = vcmp.eq.s32.totalorder %v5575, 0
          %vm5692 = vcmp.eq.s32.totalorder %v5576, 0
          %vm5693 = vcmp.eq.s32.totalorder %v5577, 0
          %v5694 = vstv %s5685
          %v5695 = vsel %vm5686, %v5694, 0.0
          %v5696 = vsel %vm5687, %v5694, 0.0
          %v5697 = vsel %vm5688, %v5694, 0.0
          %v5698 = vsel %vm5689, %v5694, 0.0
          %v5699 = vsel %vm5690, %v5694, 0.0
          %v5700 = vsel %vm5691, %v5694, 0.0
          %v5701 = vsel %vm5692, %v5694, 0.0
          %v5702 = vsel %vm5693, %v5694, 0.0
          %v5703 = vadd.f32 %v5676, %v5695
          %v5704 = vadd.f32 %v5677, %v5696
          %v5705 = vadd.f32 %v5678, %v5697
          %v5706 = vadd.f32 %v5679, %v5698
          %v5707 = vadd.f32 %v5680, %v5699
          %v5708 = vadd.f32 %v5681, %v5700
          %v5709 = vadd.f32 %v5682, %v5701
          %v5710 = vadd.f32 %v5683, %v5702
          %s5711 = sadd.s32 %s5568, 5
          %s5712 = sld [smem:[#allocation6 + %s5711]]
          %vm5713 = vcmp.eq.s32.totalorder %v5570, 1
          %vm5714 = vcmp.eq.s32.totalorder %v5571, 1
          %vm5715 = vcmp.eq.s32.totalorder %v5572, 1
          %vm5716 = vcmp.eq.s32.totalorder %v5573, 1
          %vm5717 = vcmp.eq.s32.totalorder %v5574, 1
          %vm5718 = vcmp.eq.s32.totalorder %v5575, 1
          %vm5719 = vcmp.eq.s32.totalorder %v5576, 1
          %vm5720 = vcmp.eq.s32.totalorder %v5577, 1
          %v5721 = vstv %s5712
          %v5722 = vsel %vm5713, %v5721, 0.0
          %v5723 = vsel %vm5714, %v5721, 0.0
          %v5724 = vsel %vm5715, %v5721, 0.0
          %v5725 = vsel %vm5716, %v5721, 0.0
          %v5726 = vsel %vm5717, %v5721, 0.0
          %v5727 = vsel %vm5718, %v5721, 0.0
          %v5728 = vsel %vm5719, %v5721, 0.0
          %v5729 = vsel %vm5720, %v5721, 0.0
          %v5730 = vadd.f32 %v5703, %v5722
          %v5731 = vadd.f32 %v5704, %v5723
          %v5732 = vadd.f32 %v5705, %v5724
          %v5733 = vadd.f32 %v5706, %v5725
          %v5734 = vadd.f32 %v5707, %v5726
          %v5735 = vadd.f32 %v5708, %v5727
          %v5736 = vadd.f32 %v5709, %v5728
          %v5737 = vadd.f32 %v5710, %v5729
          %s5738 = sadd.s32 %s5568, 6
          %s5739 = sld [smem:[#allocation6 + %s5738]]
          %vm5740 = vcmp.eq.s32.totalorder %v5570, 2
          %vm5741 = vcmp.eq.s32.totalorder %v5571, 2
          %vm5742 = vcmp.eq.s32.totalorder %v5572, 2
          %vm5743 = vcmp.eq.s32.totalorder %v5573, 2
          %vm5744 = vcmp.eq.s32.totalorder %v5574, 2
          %vm5745 = vcmp.eq.s32.totalorder %v5575, 2
          %vm5746 = vcmp.eq.s32.totalorder %v5576, 2
          %vm5747 = vcmp.eq.s32.totalorder %v5577, 2
          %v5748 = vstv %s5739
          %v5749 = vsel %vm5740, %v5748, 0.0
          %v5750 = vsel %vm5741, %v5748, 0.0
          %v5751 = vsel %vm5742, %v5748, 0.0
          %v5752 = vsel %vm5743, %v5748, 0.0
          %v5753 = vsel %vm5744, %v5748, 0.0
          %v5754 = vsel %vm5745, %v5748, 0.0
          %v5755 = vsel %vm5746, %v5748, 0.0
          %v5756 = vsel %vm5747, %v5748, 0.0
          %v5757 = vadd.f32 %v5730, %v5749
          %v5758 = vadd.f32 %v5731, %v5750
          %v5759 = vadd.f32 %v5732, %v5751
          %v5760 = vadd.f32 %v5733, %v5752
          %v5761 = vadd.f32 %v5734, %v5753
          %v5762 = vadd.f32 %v5735, %v5754
          %v5763 = vadd.f32 %v5736, %v5755
          %v5764 = vadd.f32 %v5737, %v5756
          %s5765 = sadd.s32 %s5568, 7
          %s5766 = sld [smem:[#allocation6 + %s5765]]
          %vm5767 = vcmp.eq.s32.totalorder %v5570, 3
          %vm5768 = vcmp.eq.s32.totalorder %v5571, 3
          %vm5769 = vcmp.eq.s32.totalorder %v5572, 3
          %vm5770 = vcmp.eq.s32.totalorder %v5573, 3
          %vm5771 = vcmp.eq.s32.totalorder %v5574, 3
          %vm5772 = vcmp.eq.s32.totalorder %v5575, 3
          %vm5773 = vcmp.eq.s32.totalorder %v5576, 3
          %vm5774 = vcmp.eq.s32.totalorder %v5577, 3
          %v5775 = vstv %s5766
          %v5776 = vsel %vm5767, %v5775, 0.0
          %v5777 = vsel %vm5768, %v5775, 0.0
          %v5778 = vsel %vm5769, %v5775, 0.0
          %v5779 = vsel %vm5770, %v5775, 0.0
          %v5780 = vsel %vm5771, %v5775, 0.0
          %v5781 = vsel %vm5772, %v5775, 0.0
          %v5782 = vsel %vm5773, %v5775, 0.0
          %v5783 = vsel %vm5774, %v5775, 0.0
          %v5784 = vadd.f32 %v5757, %v5776
          %v5785 = vadd.f32 %v5758, %v5777
          %v5786 = vadd.f32 %v5759, %v5778
          %v5787 = vadd.f32 %v5760, %v5779
          %v5788 = vadd.f32 %v5761, %v5780
          %v5789 = vadd.f32 %v5762, %v5781
          %v5790 = vadd.f32 %v5763, %v5782
          %v5791 = vadd.f32 %v5764, %v5783
          %s5792 = sadd.s32 %s5568, 8
          %s5793 = sld [smem:[#allocation6 + %s5792]]
          %vm5794 = vcmp.eq.s32.totalorder %v5570, 4
          %vm5795 = vcmp.eq.s32.totalorder %v5571, 4
          %vm5796 = vcmp.eq.s32.totalorder %v5572, 4
          %vm5797 = vcmp.eq.s32.totalorder %v5573, 4
          %vm5798 = vcmp.eq.s32.totalorder %v5574, 4
          %vm5799 = vcmp.eq.s32.totalorder %v5575, 4
          %vm5800 = vcmp.eq.s32.totalorder %v5576, 4
          %vm5801 = vcmp.eq.s32.totalorder %v5577, 4
          %v5802 = vstv %s5793
          %v5803 = vsel %vm5794, %v5802, 0.0
          %v5804 = vsel %vm5795, %v5802, 0.0
          %v5805 = vsel %vm5796, %v5802, 0.0
          %v5806 = vsel %vm5797, %v5802, 0.0
          %v5807 = vsel %vm5798, %v5802, 0.0
          %v5808 = vsel %vm5799, %v5802, 0.0
          %v5809 = vsel %vm5800, %v5802, 0.0
          %v5810 = vsel %vm5801, %v5802, 0.0
          %v5811 = vadd.f32 %v5784, %v5803
          %v5812 = vadd.f32 %v5785, %v5804
          %v5813 = vadd.f32 %v5786, %v5805
          %v5814 = vadd.f32 %v5787, %v5806
          %v5815 = vadd.f32 %v5788, %v5807
          %v5816 = vadd.f32 %v5789, %v5808
          %v5817 = vadd.f32 %v5790, %v5809
          %v5818 = vadd.f32 %v5791, %v5810
          %v5819 = vmul.f32 %v5555, %v5811
          %v5820 = vmul.f32 %v5555, %v5812
          %v5821 = vmul.f32 %v5555, %v5813
          %v5822 = vmul.f32 %v5555, %v5814
          %v5823 = vmul.f32 %v5555, %v5815
          %v5824 = vmul.f32 %v5555, %v5816
          %v5825 = vmul.f32 %v5555, %v5817
          %v5826 = vmul.f32 %v5555, %v5818
          %5827 = vadd.xlane.f32.xlu0 %v5819
          %v5828 = vpop.xlane.xlu0 %5827
          %5829 = vadd.xlane.f32.xlu0 %v5820
          %v5830 = vpop.xlane.xlu0 %5829
          %5831 = vadd.xlane.f32.xlu0 %v5821
          %v5832 = vpop.xlane.xlu0 %5831
          %5833 = vadd.xlane.f32.xlu0 %v5822
          %v5834 = vpop.xlane.xlu0 %5833
          %5835 = vadd.xlane.f32.xlu0 %v5823
          %v5836 = vpop.xlane.xlu0 %5835
          %5837 = vadd.xlane.f32.xlu0 %v5824
          %v5838 = vpop.xlane.xlu0 %5837
          %5839 = vadd.xlane.f32.xlu0 %v5825
          %v5840 = vpop.xlane.xlu0 %5839
          %5841 = vadd.xlane.f32.xlu0 %v5826
          %v5842 = vpop.xlane.xlu0 %5841
          %v5843 = vmul.f32 %v5828, %v5352
          %v5844 = vmul.f32 %v5830, %v5353
          %v5845 = vmul.f32 %v5832, %v5354
          %v5846 = vmul.f32 %v5834, %v5355
          %v5847 = vmul.f32 %v5836, %v5356
          %v5848 = vmul.f32 %v5838, %v5357
          %v5849 = vmul.f32 %v5840, %v5358
          %v5850 = vmul.f32 %v5842, %v5359
          %v5851 = vadd.f32 %v5843, %v5844
          %v5852 = vadd.f32 %v5851, %v5845
          %v5853 = vadd.f32 %v5852, %v5846
          %v5854 = vadd.f32 %v5853, %v5847
          %v5855 = vadd.f32 %v5854, %v5848
          %v5856 = vadd.f32 %v5855, %v5849
          %v5857 = vadd.f32 %v5856, %v5850
          %v5858 = vrot.slane %v5857, 4
          %v5859 = vadd.f32 %v5857, %v5858
          %v5860 = vrot.slane %v5859, 2
          %v5861 = vadd.f32 %v5859, %v5860
          %v5862 = vrot.slane %v5861, 1
          %v5863 = vadd.f32 %v5861, %v5862
          %5864 = vst [vmem:[%s356] sm:$0x1] %v5863
        $region60: #{tpu_custom_call.1} parent=43 // pred_fallthru
          _
        %s5865 = sand.u32 %s187, 1
        %s5866 = scalar_lea.sflag [#allocation4], %s5865
        %s5867 = sand.u32 %s187, 1
        %s5868 = scalar_lea.vmem [#allocation8], %s5867
        %s5869 = sand.u32 %s213, 1
        %s5870 = scalar_lea.sflag [#allocation10], %s5869
        %s5871 = sand.u32 %s213, 1
        %s5872 = scalar_lea.vmem [#allocation9], %s5871
        // Predicated region
        $region61: #{tpu_custom_call.1} parent=43 // pred_check
          %p5873 = pneg %p197
        $region62: #{tpu_custom_call.1} parent=43 // pred_check_branch
          %5875 = sbr.rel (%p5873) target = $region64
        $region63: #{tpu_custom_call.1} parent=43 // pred_region
          %s5877 = ssub.s32 16, 16
          %5878 = vsyncadd %s5866, %s5877
          %s5879 = smul.addr %s31, 16
          %s5880 = scalar_lea.hbm %s6, %s5879
          %s5882 = sshll.u32 %s5868, 4
          %s5883 = int_to_ptr.vmem [resolvable:$true] %s5882
          %5885 = dma.vmem_to_hbm [thread:$0]  %s5883, 16, %s5880, %s5866
        $region64: #{tpu_custom_call.1} parent=43 // pred_fallthru
          _
        // Predicated region
        $region65: #{tpu_custom_call.1} parent=43 // pred_check
          %p5886 = pneg %p223
        $region66: #{tpu_custom_call.1} parent=43 // pred_check_branch
          %5888 = sbr.rel (%p5886) target = $region68
        $region67: #{tpu_custom_call.1} parent=43 // pred_region
          %s5890 = ssub.s32 16, 16
          %5891 = vsyncadd %s5870, %s5890
          %s5892 = smul.addr %s31, 16
          %s5893 = scalar_lea.hbm %s7, %s5892
          %s5895 = sshll.u32 %s5872, 4
          %s5896 = int_to_ptr.vmem [resolvable:$true] %s5895
          %5898 = dma.vmem_to_hbm [thread:$0]  %s5896, 16, %s5893, %s5870
        $region68: #{tpu_custom_call.1} parent=43 // pred_fallthru
          _
      $region44: #{tpu_custom_call.1} parent=5 // pred_fallthru
        _
      %p5899 = scmp.le.s32.totalorder 2, %s22
      // Predicated region
      $region69: #{tpu_custom_call.1} parent=5 // pred_check
        %p5900 = pneg %p5899
      $region70: #{tpu_custom_call.1} parent=5 // pred_check_branch
        %5902 = sbr.rel (%p5900) target = $region72
      $region71: #{tpu_custom_call.1} parent=5 // pred_region
        %s5903 = ssub.s32 %s22, 2
        // Predicated region
        $region73: #{tpu_custom_call.1} parent=71 // pred_check
          %p5904 = pneg %p203
        $region74: #{tpu_custom_call.1} parent=71 // pred_check_branch
          %5906 = sbr.rel (%p5904) target = $region76
        $region75: #{tpu_custom_call.1} parent=71 // pred_region
          %s5907 = sand.u32 %s188, 1
          %s5908 = scalar_lea.sflag [#allocation4], %s5907
          %s5909 = sand.u32 %s188, 1
          %s5910 = scalar_lea.vmem [#allocation8], %s5909
          %5911 = dma.done %s5908, 16
        $region76: #{tpu_custom_call.1} parent=71 // pred_fallthru
          _
        // Predicated region
        $region77: #{tpu_custom_call.1} parent=71 // pred_check
          %p5912 = pneg %p229
        $region78: #{tpu_custom_call.1} parent=71 // pred_check_branch
          %5914 = sbr.rel (%p5912) target = $region80
        $region79: #{tpu_custom_call.1} parent=71 // pred_region
          %s5915 = sand.u32 %s214, 1
          %s5916 = scalar_lea.sflag [#allocation10], %s5915
          %s5917 = sand.u32 %s214, 1
          %s5918 = scalar_lea.vmem [#allocation9], %s5917
          %5919 = dma.done %s5916, 16
        $region80: #{tpu_custom_call.1} parent=71 // pred_fallthru
          _
      $region72: #{tpu_custom_call.1} parent=5 // pred_fallthru
        _
    $region6: #{tpu_custom_call.1} parent=1 // loop_footer
      %s26 = sadd.s32 1, %s22
    $region7: #{tpu_custom_call.1} parent=1 // loop_footer_branch
      %21 = sbr.rel target = $region3
    $region8: #{tpu_custom_call.1} parent=1 // loop_exit
      _
    %5920 = vsyncpa [#allocation4], 1
    %s5921 = scalar_lea.sflag [#allocation4], 1
    %5922 = vsyncpa %s5921, 1
    %5923 = vsyncpa [#allocation10], 1
    %s5924 = scalar_lea.sflag [#allocation10], 1
    %5925 = vsyncpa %s5924, 1
    %5926 = vsyncpa [#allocation5], 1
    %s5927 = scalar_lea.sflag [#allocation5], 1
    %5928 = vsyncpa %s5927, 1
    %5929 = vsyncpa [#allocation7], 1

</llo_original>
